<compile_context>
chip_gen: v7x
topology: tpu7x:2x2x1
jax: 0.10.0
libtpu: 0.0.40
codegen_flags: <defaults>
</compile_context>

<pallas_src>
import jax
import jax.numpy as jnp
import numpy as np
from jax import lax
from jax.experimental import pallas as pl
from jax.experimental.pallas import tpu as pltpu


def actor_kernel(state_ref,   # (B, T, D) f32  batch-first, whole in VMEM
                 len_ref,     # (B, 1)   i32  index of last valid step per row
                 w_ih_ref,    # (D, 3H)  f32  gate order r, z, n (PyTorch)
                 b_i_ref,     # (1, 3H)  f32  = [b_ir+b_hr, b_iz+b_hz, b_in]
                 w_hr_ref,    # (H, H)
                 w_hz_ref,    # (H, H)
                 w_hn_ref,    # (H, H)
                 b_hn_ref,    # (1, H)
                 w_fc_ref,    # (H, H2)
                 b_fc_ref,    # (1, H2)
                 w_pol_ref,   # (H2, O)
                 b_pol_ref,   # (1, O)
                 out_ref):    # (B, O)
    B, T, D = state_ref.shape
    H = w_hr_ref.shape[0]

    # ---- hoisted input projection: one large MXU matmul over all timesteps ----
    x_all = state_ref[...].reshape(B * T, D)                                  # (B*T, D)
    gi_all = jnp.dot(x_all, w_ih_ref[...],
                     preferred_element_type=jnp.float32) + b_i_ref[...]       # (B*T, 3H)
    # split into per-gate, lane-aligned arrays ONCE (outside the serial loop)
    gi_r = gi_all[:, 0 * H:1 * H].reshape(B, T, H)
    gi_z = gi_all[:, 1 * H:2 * H].reshape(B, T, H)
    gi_n = gi_all[:, 2 * H:3 * H].reshape(B, T, H)

    w_hr = w_hr_ref[...]
    w_hz = w_hz_ref[...]
    w_hn = w_hn_ref[...]
    b_hn = jnp.broadcast_to(b_hn_ref[...], (B, H))    # broadcast once, not per step

    lengths = len_ref[...]                            # (B, 1) int32

    h = jnp.zeros((B, H), jnp.float32)
    last_h = jnp.zeros((B, H), jnp.float32)

    # ---- fully unrolled recurrence; h / last_h live in vregs ----
    for t in range(T):
        gh_r = jnp.dot(h, w_hr, preferred_element_type=jnp.float32)
        gh_z = jnp.dot(h, w_hz, preferred_element_type=jnp.float32)
        gh_n = jnp.dot(h, w_hn, preferred_element_type=jnp.float32)

        r = jax.nn.sigmoid(gi_r[:, t, :] + gh_r)
        z = jax.nn.sigmoid(gi_z[:, t, :] + gh_z)
        n = jnp.tanh(gi_n[:, t, :] + r * (gh_n + b_hn))
        # h' = (1-z)*n + z*h  ==  n + z*(h - n)   (one fewer VALU op per step)
        h = n + z * (h - n)

        # gather gru_out[b, lengths[b]] on the fly (handles arbitrary masks)
        last_h = jnp.where(lengths == t, h, last_h)

    # ---- head: Linear + ReLU -> (dropout = identity in eval) -> Linear + Tanh ----
    hidden = jnp.maximum(
        jnp.dot(last_h, w_fc_ref[...], preferred_element_type=jnp.float32) + b_fc_ref[...],
        0.0)
    # TODO(synk): dropout is identity in eval mode; training-mode dropout would need pltpu.prng_*.
    out_ref[...] = jnp.tanh(
        jnp.dot(hidden, w_pol_ref[...], preferred_element_type=jnp.float32) + b_pol_ref[...])


def actor_forward(state_btd, mask_bt, params):
    """state_btd: (B, T, D) f32 (PyTorch batch_first layout), mask_bt: (B, T) f32."""
    B, T, D = state_btd.shape
    H = params["w_hh"].shape[0]
    O = params["w_pol"].shape[1]

    # last-valid-step index per row (PyTorch: mask.sum(1) - 1), precomputed so the
    # kernel's serial region does no mask reduction.  All-zero mask rows (-1) wrap
    # to T-1 to match PyTorch's gru_out[:, -1] negative-index behavior.
    lengths = mask_bt.sum(axis=1).astype(jnp.int32) - 1
    lengths = jnp.where(lengths < 0, lengths + T, lengths).reshape(B, 1)

    # fold hidden biases of the r/z gates into the input-projection bias, split w_hh
    # per gate so the in-loop gate math stays lane-aligned.
    b_ih, b_hh, w_hh = params["b_ih"], params["b_hh"], params["w_hh"]
    b_i = jnp.concatenate(
        [b_ih[:, 0 * H:1 * H] + b_hh[:, 0 * H:1 * H],
         b_ih[:, 1 * H:2 * H] + b_hh[:, 1 * H:2 * H],
         b_ih[:, 2 * H:3 * H]], axis=1)
    w_hr = w_hh[:, 0 * H:1 * H]
    w_hz = w_hh[:, 1 * H:2 * H]
    w_hn = w_hh[:, 2 * H:3 * H]
    b_hn = b_hh[:, 2 * H:3 * H]

    vmem = pl.BlockSpec(memory_space=pltpu.MemorySpace.VMEM)
    return pl.pallas_call(
        actor_kernel,
        out_shape=jax.ShapeDtypeStruct((B, O), jnp.float32),
        in_specs=[vmem] * 12,
        out_specs=vmem,
    )(state_btd, lengths,
      params["w_ih"], b_i, w_hr, w_hz, w_hn, b_hn,
      params["w_fc"], params["b_fc"], params["w_pol"], params["b_pol"])


def actor_reference(state, mask, params):
    """Pure-JAX reference matching the PyTorch forward (eval mode)."""
    B, T, D = state.shape
    H = params["w_hh"].shape[0]

    def gru_step(h, x_t):
        gi = x_t @ params["w_ih"] + params["b_ih"]
        gh = h @ params["w_hh"] + params["b_hh"]
        r = jax.nn.sigmoid(gi[:, :H] + gh[:, :H])
        z = jax.nn.sigmoid(gi[:, H:2 * H] + gh[:, H:2 * H])
        n = jnp.tanh(gi[:, 2 * H:] + r * gh[:, 2 * H:])
        h_new = (1.0 - z) * n + z * h
        return h_new, h_new

    h0 = jnp.zeros((B, H), jnp.float32)
    _, hs = lax.scan(gru_step, h0, jnp.transpose(state, (1, 0, 2)))
    gru_out = jnp.transpose(hs, (1, 0, 2))                       # (B, T, H)
    lengths = mask.sum(axis=1).astype(jnp.int32) - 1
    last_hidden = gru_out[jnp.arange(B), lengths]
    hidden = jax.nn.relu(last_hidden @ params["w_fc"] + params["b_fc"])
    return jnp.tanh(hidden @ params["w_pol"] + params["b_pol"])


def init_params(key, input_dim, output_dim, hidden_dims):
    H, H2 = hidden_dims
    ks = jax.random.split(key, 8)

    def u(k, shape, bound):
        return jax.random.uniform(k, shape, jnp.float32, -bound, bound)

    bg = 1.0 / np.sqrt(H)        # PyTorch GRU init bound
    bfc = 1.0 / np.sqrt(H)       # Linear(H, H2) init bound
    bpol = 1.0 / np.sqrt(H2)     # Linear(H2, O) init bound
    return {
        # GRU weights pre-transposed to (in, 3H) so the kernel does x @ W; gate order r,z,n.
        "w_ih": u(ks[0], (input_dim, 3 * H), bg),
        "w_hh": u(ks[1], (H, 3 * H), bg),
        "b_ih": u(ks[2], (1, 3 * H), bg),
        "b_hh": u(ks[3], (1, 3 * H), bg),
        "w_fc": u(ks[4], (H, H2), bfc),
        "b_fc": u(ks[5], (1, H2), bfc),
        "w_pol": u(ks[6], (H2, output_dim), bpol),
        "b_pol": u(ks[7], (1, output_dim), bpol),
    }


if __name__ == "__main__":
    B, T = 2, 8
    input_dim, output_dim = 4, 4
    hidden_dims = [32, 32]

    key = jax.random.PRNGKey(0)
    k_state, k_params = jax.random.split(key)

    state = jax.random.normal(k_state, (B, T, input_dim), jnp.float32)
    # mask: first row fully valid, second row valid for 5 steps
    mask = jnp.array(
        [[1, 1, 1, 1, 1, 1, 1, 1],
         [1, 1, 1, 1, 1, 0, 0, 0]], dtype=jnp.float32)

    params = init_params(k_params, input_dim, output_dim, hidden_dims)

    actor_fn = jax.jit(actor_forward)
    out = actor_fn(state, mask, params)
    out = jax.block_until_ready(out)

    ref = actor_reference(state, mask, params)
    np.testing.assert_allclose(np.asarray(out), np.asarray(ref), rtol=1e-5, atol=1e-5)

    print("KERNEL_OK")
</pallas_src>

<mosaic_0001>
module attributes {stable_mosaic.version = 11 : i64} {
  func.func @actor_kernel(%arg0: memref<2x8x4xf32, #tpu.memory_space<vmem>>, %arg1: memref<2x1xi32, #tpu.memory_space<vmem>>, %arg2: memref<4x96xf32, #tpu.memory_space<vmem>>, %arg3: memref<1x96xf32, #tpu.memory_space<vmem>>, %arg4: memref<32x32xf32, #tpu.memory_space<vmem>>, %arg5: memref<32x32xf32, #tpu.memory_space<vmem>>, %arg6: memref<32x32xf32, #tpu.memory_space<vmem>>, %arg7: memref<1x32xf32, #tpu.memory_space<vmem>>, %arg8: memref<32x32xf32, #tpu.memory_space<vmem>>, %arg9: memref<1x32xf32, #tpu.memory_space<vmem>>, %arg10: memref<32x4xf32, #tpu.memory_space<vmem>>, %arg11: memref<1x4xf32, #tpu.memory_space<vmem>>, %arg12: memref<2x4xf32, #tpu.memory_space<vmem>>) attributes {dimension_semantics = [], scalar_prefetch = 0 : i64, scratch_operands = 0 : i64, tpu.core_type = #tpu.core_type<tc>} {
    %c0 = arith.constant 0 : index
    %c0_0 = arith.constant 0 : index
    %c0_1 = arith.constant 0 : index
    %0 = vector.load %arg0[%c0, %c0_0, %c0_1] : memref<2x8x4xf32, #tpu.memory_space<vmem>>, vector<2x8x4xf32>
    %1 = vector.shape_cast %0 : vector<2x8x4xf32> to vector<16x4xf32>
    %c0_2 = arith.constant 0 : index
    %c0_3 = arith.constant 0 : index
    %2 = vector.load %arg2[%c0_2, %c0_3] : memref<4x96xf32, #tpu.memory_space<vmem>>, vector<4x96xf32>
    %cst = arith.constant dense<0.000000e+00> : vector<16x96xf32>
    %3 = tpu.matmul %1, %2, %cst {dimension_numbers = #tpu.dot_dimension_numbers<[1], [0], [0], [1], [0, 0, 1, 1], [], []>} : vector<16x4xf32>, vector<4x96xf32>, vector<16x96xf32> -> vector<16x96xf32>
    %c0_4 = arith.constant 0 : index
    %c0_5 = arith.constant 0 : index
    %4 = vector.load %arg3[%c0_4, %c0_5] : memref<1x96xf32, #tpu.memory_space<vmem>>, vector<1x96xf32>
    %5 = vector.broadcast %4 : vector<1x96xf32> to vector<16x96xf32>
    %6 = arith.addf %3, %5 : vector<16x96xf32>
    %7 = vector.extract_strided_slice %6 {offsets = [0, 0], sizes = [16, 32], strides = [1, 1]} : vector<16x96xf32> to vector<16x32xf32>
    %8 = vector.shape_cast %7 : vector<16x32xf32> to vector<2x8x32xf32>
    %9 = vector.extract_strided_slice %6 {offsets = [0, 32], sizes = [16, 32], strides = [1, 1]} : vector<16x96xf32> to vector<16x32xf32>
    %10 = vector.shape_cast %9 : vector<16x32xf32> to vector<2x8x32xf32>
    %11 = vector.extract_strided_slice %6 {offsets = [0, 64], sizes = [16, 32], strides = [1, 1]} : vector<16x96xf32> to vector<16x32xf32>
    %12 = vector.shape_cast %11 : vector<16x32xf32> to vector<2x8x32xf32>
    %c0_6 = arith.constant 0 : index
    %c0_7 = arith.constant 0 : index
    %13 = vector.load %arg4[%c0_6, %c0_7] : memref<32x32xf32, #tpu.memory_space<vmem>>, vector<32x32xf32>
    %c0_8 = arith.constant 0 : index
    %c0_9 = arith.constant 0 : index
    %14 = vector.load %arg5[%c0_8, %c0_9] : memref<32x32xf32, #tpu.memory_space<vmem>>, vector<32x32xf32>
    %c0_10 = arith.constant 0 : index
    %c0_11 = arith.constant 0 : index
    %15 = vector.load %arg6[%c0_10, %c0_11] : memref<32x32xf32, #tpu.memory_space<vmem>>, vector<32x32xf32>
    %c0_12 = arith.constant 0 : index
    %c0_13 = arith.constant 0 : index
    %16 = vector.load %arg7[%c0_12, %c0_13] : memref<1x32xf32, #tpu.memory_space<vmem>>, vector<1x32xf32>
    %17 = vector.shape_cast %16 : vector<1x32xf32> to vector<1x32xf32>
    %18 = vector.broadcast %17 : vector<1x32xf32> to vector<2x32xf32>
    %c0_14 = arith.constant 0 : index
    %c0_15 = arith.constant 0 : index
    %19 = vector.load %arg1[%c0_14, %c0_15] : memref<2x1xi32, #tpu.memory_space<vmem>>, vector<2x1xi32>
    %cst_16 = arith.constant 0.000000e+00 : f32
    %20 = vector.broadcast %cst_16 : f32 to vector<2x32xf32>
    %cst_17 = arith.constant 0.000000e+00 : f32
    %21 = vector.broadcast %cst_17 : f32 to vector<2x32xf32>
    %cst_18 = arith.constant dense<0.000000e+00> : vector<2x32xf32>
    %22 = tpu.matmul %20, %13, %cst_18 {dimension_numbers = #tpu.dot_dimension_numbers<[1], [0], [0], [1], [0, 0, 1, 1], [], []>} : vector<2x32xf32>, vector<32x32xf32>, vector<2x32xf32> -> vector<2x32xf32>
    %cst_19 = arith.constant dense<0.000000e+00> : vector<2x32xf32>
    %23 = tpu.matmul %20, %14, %cst_19 {dimension_numbers = #tpu.dot_dimension_numbers<[1], [0], [0], [1], [0, 0, 1, 1], [], []>} : vector<2x32xf32>, vector<32x32xf32>, vector<2x32xf32> -> vector<2x32xf32>
    %cst_20 = arith.constant dense<0.000000e+00> : vector<2x32xf32>
    %24 = tpu.matmul %20, %15, %cst_20 {dimension_numbers = #tpu.dot_dimension_numbers<[1], [0], [0], [1], [0, 0, 1, 1], [], []>} : vector<2x32xf32>, vector<32x32xf32>, vector<2x32xf32> -> vector<2x32xf32>
    %25 = vector.extract_strided_slice %8 {offsets = [0, 0, 0], sizes = [2, 1, 32], strides = [1, 1, 1]} : vector<2x8x32xf32> to vector<2x1x32xf32>
    %26 = vector.shape_cast %25 : vector<2x1x32xf32> to vector<2x32xf32>
    %27 = arith.addf %26, %22 : vector<2x32xf32>
    %28 = arith.negf %27 : vector<2x32xf32>
    %29 = math.exp %28 : vector<2x32xf32>
    %cst_21 = arith.constant 1.000000e+00 : f32
    %30 = vector.broadcast %cst_21 : f32 to vector<2x32xf32>
    %31 = arith.addf %30, %29 : vector<2x32xf32>
    %32 = arith.divf %30, %31 : vector<2x32xf32>
    %33 = vector.extract_strided_slice %10 {offsets = [0, 0, 0], sizes = [2, 1, 32], strides = [1, 1, 1]} : vector<2x8x32xf32> to vector<2x1x32xf32>
    %34 = vector.shape_cast %33 : vector<2x1x32xf32> to vector<2x32xf32>
    %35 = arith.addf %34, %23 : vector<2x32xf32>
    %36 = arith.negf %35 : vector<2x32xf32>
    %37 = math.exp %36 : vector<2x32xf32>
    %cst_22 = arith.constant 1.000000e+00 : f32
    %38 = vector.broadcast %cst_22 : f32 to vector<2x32xf32>
    %39 = arith.addf %38, %37 : vector<2x32xf32>
    %40 = arith.divf %38, %39 : vector<2x32xf32>
    %41 = vector.extract_strided_slice %12 {offsets = [0, 0, 0], sizes = [2, 1, 32], strides = [1, 1, 1]} : vector<2x8x32xf32> to vector<2x1x32xf32>
    %42 = vector.shape_cast %41 : vector<2x1x32xf32> to vector<2x32xf32>
    %43 = arith.addf %24, %18 : vector<2x32xf32>
    %44 = arith.mulf %32, %43 : vector<2x32xf32>
    %45 = arith.addf %42, %44 : vector<2x32xf32>
    %46 = math.tanh %45 : vector<2x32xf32>
    %47 = arith.subf %20, %46 : vector<2x32xf32>
    %48 = arith.mulf %40, %47 : vector<2x32xf32>
    %49 = arith.addf %46, %48 : vector<2x32xf32>
    %c0_i32 = arith.constant 0 : i32
    %50 = vector.broadcast %c0_i32 : i32 to vector<2x1xi32>
    %51 = arith.cmpi eq, %19, %50 : vector<2x1xi32>
    %52 = vector.shape_cast %51 : vector<2x1xi1> to vector<2x1xi1>
    %53 = vector.broadcast %52 : vector<2x1xi1> to vector<2x32xi1>
    %54 = arith.select %53, %49, %21 : vector<2x32xi1>, vector<2x32xf32>
    %cst_23 = arith.constant dense<0.000000e+00> : vector<2x32xf32>
    %55 = tpu.matmul %49, %13, %cst_23 {dimension_numbers = #tpu.dot_dimension_numbers<[1], [0], [0], [1], [0, 0, 1, 1], [], []>} : vector<2x32xf32>, vector<32x32xf32>, vector<2x32xf32> -> vector<2x32xf32>
    %cst_24 = arith.constant dense<0.000000e+00> : vector<2x32xf32>
    %56 = tpu.matmul %49, %14, %cst_24 {dimension_numbers = #tpu.dot_dimension_numbers<[1], [0], [0], [1], [0, 0, 1, 1], [], []>} : vector<2x32xf32>, vector<32x32xf32>, vector<2x32xf32> -> vector<2x32xf32>
    %cst_25 = arith.constant dense<0.000000e+00> : vector<2x32xf32>
    %57 = tpu.matmul %49, %15, %cst_25 {dimension_numbers = #tpu.dot_dimension_numbers<[1], [0], [0], [1], [0, 0, 1, 1], [], []>} : vector<2x32xf32>, vector<32x32xf32>, vector<2x32xf32> -> vector<2x32xf32>
    %58 = vector.extract_strided_slice %8 {offsets = [0, 1, 0], sizes = [2, 1, 32], strides = [1, 1, 1]} : vector<2x8x32xf32> to vector<2x1x32xf32>
    %59 = vector.shape_cast %58 : vector<2x1x32xf32> to vector<2x32xf32>
    %60 = arith.addf %59, %55 : vector<2x32xf32>
    %61 = arith.negf %60 : vector<2x32xf32>
    %62 = math.exp %61 : vector<2x32xf32>
    %cst_26 = arith.constant 1.000000e+00 : f32
    %63 = vector.broadcast %cst_26 : f32 to vector<2x32xf32>
    %64 = arith.addf %63, %62 : vector<2x32xf32>
    %65 = arith.divf %63, %64 : vector<2x32xf32>
    %66 = vector.extract_strided_slice %10 {offsets = [0, 1, 0], sizes = [2, 1, 32], strides = [1, 1, 1]} : vector<2x8x32xf32> to vector<2x1x32xf32>
    %67 = vector.shape_cast %66 : vector<2x1x32xf32> to vector<2x32xf32>
    %68 = arith.addf %67, %56 : vector<2x32xf32>
    %69 = arith.negf %68 : vector<2x32xf32>
    %70 = math.exp %69 : vector<2x32xf32>
    %cst_27 = arith.constant 1.000000e+00 : f32
    %71 = vector.broadcast %cst_27 : f32 to vector<2x32xf32>
    %72 = arith.addf %71, %70 : vector<2x32xf32>
    %73 = arith.divf %71, %72 : vector<2x32xf32>
    %74 = vector.extract_strided_slice %12 {offsets = [0, 1, 0], sizes = [2, 1, 32], strides = [1, 1, 1]} : vector<2x8x32xf32> to vector<2x1x32xf32>
    %75 = vector.shape_cast %74 : vector<2x1x32xf32> to vector<2x32xf32>
    %76 = arith.addf %57, %18 : vector<2x32xf32>
    %77 = arith.mulf %65, %76 : vector<2x32xf32>
    %78 = arith.addf %75, %77 : vector<2x32xf32>
    %79 = math.tanh %78 : vector<2x32xf32>
    %80 = arith.subf %49, %79 : vector<2x32xf32>
    %81 = arith.mulf %73, %80 : vector<2x32xf32>
    %82 = arith.addf %79, %81 : vector<2x32xf32>
    %c1_i32 = arith.constant 1 : i32
    %83 = vector.broadcast %c1_i32 : i32 to vector<2x1xi32>
    %84 = arith.cmpi eq, %19, %83 : vector<2x1xi32>
    %85 = vector.shape_cast %84 : vector<2x1xi1> to vector<2x1xi1>
    %86 = vector.broadcast %85 : vector<2x1xi1> to vector<2x32xi1>
    %87 = arith.select %86, %82, %54 : vector<2x32xi1>, vector<2x32xf32>
    %cst_28 = arith.constant dense<0.000000e+00> : vector<2x32xf32>
    %88 = tpu.matmul %82, %13, %cst_28 {dimension_numbers = #tpu.dot_dimension_numbers<[1], [0], [0], [1], [0, 0, 1, 1], [], []>} : vector<2x32xf32>, vector<32x32xf32>, vector<2x32xf32> -> vector<2x32xf32>
    %cst_29 = arith.constant dense<0.000000e+00> : vector<2x32xf32>
    %89 = tpu.matmul %82, %14, %cst_29 {dimension_numbers = #tpu.dot_dimension_numbers<[1], [0], [0], [1], [0, 0, 1, 1], [], []>} : vector<2x32xf32>, vector<32x32xf32>, vector<2x32xf32> -> vector<2x32xf32>
    %cst_30 = arith.constant dense<0.000000e+00> : vector<2x32xf32>
    %90 = tpu.matmul %82, %15, %cst_30 {dimension_numbers = #tpu.dot_dimension_numbers<[1], [0], [0], [1], [0, 0, 1, 1], [], []>} : vector<2x32xf32>, vector<32x32xf32>, vector<2x32xf32> -> vector<2x32xf32>
    %91 = vector.extract_strided_slice %8 {offsets = [0, 2, 0], sizes = [2, 1, 32], strides = [1, 1, 1]} : vector<2x8x32xf32> to vector<2x1x32xf32>
    %92 = vector.shape_cast %91 : vector<2x1x32xf32> to vector<2x32xf32>
    %93 = arith.addf %92, %88 : vector<2x32xf32>
    %94 = arith.negf %93 : vector<2x32xf32>
    %95 = math.exp %94 : vector<2x32xf32>
    %cst_31 = arith.constant 1.000000e+00 : f32
    %96 = vector.broadcast %cst_31 : f32 to vector<2x32xf32>
    %97 = arith.addf %96, %95 : vector<2x32xf32>
    %98 = arith.divf %96, %97 : vector<2x32xf32>
    %99 = vector.extract_strided_slice %10 {offsets = [0, 2, 0], sizes = [2, 1, 32], strides = [1, 1, 1]} : vector<2x8x32xf32> to vector<2x1x32xf32>
    %100 = vector.shape_cast %99 : vector<2x1x32xf32> to vector<2x32xf32>
    %101 = arith.addf %100, %89 : vector<2x32xf32>
    %102 = arith.negf %101 : vector<2x32xf32>
    %103 = math.exp %102 : vector<2x32xf32>
    %cst_32 = arith.constant 1.000000e+00 : f32
    %104 = vector.broadcast %cst_32 : f32 to vector<2x32xf32>
    %105 = arith.addf %104, %103 : vector<2x32xf32>
    %106 = arith.divf %104, %105 : vector<2x32xf32>
    %107 = vector.extract_strided_slice %12 {offsets = [0, 2, 0], sizes = [2, 1, 32], strides = [1, 1, 1]} : vector<2x8x32xf32> to vector<2x1x32xf32>
    %108 = vector.shape_cast %107 : vector<2x1x32xf32> to vector<2x32xf32>
    %109 = arith.addf %90, %18 : vector<2x32xf32>
    %110 = arith.mulf %98, %109 : vector<2x32xf32>
    %111 = arith.addf %108, %110 : vector<2x32xf32>
    %112 = math.tanh %111 : vector<2x32xf32>
    %113 = arith.subf %82, %112 : vector<2x32xf32>
    %114 = arith.mulf %106, %113 : vector<2x32xf32>
    %115 = arith.addf %112, %114 : vector<2x32xf32>
    %c2_i32 = arith.constant 2 : i32
    %116 = vector.broadcast %c2_i32 : i32 to vector<2x1xi32>
    %117 = arith.cmpi eq, %19, %116 : vector<2x1xi32>
    %118 = vector.shape_cast %117 : vector<2x1xi1> to vector<2x1xi1>
    %119 = vector.broadcast %118 : vector<2x1xi1> to vector<2x32xi1>
    %120 = arith.select %119, %115, %87 : vector<2x32xi1>, vector<2x32xf32>
    %cst_33 = arith.constant dense<0.000000e+00> : vector<2x32xf32>
    %121 = tpu.matmul %115, %13, %cst_33 {dimension_numbers = #tpu.dot_dimension_numbers<[1], [0], [0], [1], [0, 0, 1, 1], [], []>} : vector<2x32xf32>, vector<32x32xf32>, vector<2x32xf32> -> vector<2x32xf32>
    %cst_34 = arith.constant dense<0.000000e+00> : vector<2x32xf32>
    %122 = tpu.matmul %115, %14, %cst_34 {dimension_numbers = #tpu.dot_dimension_numbers<[1], [0], [0], [1], [0, 0, 1, 1], [], []>} : vector<2x32xf32>, vector<32x32xf32>, vector<2x32xf32> -> vector<2x32xf32>
    %cst_35 = arith.constant dense<0.000000e+00> : vector<2x32xf32>
    %123 = tpu.matmul %115, %15, %cst_35 {dimension_numbers = #tpu.dot_dimension_numbers<[1], [0], [0], [1], [0, 0, 1, 1], [], []>} : vector<2x32xf32>, vector<32x32xf32>, vector<2x32xf32> -> vector<2x32xf32>
    %124 = vector.extract_strided_slice %8 {offsets = [0, 3, 0], sizes = [2, 1, 32], strides = [1, 1, 1]} : vector<2x8x32xf32> to vector<2x1x32xf32>
    %125 = vector.shape_cast %124 : vector<2x1x32xf32> to vector<2x32xf32>
    %126 = arith.addf %125, %121 : vector<2x32xf32>
    %127 = arith.negf %126 : vector<2x32xf32>
    %128 = math.exp %127 : vector<2x32xf32>
    %cst_36 = arith.constant 1.000000e+00 : f32
    %129 = vector.broadcast %cst_36 : f32 to vector<2x32xf32>
    %130 = arith.addf %129, %128 : vector<2x32xf32>
    %131 = arith.divf %129, %130 : vector<2x32xf32>
    %132 = vector.extract_strided_slice %10 {offsets = [0, 3, 0], sizes = [2, 1, 32], strides = [1, 1, 1]} : vector<2x8x32xf32> to vector<2x1x32xf32>
    %133 = vector.shape_cast %132 : vector<2x1x32xf32> to vector<2x32xf32>
    %134 = arith.addf %133, %122 : vector<2x32xf32>
    %135 = arith.negf %134 : vector<2x32xf32>
    %136 = math.exp %135 : vector<2x32xf32>
    %cst_37 = arith.constant 1.000000e+00 : f32
    %137 = vector.broadcast %cst_37 : f32 to vector<2x32xf32>
    %138 = arith.addf %137, %136 : vector<2x32xf32>
    %139 = arith.divf %137, %138 : vector<2x32xf32>
    %140 = vector.extract_strided_slice %12 {offsets = [0, 3, 0], sizes = [2, 1, 32], strides = [1, 1, 1]} : vector<2x8x32xf32> to vector<2x1x32xf32>
    %141 = vector.shape_cast %140 : vector<2x1x32xf32> to vector<2x32xf32>
    %142 = arith.addf %123, %18 : vector<2x32xf32>
    %143 = arith.mulf %131, %142 : vector<2x32xf32>
    %144 = arith.addf %141, %143 : vector<2x32xf32>
    %145 = math.tanh %144 : vector<2x32xf32>
    %146 = arith.subf %115, %145 : vector<2x32xf32>
    %147 = arith.mulf %139, %146 : vector<2x32xf32>
    %148 = arith.addf %145, %147 : vector<2x32xf32>
    %c3_i32 = arith.constant 3 : i32
    %149 = vector.broadcast %c3_i32 : i32 to vector<2x1xi32>
    %150 = arith.cmpi eq, %19, %149 : vector<2x1xi32>
    %151 = vector.shape_cast %150 : vector<2x1xi1> to vector<2x1xi1>
    %152 = vector.broadcast %151 : vector<2x1xi1> to vector<2x32xi1>
    %153 = arith.select %152, %148, %120 : vector<2x32xi1>, vector<2x32xf32>
    %cst_38 = arith.constant dense<0.000000e+00> : vector<2x32xf32>
    %154 = tpu.matmul %148, %13, %cst_38 {dimension_numbers = #tpu.dot_dimension_numbers<[1], [0], [0], [1], [0, 0, 1, 1], [], []>} : vector<2x32xf32>, vector<32x32xf32>, vector<2x32xf32> -> vector<2x32xf32>
    %cst_39 = arith.constant dense<0.000000e+00> : vector<2x32xf32>
    %155 = tpu.matmul %148, %14, %cst_39 {dimension_numbers = #tpu.dot_dimension_numbers<[1], [0], [0], [1], [0, 0, 1, 1], [], []>} : vector<2x32xf32>, vector<32x32xf32>, vector<2x32xf32> -> vector<2x32xf32>
    %cst_40 = arith.constant dense<0.000000e+00> : vector<2x32xf32>
    %156 = tpu.matmul %148, %15, %cst_40 {dimension_numbers = #tpu.dot_dimension_numbers<[1], [0], [0], [1], [0, 0, 1, 1], [], []>} : vector<2x32xf32>, vector<32x32xf32>, vector<2x32xf32> -> vector<2x32xf32>
    %157 = vector.extract_strided_slice %8 {offsets = [0, 4, 0], sizes = [2, 1, 32], strides = [1, 1, 1]} : vector<2x8x32xf32> to vector<2x1x32xf32>
    %158 = vector.shape_cast %157 : vector<2x1x32xf32> to vector<2x32xf32>
    %159 = arith.addf %158, %154 : vector<2x32xf32>
    %160 = arith.negf %159 : vector<2x32xf32>
    %161 = math.exp %160 : vector<2x32xf32>
    %cst_41 = arith.constant 1.000000e+00 : f32
    %162 = vector.broadcast %cst_41 : f32 to vector<2x32xf32>
    %163 = arith.addf %162, %161 : vector<2x32xf32>
    %164 = arith.divf %162, %163 : vector<2x32xf32>
    %165 = vector.extract_strided_slice %10 {offsets = [0, 4, 0], sizes = [2, 1, 32], strides = [1, 1, 1]} : vector<2x8x32xf32> to vector<2x1x32xf32>
    %166 = vector.shape_cast %165 : vector<2x1x32xf32> to vector<2x32xf32>
    %167 = arith.addf %166, %155 : vector<2x32xf32>
    %168 = arith.negf %167 : vector<2x32xf32>
    %169 = math.exp %168 : vector<2x32xf32>
    %cst_42 = arith.constant 1.000000e+00 : f32
    %170 = vector.broadcast %cst_42 : f32 to vector<2x32xf32>
    %171 = arith.addf %170, %169 : vector<2x32xf32>
    %172 = arith.divf %170, %171 : vector<2x32xf32>
    %173 = vector.extract_strided_slice %12 {offsets = [0, 4, 0], sizes = [2, 1, 32], strides = [1, 1, 1]} : vector<2x8x32xf32> to vector<2x1x32xf32>
    %174 = vector.shape_cast %173 : vector<2x1x32xf32> to vector<2x32xf32>
    %175 = arith.addf %156, %18 : vector<2x32xf32>
    %176 = arith.mulf %164, %175 : vector<2x32xf32>
    %177 = arith.addf %174, %176 : vector<2x32xf32>
    %178 = math.tanh %177 : vector<2x32xf32>
    %179 = arith.subf %148, %178 : vector<2x32xf32>
    %180 = arith.mulf %172, %179 : vector<2x32xf32>
    %181 = arith.addf %178, %180 : vector<2x32xf32>
    %c4_i32 = arith.constant 4 : i32
    %182 = vector.broadcast %c4_i32 : i32 to vector<2x1xi32>
    %183 = arith.cmpi eq, %19, %182 : vector<2x1xi32>
    %184 = vector.shape_cast %183 : vector<2x1xi1> to vector<2x1xi1>
    %185 = vector.broadcast %184 : vector<2x1xi1> to vector<2x32xi1>
    %186 = arith.select %185, %181, %153 : vector<2x32xi1>, vector<2x32xf32>
    %cst_43 = arith.constant dense<0.000000e+00> : vector<2x32xf32>
    %187 = tpu.matmul %181, %13, %cst_43 {dimension_numbers = #tpu.dot_dimension_numbers<[1], [0], [0], [1], [0, 0, 1, 1], [], []>} : vector<2x32xf32>, vector<32x32xf32>, vector<2x32xf32> -> vector<2x32xf32>
    %cst_44 = arith.constant dense<0.000000e+00> : vector<2x32xf32>
    %188 = tpu.matmul %181, %14, %cst_44 {dimension_numbers = #tpu.dot_dimension_numbers<[1], [0], [0], [1], [0, 0, 1, 1], [], []>} : vector<2x32xf32>, vector<32x32xf32>, vector<2x32xf32> -> vector<2x32xf32>
    %cst_45 = arith.constant dense<0.000000e+00> : vector<2x32xf32>
    %189 = tpu.matmul %181, %15, %cst_45 {dimension_numbers = #tpu.dot_dimension_numbers<[1], [0], [0], [1], [0, 0, 1, 1], [], []>} : vector<2x32xf32>, vector<32x32xf32>, vector<2x32xf32> -> vector<2x32xf32>
    %190 = vector.extract_strided_slice %8 {offsets = [0, 5, 0], sizes = [2, 1, 32], strides = [1, 1, 1]} : vector<2x8x32xf32> to vector<2x1x32xf32>
    %191 = vector.shape_cast %190 : vector<2x1x32xf32> to vector<2x32xf32>
    %192 = arith.addf %191, %187 : vector<2x32xf32>
    %193 = arith.negf %192 : vector<2x32xf32>
    %194 = math.exp %193 : vector<2x32xf32>
    %cst_46 = arith.constant 1.000000e+00 : f32
    %195 = vector.broadcast %cst_46 : f32 to vector<2x32xf32>
    %196 = arith.addf %195, %194 : vector<2x32xf32>
    %197 = arith.divf %195, %196 : vector<2x32xf32>
    %198 = vector.extract_strided_slice %10 {offsets = [0, 5, 0], sizes = [2, 1, 32], strides = [1, 1, 1]} : vector<2x8x32xf32> to vector<2x1x32xf32>
    %199 = vector.shape_cast %198 : vector<2x1x32xf32> to vector<2x32xf32>
    %200 = arith.addf %199, %188 : vector<2x32xf32>
    %201 = arith.negf %200 : vector<2x32xf32>
    %202 = math.exp %201 : vector<2x32xf32>
    %cst_47 = arith.constant 1.000000e+00 : f32
    %203 = vector.broadcast %cst_47 : f32 to vector<2x32xf32>
    %204 = arith.addf %203, %202 : vector<2x32xf32>
    %205 = arith.divf %203, %204 : vector<2x32xf32>
    %206 = vector.extract_strided_slice %12 {offsets = [0, 5, 0], sizes = [2, 1, 32], strides = [1, 1, 1]} : vector<2x8x32xf32> to vector<2x1x32xf32>
    %207 = vector.shape_cast %206 : vector<2x1x32xf32> to vector<2x32xf32>
    %208 = arith.addf %189, %18 : vector<2x32xf32>
    %209 = arith.mulf %197, %208 : vector<2x32xf32>
    %210 = arith.addf %207, %209 : vector<2x32xf32>
    %211 = math.tanh %210 : vector<2x32xf32>
    %212 = arith.subf %181, %211 : vector<2x32xf32>
    %213 = arith.mulf %205, %212 : vector<2x32xf32>
    %214 = arith.addf %211, %213 : vector<2x32xf32>
    %c5_i32 = arith.constant 5 : i32
    %215 = vector.broadcast %c5_i32 : i32 to vector<2x1xi32>
    %216 = arith.cmpi eq, %19, %215 : vector<2x1xi32>
    %217 = vector.shape_cast %216 : vector<2x1xi1> to vector<2x1xi1>
    %218 = vector.broadcast %217 : vector<2x1xi1> to vector<2x32xi1>
    %219 = arith.select %218, %214, %186 : vector<2x32xi1>, vector<2x32xf32>
    %cst_48 = arith.constant dense<0.000000e+00> : vector<2x32xf32>
    %220 = tpu.matmul %214, %13, %cst_48 {dimension_numbers = #tpu.dot_dimension_numbers<[1], [0], [0], [1], [0, 0, 1, 1], [], []>} : vector<2x32xf32>, vector<32x32xf32>, vector<2x32xf32> -> vector<2x32xf32>
    %cst_49 = arith.constant dense<0.000000e+00> : vector<2x32xf32>
    %221 = tpu.matmul %214, %14, %cst_49 {dimension_numbers = #tpu.dot_dimension_numbers<[1], [0], [0], [1], [0, 0, 1, 1], [], []>} : vector<2x32xf32>, vector<32x32xf32>, vector<2x32xf32> -> vector<2x32xf32>
    %cst_50 = arith.constant dense<0.000000e+00> : vector<2x32xf32>
    %222 = tpu.matmul %214, %15, %cst_50 {dimension_numbers = #tpu.dot_dimension_numbers<[1], [0], [0], [1], [0, 0, 1, 1], [], []>} : vector<2x32xf32>, vector<32x32xf32>, vector<2x32xf32> -> vector<2x32xf32>
    %223 = vector.extract_strided_slice %8 {offsets = [0, 6, 0], sizes = [2, 1, 32], strides = [1, 1, 1]} : vector<2x8x32xf32> to vector<2x1x32xf32>
    %224 = vector.shape_cast %223 : vector<2x1x32xf32> to vector<2x32xf32>
    %225 = arith.addf %224, %220 : vector<2x32xf32>
    %226 = arith.negf %225 : vector<2x32xf32>
    %227 = math.exp %226 : vector<2x32xf32>
    %cst_51 = arith.constant 1.000000e+00 : f32
    %228 = vector.broadcast %cst_51 : f32 to vector<2x32xf32>
    %229 = arith.addf %228, %227 : vector<2x32xf32>
    %230 = arith.divf %228, %229 : vector<2x32xf32>
    %231 = vector.extract_strided_slice %10 {offsets = [0, 6, 0], sizes = [2, 1, 32], strides = [1, 1, 1]} : vector<2x8x32xf32> to vector<2x1x32xf32>
    %232 = vector.shape_cast %231 : vector<2x1x32xf32> to vector<2x32xf32>
    %233 = arith.addf %232, %221 : vector<2x32xf32>
    %234 = arith.negf %233 : vector<2x32xf32>
    %235 = math.exp %234 : vector<2x32xf32>
    %cst_52 = arith.constant 1.000000e+00 : f32
    %236 = vector.broadcast %cst_52 : f32 to vector<2x32xf32>
    %237 = arith.addf %236, %235 : vector<2x32xf32>
    %238 = arith.divf %236, %237 : vector<2x32xf32>
    %239 = vector.extract_strided_slice %12 {offsets = [0, 6, 0], sizes = [2, 1, 32], strides = [1, 1, 1]} : vector<2x8x32xf32> to vector<2x1x32xf32>
    %240 = vector.shape_cast %239 : vector<2x1x32xf32> to vector<2x32xf32>
    %241 = arith.addf %222, %18 : vector<2x32xf32>
    %242 = arith.mulf %230, %241 : vector<2x32xf32>
    %243 = arith.addf %240, %242 : vector<2x32xf32>
    %244 = math.tanh %243 : vector<2x32xf32>
    %245 = arith.subf %214, %244 : vector<2x32xf32>
    %246 = arith.mulf %238, %245 : vector<2x32xf32>
    %247 = arith.addf %244, %246 : vector<2x32xf32>
    %c6_i32 = arith.constant 6 : i32
    %248 = vector.broadcast %c6_i32 : i32 to vector<2x1xi32>
    %249 = arith.cmpi eq, %19, %248 : vector<2x1xi32>
    %250 = vector.shape_cast %249 : vector<2x1xi1> to vector<2x1xi1>
    %251 = vector.broadcast %250 : vector<2x1xi1> to vector<2x32xi1>
    %252 = arith.select %251, %247, %219 : vector<2x32xi1>, vector<2x32xf32>
    %cst_53 = arith.constant dense<0.000000e+00> : vector<2x32xf32>
    %253 = tpu.matmul %247, %13, %cst_53 {dimension_numbers = #tpu.dot_dimension_numbers<[1], [0], [0], [1], [0, 0, 1, 1], [], []>} : vector<2x32xf32>, vector<32x32xf32>, vector<2x32xf32> -> vector<2x32xf32>
    %cst_54 = arith.constant dense<0.000000e+00> : vector<2x32xf32>
    %254 = tpu.matmul %247, %14, %cst_54 {dimension_numbers = #tpu.dot_dimension_numbers<[1], [0], [0], [1], [0, 0, 1, 1], [], []>} : vector<2x32xf32>, vector<32x32xf32>, vector<2x32xf32> -> vector<2x32xf32>
    %cst_55 = arith.constant dense<0.000000e+00> : vector<2x32xf32>
    %255 = tpu.matmul %247, %15, %cst_55 {dimension_numbers = #tpu.dot_dimension_numbers<[1], [0], [0], [1], [0, 0, 1, 1], [], []>} : vector<2x32xf32>, vector<32x32xf32>, vector<2x32xf32> -> vector<2x32xf32>
    %256 = vector.extract_strided_slice %8 {offsets = [0, 7, 0], sizes = [2, 1, 32], strides = [1, 1, 1]} : vector<2x8x32xf32> to vector<2x1x32xf32>
    %257 = vector.shape_cast %256 : vector<2x1x32xf32> to vector<2x32xf32>
    %258 = arith.addf %257, %253 : vector<2x32xf32>
    %259 = arith.negf %258 : vector<2x32xf32>
    %260 = math.exp %259 : vector<2x32xf32>
    %cst_56 = arith.constant 1.000000e+00 : f32
    %261 = vector.broadcast %cst_56 : f32 to vector<2x32xf32>
    %262 = arith.addf %261, %260 : vector<2x32xf32>
    %263 = arith.divf %261, %262 : vector<2x32xf32>
    %264 = vector.extract_strided_slice %10 {offsets = [0, 7, 0], sizes = [2, 1, 32], strides = [1, 1, 1]} : vector<2x8x32xf32> to vector<2x1x32xf32>
    %265 = vector.shape_cast %264 : vector<2x1x32xf32> to vector<2x32xf32>
    %266 = arith.addf %265, %254 : vector<2x32xf32>
    %267 = arith.negf %266 : vector<2x32xf32>
    %268 = math.exp %267 : vector<2x32xf32>
    %cst_57 = arith.constant 1.000000e+00 : f32
    %269 = vector.broadcast %cst_57 : f32 to vector<2x32xf32>
    %270 = arith.addf %269, %268 : vector<2x32xf32>
    %271 = arith.divf %269, %270 : vector<2x32xf32>
    %272 = vector.extract_strided_slice %12 {offsets = [0, 7, 0], sizes = [2, 1, 32], strides = [1, 1, 1]} : vector<2x8x32xf32> to vector<2x1x32xf32>
    %273 = vector.shape_cast %272 : vector<2x1x32xf32> to vector<2x32xf32>
    %274 = arith.addf %255, %18 : vector<2x32xf32>
    %275 = arith.mulf %263, %274 : vector<2x32xf32>
    %276 = arith.addf %273, %275 : vector<2x32xf32>
    %277 = math.tanh %276 : vector<2x32xf32>
    %278 = arith.subf %247, %277 : vector<2x32xf32>
    %279 = arith.mulf %271, %278 : vector<2x32xf32>
    %280 = arith.addf %277, %279 : vector<2x32xf32>
    %c7_i32 = arith.constant 7 : i32
    %281 = vector.broadcast %c7_i32 : i32 to vector<2x1xi32>
    %282 = arith.cmpi eq, %19, %281 : vector<2x1xi32>
    %283 = vector.shape_cast %282 : vector<2x1xi1> to vector<2x1xi1>
    %284 = vector.broadcast %283 : vector<2x1xi1> to vector<2x32xi1>
    %285 = arith.select %284, %280, %252 : vector<2x32xi1>, vector<2x32xf32>
    %c0_58 = arith.constant 0 : index
    %c0_59 = arith.constant 0 : index
    %286 = vector.load %arg8[%c0_58, %c0_59] : memref<32x32xf32, #tpu.memory_space<vmem>>, vector<32x32xf32>
    %cst_60 = arith.constant dense<0.000000e+00> : vector<2x32xf32>
    %287 = tpu.matmul %285, %286, %cst_60 {dimension_numbers = #tpu.dot_dimension_numbers<[1], [0], [0], [1], [0, 0, 1, 1], [], []>} : vector<2x32xf32>, vector<32x32xf32>, vector<2x32xf32> -> vector<2x32xf32>
    %c0_61 = arith.constant 0 : index
    %c0_62 = arith.constant 0 : index
    %288 = vector.load %arg9[%c0_61, %c0_62] : memref<1x32xf32, #tpu.memory_space<vmem>>, vector<1x32xf32>
    %289 = vector.broadcast %288 : vector<1x32xf32> to vector<2x32xf32>
    %290 = arith.addf %287, %289 : vector<2x32xf32>
    %cst_63 = arith.constant 0.000000e+00 : f32
    %291 = vector.broadcast %cst_63 : f32 to vector<2x32xf32>
    %292 = arith.maximumf %290, %291 : vector<2x32xf32>
    %c0_64 = arith.constant 0 : index
    %c0_65 = arith.constant 0 : index
    %293 = vector.load %arg10[%c0_64, %c0_65] : memref<32x4xf32, #tpu.memory_space<vmem>>, vector<32x4xf32>
    %cst_66 = arith.constant dense<0.000000e+00> : vector<2x4xf32>
    %294 = tpu.matmul %292, %293, %cst_66 {dimension_numbers = #tpu.dot_dimension_numbers<[1], [0], [0], [1], [0, 0, 1, 1], [], []>} : vector<2x32xf32>, vector<32x4xf32>, vector<2x4xf32> -> vector<2x4xf32>
    %c0_67 = arith.constant 0 : index
    %c0_68 = arith.constant 0 : index
    %295 = vector.load %arg11[%c0_67, %c0_68] : memref<1x4xf32, #tpu.memory_space<vmem>>, vector<1x4xf32>
    %296 = vector.broadcast %295 : vector<1x4xf32> to vector<2x4xf32>
    %297 = arith.addf %294, %296 : vector<2x4xf32>
    %298 = math.tanh %297 : vector<2x4xf32>
    %c0_69 = arith.constant 0 : index
    %c0_70 = arith.constant 0 : index
    %299 = vector.load %arg12[%c0_69, %c0_70] : memref<2x4xf32, #tpu.memory_space<vmem>>, vector<2x4xf32>
    tpu.vector_store %arg12[%c0_69, %c0_70], %298 {strides = array<i32>} : memref<2x4xf32, #tpu.memory_space<vmem>>, vector<2x4xf32>,
    return
  }
}

</mosaic_0001>

<llo_original>
// kernel: actor_forward.1
$region0: #{actor_forward.1}
  #allocation0 [shape = 'u32[]', space=smem, size = 0x4, offset = 0x4, fixed_abs, tag = 'smem constant byte address 0x4 - core index']
  #allocation1 [shape = 'u32[144,128]{1,0:T(1,128)}', space=vmem, size = 0x12000, scoped, tag = 'internal scratch']
  %s0 = inlined_call_operand.vmem [shape: f32[2,8,4], index: 0, kind: input, shape index: {}]
  %s1 = inlined_call_operand.vmem [shape: s32[2,1], index: 1, kind: input, shape index: {}]
  %s2 = inlined_call_operand.vmem [shape: f32[4,96], index: 2, kind: input, shape index: {}]
  %s3 = inlined_call_operand.vmem [shape: f32[1,96], index: 3, kind: input, shape index: {}]
  %s4 = inlined_call_operand.vmem [shape: f32[32,32], index: 4, kind: input, shape index: {}]
  %s5 = inlined_call_operand.vmem [shape: f32[32,32], index: 5, kind: input, shape index: {}]
  %s6 = inlined_call_operand.vmem [shape: f32[32,32], index: 6, kind: input, shape index: {}]
  %s7 = inlined_call_operand.vmem [shape: f32[1,32], index: 7, kind: input, shape index: {}]
  %s8 = inlined_call_operand.vmem [shape: f32[32,32], index: 8, kind: input, shape index: {}]
  %s9 = inlined_call_operand.vmem [shape: f32[1,32], index: 9, kind: input, shape index: {}]
  %s10 = inlined_call_operand.vmem [shape: f32[32,4], index: 10, kind: input, shape index: {}]
  %s11 = inlined_call_operand.vmem [shape: f32[1,4], index: 11, kind: input, shape index: {}]
  %s12 = inlined_call_operand.hbm [shape: f32[2,4], index: 12, kind: output, shape index: {}]
  %s13 = sld [smem:[#allocation0]]
  $region58: #{actor_forward.1} parent=0
    _
  %s15 = ssub.s32 1, %s13
  %s16 = scalar_select 0, %s15, %s13
  $region1: #{actor_forward.1} parent=0
    #allocation2 [shape = 'u8[1024]{0}', space=vmem, size = 0x400, scoped, tag = 'output window, operand 0, single buffered']
    #allocation3 [shape = 's32[1]{0}', space=sflag, size = 0x4, scoped, tag = 'scoped memory for actor_forward.1']
    %17 = vsyncpa [#allocation3], 0
    // Predicated region
    $region2: #{actor_forward.1} parent=1 // pred_check
      _
    $region3: #{actor_forward.1} parent=1 // pred_check_branch
      %19 = sbr.rel (0) target = $region5
    $region4: #{actor_forward.1} parent=1 // pred_region
      _
    $region5: #{actor_forward.1} parent=1 // pred_fallthru
      _
    // Predicated region
    $region6: #{actor_forward.1} parent=1 // pred_check
      _
    $region7: #{actor_forward.1} parent=1 // pred_check_branch
      %21 = sbr.rel (0) target = $region9
    $region8: #{actor_forward.1} parent=1 // pred_region
      _
    $region9: #{actor_forward.1} parent=1 // pred_fallthru
      _
    // Predicated region
    $region10: #{actor_forward.1} parent=1 // pred_check
      _
    $region11: #{actor_forward.1} parent=1 // pred_check_branch
      %23 = sbr.rel (0) target = $region13
    $region12: #{actor_forward.1} parent=1 // pred_region
      _
    $region13: #{actor_forward.1} parent=1 // pred_fallthru
      _
    // Predicated region
    $region14: #{actor_forward.1} parent=1 // pred_check
      _
    $region15: #{actor_forward.1} parent=1 // pred_check_branch
      %25 = sbr.rel (0) target = $region17
    $region16: #{actor_forward.1} parent=1 // pred_region
      _
    $region17: #{actor_forward.1} parent=1 // pred_fallthru
      _
    // Predicated region
    $region18: #{actor_forward.1} parent=1 // pred_check
      _
    $region19: #{actor_forward.1} parent=1 // pred_check_branch
      %27 = sbr.rel (0) target = $region21
    $region20: #{actor_forward.1} parent=1 // pred_region
      _
    $region21: #{actor_forward.1} parent=1 // pred_fallthru
      _
    // Predicated region
    $region22: #{actor_forward.1} parent=1 // pred_check
      _
    $region23: #{actor_forward.1} parent=1 // pred_check_branch
      %29 = sbr.rel (0) target = $region25
    $region24: #{actor_forward.1} parent=1 // pred_region
      _
    $region25: #{actor_forward.1} parent=1 // pred_fallthru
      _
    // Predicated region
    $region26: #{actor_forward.1} parent=1 // pred_check
      _
    $region27: #{actor_forward.1} parent=1 // pred_check_branch
      %31 = sbr.rel (0) target = $region29
    $region28: #{actor_forward.1} parent=1 // pred_region
      _
    $region29: #{actor_forward.1} parent=1 // pred_fallthru
      _
    // Predicated region
    $region30: #{actor_forward.1} parent=1 // pred_check
      _
    $region31: #{actor_forward.1} parent=1 // pred_check_branch
      %33 = sbr.rel (0) target = $region33
    $region32: #{actor_forward.1} parent=1 // pred_region
      _
    $region33: #{actor_forward.1} parent=1 // pred_fallthru
      _
    // Predicated region
    $region34: #{actor_forward.1} parent=1 // pred_check
      _
    $region35: #{actor_forward.1} parent=1 // pred_check_branch
      %35 = sbr.rel (0) target = $region37
    $region36: #{actor_forward.1} parent=1 // pred_region
      _
    $region37: #{actor_forward.1} parent=1 // pred_fallthru
      _
    // Predicated region
    $region38: #{actor_forward.1} parent=1 // pred_check
      _
    $region39: #{actor_forward.1} parent=1 // pred_check_branch
      %37 = sbr.rel (0) target = $region41
    $region40: #{actor_forward.1} parent=1 // pred_region
      _
    $region41: #{actor_forward.1} parent=1 // pred_fallthru
      _
    // Predicated region
    $region42: #{actor_forward.1} parent=1 // pred_check
      _
    $region43: #{actor_forward.1} parent=1 // pred_check_branch
      %39 = sbr.rel (0) target = $region45
    $region44: #{actor_forward.1} parent=1 // pred_region
      _
    $region45: #{actor_forward.1} parent=1 // pred_fallthru
      _
    // Predicated region
    $region46: #{actor_forward.1} parent=1 // pred_check
      _
    $region47: #{actor_forward.1} parent=1 // pred_check_branch
      %41 = sbr.rel (0) target = $region49
    $region48: #{actor_forward.1} parent=1 // pred_region
      _
    $region49: #{actor_forward.1} parent=1 // pred_fallthru
      _
    %v42 = vld [vmem:[%s0] sm:$0xff]
    %v43 = vld [vmem:[%s0 + $0x8] sm:$0xff]
    %v44 = vld [vmem:[%s2] sm:$0xf]
    %v45 = vld [vmem:[%s3] sm:$0x1]
    %v47 = vlaneseq
    %v48 = vshrl.u32 %v47, 7
    %v49 = vsub.s32 0, %v48
    %v50 = vrot.slane %v45, %v49
    %vm52 = vcmask 31744
    %v54 = vsel %vm52, %v42, 0
    %v57 = vsel %vm52, %v43, 0
    %vm59 = vcmask 1043456
    %v61 = vsel %vm59, %v44, 0
    %63 = vmatprep.subr.mxu0 0.0
    %64 = vmatpush1.msra.mxu0 %v61
    %65 = vmatprep.subr.mxu0 0.0
    %66 = vmatpush1.msra.mxu0 0.0
    %67 = vmatprep.subr.mxu0 0.0
    %68 = vmatpush1.msra.mxu0 0.0
    %69 = vmatprep.subr.mxu0 0.0
    %70 = vmatpush1.msra.mxu0 0.0
    %71 = vmatprep.subr.mxu0 0.0
    %72 = vmatpush1.msra.mxu0 0.0
    %73 = vmatprep.subr.mxu0 0.0
    %74 = vmatpush1.msra.mxu0 0.0
    %75 = vmatprep.subr.mxu0 0.0
    %76 = vmatpush1.msra.mxu0 0.0
    %77 = vmatprep.subr.mxu0 0.0
    %78 = vmatpush1.msra.mxu0 0.0
    %79 = vmatprep.subr.mxu0 0.0
    %80 = vmatpush1.msra.mxu0 0.0
    %81 = vmatprep.subr.mxu0 0.0
    %82 = vmatpush1.msra.mxu0 0.0
    %83 = vmatprep.subr.mxu0 0.0
    %84 = vmatpush1.msra.mxu0 0.0
    %85 = vmatprep.subr.mxu0 0.0
    %86 = vmatpush1.msra.mxu0 0.0
    %87 = vmatprep.subr.mxu0 0.0
    %88 = vmatpush1.msra.mxu0 0.0
    %89 = vmatprep.subr.mxu0 0.0
    %90 = vmatpush1.msra.mxu0 0.0
    %91 = vmatprep.subr.mxu0 0.0
    %92 = vmatpush1.msra.mxu0 0.0
    %93 = vmatprep.subr.mxu0 0.0
    %94 = vmatpush1.msra.mxu0 0.0
    %95 = vmatprep.subr.mxu0 0.0
    %96 = vmatpush1.msra.mxu0 0.0
    %97 = vmatprep.subr.mxu0 0.0
    %98 = vmatpush1.msra.mxu0 0.0
    %99 = vmatprep.subr.mxu0 0.0
    %100 = vmatpush1.msra.mxu0 0.0
    %101 = vmatprep.subr.mxu0 0.0
    %102 = vmatpush1.msra.mxu0 0.0
    %103 = vmatprep.subr.mxu0 0.0
    %104 = vmatpush1.msra.mxu0 0.0
    %105 = vmatprep.subr.mxu0 0.0
    %106 = vmatpush1.msra.mxu0 0.0
    %107 = vmatprep.subr.mxu0 0.0
    %108 = vmatpush1.msra.mxu0 0.0
    %109 = vmatprep.subr.mxu0 0.0
    %110 = vmatpush1.msra.mxu0 0.0
    %111 = vmatprep.subr.mxu0 0.0
    %112 = vmatpush1.msra.mxu0 0.0
    %113 = vmatprep.subr.mxu0 0.0
    %114 = vmatpush1.msra.mxu0 0.0
    %115 = vmatprep.subr.mxu0 0.0
    %116 = vmatpush1.msra.mxu0 0.0
    %117 = vmatprep.subr.mxu0 0.0
    %118 = vmatpush1.msra.mxu0 0.0
    %119 = vmatprep.subr.mxu0 0.0
    %120 = vmatpush1.msra.mxu0 0.0
    %121 = vmatprep.subr.mxu0 0.0
    %122 = vmatpush1.msra.mxu0 0.0
    %123 = vmatprep.subr.mxu0 0.0
    %124 = vmatpush1.msra.mxu0 0.0
    %125 = vmatprep.subr.mxu0 0.0
    %126 = vmatpush1.msra.mxu0 0.0
    %127 = vmatprep.mubr.f32.mxu0 0.0
    %128 = vmatmul.mubr.f32.gmra.mrb[0].mxu0 %v54
    %v129 = vpop.f32.mrb[0].mxu0
    %v130 = vadd.f32 %v50, %v129
    %v131 = vpop.f32.mrb[0].mxu0
    %132 = vmatprep.mubr.f32.mxu0 0.0
    %133 = vmatmul.mubr.f32.gmra.mrb[0].mxu0 %v57
    %v134 = vpop.f32.mrb[0].mxu0
    %v135 = vadd.f32 %v50, %v134
    %v136 = vpop.f32.mrb[0].mxu0
    %137 = vdwg.mxu0
    %v138 = vld [vmem:[%s4] sm:$0xff]
    %v139 = vld [vmem:[%s4 + $0x8] sm:$0xff]
    %v140 = vld [vmem:[%s4 + $0x10] sm:$0xff]
    %v141 = vld [vmem:[%s4 + $0x18] sm:$0xff]
    %v142 = vld [vmem:[%s5] sm:$0xff]
    %v143 = vld [vmem:[%s5 + $0x8] sm:$0xff]
    %v144 = vld [vmem:[%s5 + $0x10] sm:$0xff]
    %v145 = vld [vmem:[%s5 + $0x18] sm:$0xff]
    %v146 = vld [vmem:[%s6] sm:$0xff]
    %v147 = vld [vmem:[%s6 + $0x8] sm:$0xff]
    %v148 = vld [vmem:[%s6 + $0x10] sm:$0xff]
    %v149 = vld [vmem:[%s6 + $0x18] sm:$0xff]
    %v150 = vld [vmem:[%s7] sm:$0x1]
    %v152 = vlaneseq
    %v153 = vshrl.u32 %v152, 7
    %v154 = vsub.s32 0, %v153
    %v155 = vrot.slane %v150, %v154
    %v157 = vld [vmem:[%s1] sm:$0x3]
    %vm158 = vcmask 261120
    %v160 = vsel %vm158, 0.0, 0
    %162 = vmatprep.subr.mxu0 0.0
    %163 = vmatpush1.msra.mxu0 %v138
    %164 = vmatprep.subr.mxu0 0.0
    %165 = vmatpush1.msra.mxu0 %v139
    %166 = vmatprep.subr.mxu0 0.0
    %167 = vmatpush1.msra.mxu0 %v140
    %168 = vmatprep.subr.mxu0 0.0
    %169 = vmatpush1.msra.mxu0 %v141
    %170 = vmatprep.subr.mxu0 0.0
    %171 = vmatpush1.msra.mxu0 0.0
    %172 = vmatprep.subr.mxu0 0.0
    %173 = vmatpush1.msra.mxu0 0.0
    %174 = vmatprep.subr.mxu0 0.0
    %175 = vmatpush1.msra.mxu0 0.0
    %176 = vmatprep.subr.mxu0 0.0
    %177 = vmatpush1.msra.mxu0 0.0
    %178 = vmatprep.subr.mxu0 0.0
    %179 = vmatpush1.msra.mxu0 0.0
    %180 = vmatprep.subr.mxu0 0.0
    %181 = vmatpush1.msra.mxu0 0.0
    %182 = vmatprep.subr.mxu0 0.0
    %183 = vmatpush1.msra.mxu0 0.0
    %184 = vmatprep.subr.mxu0 0.0
    %185 = vmatpush1.msra.mxu0 0.0
    %186 = vmatprep.subr.mxu0 0.0
    %187 = vmatpush1.msra.mxu0 0.0
    %188 = vmatprep.subr.mxu0 0.0
    %189 = vmatpush1.msra.mxu0 0.0
    %190 = vmatprep.subr.mxu0 0.0
    %191 = vmatpush1.msra.mxu0 0.0
    %192 = vmatprep.subr.mxu0 0.0
    %193 = vmatpush1.msra.mxu0 0.0
    %194 = vmatprep.subr.mxu0 0.0
    %195 = vmatpush1.msra.mxu0 0.0
    %196 = vmatprep.subr.mxu0 0.0
    %197 = vmatpush1.msra.mxu0 0.0
    %198 = vmatprep.subr.mxu0 0.0
    %199 = vmatpush1.msra.mxu0 0.0
    %200 = vmatprep.subr.mxu0 0.0
    %201 = vmatpush1.msra.mxu0 0.0
    %202 = vmatprep.subr.mxu0 0.0
    %203 = vmatpush1.msra.mxu0 0.0
    %204 = vmatprep.subr.mxu0 0.0
    %205 = vmatpush1.msra.mxu0 0.0
    %206 = vmatprep.subr.mxu0 0.0
    %207 = vmatpush1.msra.mxu0 0.0
    %208 = vmatprep.subr.mxu0 0.0
    %209 = vmatpush1.msra.mxu0 0.0
    %210 = vmatprep.subr.mxu0 0.0
    %211 = vmatpush1.msra.mxu0 0.0
    %212 = vmatprep.subr.mxu0 0.0
    %213 = vmatpush1.msra.mxu0 0.0
    %214 = vmatprep.subr.mxu0 0.0
    %215 = vmatpush1.msra.mxu0 0.0
    %216 = vmatprep.subr.mxu0 0.0
    %217 = vmatpush1.msra.mxu0 0.0
    %218 = vmatprep.subr.mxu0 0.0
    %219 = vmatpush1.msra.mxu0 0.0
    %220 = vmatprep.subr.mxu0 0.0
    %221 = vmatpush1.msra.mxu0 0.0
    %222 = vmatprep.subr.mxu0 0.0
    %223 = vmatpush1.msra.mxu0 0.0
    %224 = vmatprep.subr.mxu0 0.0
    %225 = vmatpush1.msra.mxu0 0.0
    %226 = vmatprep.mubr.f32.mxu0 0.0
    %227 = vmatmul.mubr.f32.gmra.mrb[0].mxu0 %v160
    %v228 = vpop.f32.mrb[0].mxu0
    %v229 = vadd.f32 0.0, %v228
    %v230 = vpop.f32.mrb[0].mxu0
    %231 = vdwg.mxu0
    %232 = vmatprep.subr.mxu0 0.0
    %233 = vmatpush1.msra.mxu0 %v142
    %234 = vmatprep.subr.mxu0 0.0
    %235 = vmatpush1.msra.mxu0 %v143
    %236 = vmatprep.subr.mxu0 0.0
    %237 = vmatpush1.msra.mxu0 %v144
    %238 = vmatprep.subr.mxu0 0.0
    %239 = vmatpush1.msra.mxu0 %v145
    %240 = vmatprep.subr.mxu0 0.0
    %241 = vmatpush1.msra.mxu0 0.0
    %242 = vmatprep.subr.mxu0 0.0
    %243 = vmatpush1.msra.mxu0 0.0
    %244 = vmatprep.subr.mxu0 0.0
    %245 = vmatpush1.msra.mxu0 0.0
    %246 = vmatprep.subr.mxu0 0.0
    %247 = vmatpush1.msra.mxu0 0.0
    %248 = vmatprep.subr.mxu0 0.0
    %249 = vmatpush1.msra.mxu0 0.0
    %250 = vmatprep.subr.mxu0 0.0
    %251 = vmatpush1.msra.mxu0 0.0
    %252 = vmatprep.subr.mxu0 0.0
    %253 = vmatpush1.msra.mxu0 0.0
    %254 = vmatprep.subr.mxu0 0.0
    %255 = vmatpush1.msra.mxu0 0.0
    %256 = vmatprep.subr.mxu0 0.0
    %257 = vmatpush1.msra.mxu0 0.0
    %258 = vmatprep.subr.mxu0 0.0
    %259 = vmatpush1.msra.mxu0 0.0
    %260 = vmatprep.subr.mxu0 0.0
    %261 = vmatpush1.msra.mxu0 0.0
    %262 = vmatprep.subr.mxu0 0.0
    %263 = vmatpush1.msra.mxu0 0.0
    %264 = vmatprep.subr.mxu0 0.0
    %265 = vmatpush1.msra.mxu0 0.0
    %266 = vmatprep.subr.mxu0 0.0
    %267 = vmatpush1.msra.mxu0 0.0
    %268 = vmatprep.subr.mxu0 0.0
    %269 = vmatpush1.msra.mxu0 0.0
    %270 = vmatprep.subr.mxu0 0.0
    %271 = vmatpush1.msra.mxu0 0.0
    %272 = vmatprep.subr.mxu0 0.0
    %273 = vmatpush1.msra.mxu0 0.0
    %274 = vmatprep.subr.mxu0 0.0
    %275 = vmatpush1.msra.mxu0 0.0
    %276 = vmatprep.subr.mxu0 0.0
    %277 = vmatpush1.msra.mxu0 0.0
    %278 = vmatprep.subr.mxu0 0.0
    %279 = vmatpush1.msra.mxu0 0.0
    %280 = vmatprep.subr.mxu0 0.0
    %281 = vmatpush1.msra.mxu0 0.0
    %282 = vmatprep.subr.mxu0 0.0
    %283 = vmatpush1.msra.mxu0 0.0
    %284 = vmatprep.subr.mxu0 0.0
    %285 = vmatpush1.msra.mxu0 0.0
    %286 = vmatprep.subr.mxu0 0.0
    %287 = vmatpush1.msra.mxu0 0.0
    %288 = vmatprep.subr.mxu0 0.0
    %289 = vmatpush1.msra.mxu0 0.0
    %290 = vmatprep.subr.mxu0 0.0
    %291 = vmatpush1.msra.mxu0 0.0
    %292 = vmatprep.subr.mxu0 0.0
    %293 = vmatpush1.msra.mxu0 0.0
    %294 = vmatprep.subr.mxu0 0.0
    %295 = vmatpush1.msra.mxu0 0.0
    %296 = vmatprep.mubr.f32.mxu0 0.0
    %297 = vmatmul.mubr.f32.gmra.mrb[0].mxu0 %v160
    %v298 = vpop.f32.mrb[0].mxu0
    %v299 = vadd.f32 0.0, %v298
    %v300 = vpop.f32.mrb[0].mxu0
    %301 = vdwg.mxu0
    %v303 = vrot.slane %v229, 1
    %v306 = vadd.f32 %v130, %v229
    %v307 = vadd.f32 %v135, %v303
    %v308 = vxor.u32 %v306, 2147483648
    %v309 = vxor.u32 %v307, 2147483648
    %v310 = vmul.f32 %v308, 1.442695
    %v311 = vpow.pop %v310
    %v312 = vmul.f32 %v309, 1.442695
    %v313 = vpow.pop %v312
    %v314 = vadd.f32 %v311, 1.0
    %v315 = vadd.f32 %v313, 1.0
    %v316 = vrcp.pop %v314
    %v317 = vmul.f32 1.0, %v316
    %v318 = vrcp.pop %v315
    %v319 = vmul.f32 1.0, %v318
    %v321 = vrot.slane %v299, 1
    %322 = vrot.lane.b32.xlu0 %v299, 32
    %v323 = vpop.permute.xlu0 %322
    %324 = vrot.lane.b32.xlu0 %v321, 32
    %v325 = vpop.permute.xlu0 %324
    %v328 = vadd.f32 %v130, %v323
    %v329 = vadd.f32 %v135, %v325
    %v330 = vxor.u32 %v328, 2147483648
    %v331 = vxor.u32 %v329, 2147483648
    %v332 = vmul.f32 %v330, 1.442695
    %v333 = vpow.pop %v332
    %v334 = vmul.f32 %v331, 1.442695
    %v335 = vpow.pop %v334
    %v336 = vadd.f32 %v333, 1.0
    %v337 = vadd.f32 %v335, 1.0
    %v338 = vrcp.pop %v336
    %v339 = vmul.f32 1.0, %v338
    %v340 = vrcp.pop %v337
    %v341 = vmul.f32 1.0, %v340
    %342 = vmatprep.subr.mxu0 0.0
    %343 = vmatpush1.msra.mxu0 %v146
    %344 = vmatprep.subr.mxu0 0.0
    %345 = vmatpush1.msra.mxu0 %v147
    %346 = vmatprep.subr.mxu0 0.0
    %347 = vmatpush1.msra.mxu0 %v148
    %348 = vmatprep.subr.mxu0 0.0
    %349 = vmatpush1.msra.mxu0 %v149
    %350 = vmatprep.subr.mxu0 0.0
    %351 = vmatpush1.msra.mxu0 0.0
    %352 = vmatprep.subr.mxu0 0.0
    %353 = vmatpush1.msra.mxu0 0.0
    %354 = vmatprep.subr.mxu0 0.0
    %355 = vmatpush1.msra.mxu0 0.0
    %356 = vmatprep.subr.mxu0 0.0
    %357 = vmatpush1.msra.mxu0 0.0
    %358 = vmatprep.subr.mxu0 0.0
    %359 = vmatpush1.msra.mxu0 0.0
    %360 = vmatprep.subr.mxu0 0.0
    %361 = vmatpush1.msra.mxu0 0.0
    %362 = vmatprep.subr.mxu0 0.0
    %363 = vmatpush1.msra.mxu0 0.0
    %364 = vmatprep.subr.mxu0 0.0
    %365 = vmatpush1.msra.mxu0 0.0
    %366 = vmatprep.subr.mxu0 0.0
    %367 = vmatpush1.msra.mxu0 0.0
    %368 = vmatprep.subr.mxu0 0.0
    %369 = vmatpush1.msra.mxu0 0.0
    %370 = vmatprep.subr.mxu0 0.0
    %371 = vmatpush1.msra.mxu0 0.0
    %372 = vmatprep.subr.mxu0 0.0
    %373 = vmatpush1.msra.mxu0 0.0
    %374 = vmatprep.subr.mxu0 0.0
    %375 = vmatpush1.msra.mxu0 0.0
    %376 = vmatprep.subr.mxu0 0.0
    %377 = vmatpush1.msra.mxu0 0.0
    %378 = vmatprep.subr.mxu0 0.0
    %379 = vmatpush1.msra.mxu0 0.0
    %380 = vmatprep.subr.mxu0 0.0
    %381 = vmatpush1.msra.mxu0 0.0
    %382 = vmatprep.subr.mxu0 0.0
    %383 = vmatpush1.msra.mxu0 0.0
    %384 = vmatprep.subr.mxu0 0.0
    %385 = vmatpush1.msra.mxu0 0.0
    %386 = vmatprep.subr.mxu0 0.0
    %387 = vmatpush1.msra.mxu0 0.0
    %388 = vmatprep.subr.mxu0 0.0
    %389 = vmatpush1.msra.mxu0 0.0
    %390 = vmatprep.subr.mxu0 0.0
    %391 = vmatpush1.msra.mxu0 0.0
    %392 = vmatprep.subr.mxu0 0.0
    %393 = vmatpush1.msra.mxu0 0.0
    %394 = vmatprep.subr.mxu0 0.0
    %395 = vmatpush1.msra.mxu0 0.0
    %396 = vmatprep.subr.mxu0 0.0
    %397 = vmatpush1.msra.mxu0 0.0
    %398 = vmatprep.subr.mxu0 0.0
    %399 = vmatpush1.msra.mxu0 0.0
    %400 = vmatprep.subr.mxu0 0.0
    %401 = vmatpush1.msra.mxu0 0.0
    %402 = vmatprep.subr.mxu0 0.0
    %403 = vmatpush1.msra.mxu0 0.0
    %404 = vmatprep.subr.mxu0 0.0
    %405 = vmatpush1.msra.mxu0 0.0
    %406 = vmatprep.mubr.f32.mxu0 0.0
    %407 = vmatmul.mubr.f32.gmra.mrb[0].mxu0 %v160
    %v408 = vpop.f32.mrb[0].mxu0
    %v409 = vadd.f32 %v155, %v408
    %v410 = vpop.f32.mrb[0].mxu0
    %411 = vdwg.mxu0
    %v413 = vrot.slane %v409, 1
    %v416 = vmul.f32 %v317, %v409
    %v417 = vmul.f32 %v319, %v413
    %420 = vrot.lane.b32.xlu0 %v416, 64
    %v421 = vpop.permute.xlu0 %420
    %422 = vrot.lane.b32.xlu0 %v417, 64
    %v423 = vpop.permute.xlu0 %422
    %v426 = vadd.f32 %v130, %v421
    %v427 = vadd.f32 %v135, %v423
    %v428 = vtanh.pop %v426
    %v429 = vtanh.pop %v427
    %v430 = vsub.f32 0.0, %v428
    %v431 = vsub.f32 0.0, %v429
    %434 = vrot.lane.b32.xlu0 %v430, 96
    %v435 = vpop.permute.xlu0 %434
    %436 = vrot.lane.b32.xlu0 %v431, 96
    %v437 = vpop.permute.xlu0 %436
    %v440 = vmul.f32 %v339, %v435
    %v441 = vmul.f32 %v341, %v437
    %444 = vrot.lane.b32.xlu0 %v440, 32
    %v445 = vpop.permute.xlu0 %444
    %446 = vrot.lane.b32.xlu0 %v441, 32
    %v447 = vpop.permute.xlu0 %446
    %v450 = vadd.f32 %v428, %v445
    %v451 = vadd.f32 %v429, %v447
    %vm452 = vcmp.eq.s32.totalorder %v157, 0
    %v453 = vsel %vm452, 1, 0
    %454 = vset.pattern.permute.xlu0 0
    %455 = vperm.xlu0 %454, %v453
    %v456 = vpop.permute.xlu0 %455
    %vm457 = vcmp.eq.s32.totalorder %v456, 1
    %v460 = vrot.slane %v451, 7
    %vm461 = vcmask 1041409
    %v462 = vsel %vm461, %v460, %v450
    %463 = vrot.lane.b32.xlu0 %v462, 64
    %v464 = vpop.permute.xlu0 %463
    %v466 = vsel %vm457, %v464, 0.0
    %v467 = vsel %vm158, %v464, 0
    %469 = vmatprep.subr.mxu0 0.0
    %470 = vmatpush1.msra.mxu0 %v138
    %471 = vmatprep.subr.mxu0 0.0
    %472 = vmatpush1.msra.mxu0 %v139
    %473 = vmatprep.subr.mxu0 0.0
    %474 = vmatpush1.msra.mxu0 %v140
    %475 = vmatprep.subr.mxu0 0.0
    %476 = vmatpush1.msra.mxu0 %v141
    %477 = vmatprep.subr.mxu0 0.0
    %478 = vmatpush1.msra.mxu0 0.0
    %479 = vmatprep.subr.mxu0 0.0
    %480 = vmatpush1.msra.mxu0 0.0
    %481 = vmatprep.subr.mxu0 0.0
    %482 = vmatpush1.msra.mxu0 0.0
    %483 = vmatprep.subr.mxu0 0.0
    %484 = vmatpush1.msra.mxu0 0.0
    %485 = vmatprep.subr.mxu0 0.0
    %486 = vmatpush1.msra.mxu0 0.0
    %487 = vmatprep.subr.mxu0 0.0
    %488 = vmatpush1.msra.mxu0 0.0
    %489 = vmatprep.subr.mxu0 0.0
    %490 = vmatpush1.msra.mxu0 0.0
    %491 = vmatprep.subr.mxu0 0.0
    %492 = vmatpush1.msra.mxu0 0.0
    %493 = vmatprep.subr.mxu0 0.0
    %494 = vmatpush1.msra.mxu0 0.0
    %495 = vmatprep.subr.mxu0 0.0
    %496 = vmatpush1.msra.mxu0 0.0
    %497 = vmatprep.subr.mxu0 0.0
    %498 = vmatpush1.msra.mxu0 0.0
    %499 = vmatprep.subr.mxu0 0.0
    %500 = vmatpush1.msra.mxu0 0.0
    %501 = vmatprep.subr.mxu0 0.0
    %502 = vmatpush1.msra.mxu0 0.0
    %503 = vmatprep.subr.mxu0 0.0
    %504 = vmatpush1.msra.mxu0 0.0
    %505 = vmatprep.subr.mxu0 0.0
    %506 = vmatpush1.msra.mxu0 0.0
    %507 = vmatprep.subr.mxu0 0.0
    %508 = vmatpush1.msra.mxu0 0.0
    %509 = vmatprep.subr.mxu0 0.0
    %510 = vmatpush1.msra.mxu0 0.0
    %511 = vmatprep.subr.mxu0 0.0
    %512 = vmatpush1.msra.mxu0 0.0
    %513 = vmatprep.subr.mxu0 0.0
    %514 = vmatpush1.msra.mxu0 0.0
    %515 = vmatprep.subr.mxu0 0.0
    %516 = vmatpush1.msra.mxu0 0.0
    %517 = vmatprep.subr.mxu0 0.0
    %518 = vmatpush1.msra.mxu0 0.0
    %519 = vmatprep.subr.mxu0 0.0
    %520 = vmatpush1.msra.mxu0 0.0
    %521 = vmatprep.subr.mxu0 0.0
    %522 = vmatpush1.msra.mxu0 0.0
    %523 = vmatprep.subr.mxu0 0.0
    %524 = vmatpush1.msra.mxu0 0.0
    %525 = vmatprep.subr.mxu0 0.0
    %526 = vmatpush1.msra.mxu0 0.0
    %527 = vmatprep.subr.mxu0 0.0
    %528 = vmatpush1.msra.mxu0 0.0
    %529 = vmatprep.subr.mxu0 0.0
    %530 = vmatpush1.msra.mxu0 0.0
    %531 = vmatprep.subr.mxu0 0.0
    %532 = vmatpush1.msra.mxu0 0.0
    %533 = vmatprep.mubr.f32.mxu0 0.0
    %534 = vmatmul.mubr.f32.gmra.mrb[0].mxu0 %v467
    %v535 = vpop.f32.mrb[0].mxu0
    %v536 = vadd.f32 0.0, %v535
    %v537 = vpop.f32.mrb[0].mxu0
    %538 = vdwg.mxu0
    %539 = vmatprep.subr.mxu0 0.0
    %540 = vmatpush1.msra.mxu0 %v142
    %541 = vmatprep.subr.mxu0 0.0
    %542 = vmatpush1.msra.mxu0 %v143
    %543 = vmatprep.subr.mxu0 0.0
    %544 = vmatpush1.msra.mxu0 %v144
    %545 = vmatprep.subr.mxu0 0.0
    %546 = vmatpush1.msra.mxu0 %v145
    %547 = vmatprep.subr.mxu0 0.0
    %548 = vmatpush1.msra.mxu0 0.0
    %549 = vmatprep.subr.mxu0 0.0
    %550 = vmatpush1.msra.mxu0 0.0
    %551 = vmatprep.subr.mxu0 0.0
    %552 = vmatpush1.msra.mxu0 0.0
    %553 = vmatprep.subr.mxu0 0.0
    %554 = vmatpush1.msra.mxu0 0.0
    %555 = vmatprep.subr.mxu0 0.0
    %556 = vmatpush1.msra.mxu0 0.0
    %557 = vmatprep.subr.mxu0 0.0
    %558 = vmatpush1.msra.mxu0 0.0
    %559 = vmatprep.subr.mxu0 0.0
    %560 = vmatpush1.msra.mxu0 0.0
    %561 = vmatprep.subr.mxu0 0.0
    %562 = vmatpush1.msra.mxu0 0.0
    %563 = vmatprep.subr.mxu0 0.0
    %564 = vmatpush1.msra.mxu0 0.0
    %565 = vmatprep.subr.mxu0 0.0
    %566 = vmatpush1.msra.mxu0 0.0
    %567 = vmatprep.subr.mxu0 0.0
    %568 = vmatpush1.msra.mxu0 0.0
    %569 = vmatprep.subr.mxu0 0.0
    %570 = vmatpush1.msra.mxu0 0.0
    %571 = vmatprep.subr.mxu0 0.0
    %572 = vmatpush1.msra.mxu0 0.0
    %573 = vmatprep.subr.mxu0 0.0
    %574 = vmatpush1.msra.mxu0 0.0
    %575 = vmatprep.subr.mxu0 0.0
    %576 = vmatpush1.msra.mxu0 0.0
    %577 = vmatprep.subr.mxu0 0.0
    %578 = vmatpush1.msra.mxu0 0.0
    %579 = vmatprep.subr.mxu0 0.0
    %580 = vmatpush1.msra.mxu0 0.0
    %581 = vmatprep.subr.mxu0 0.0
    %582 = vmatpush1.msra.mxu0 0.0
    %583 = vmatprep.subr.mxu0 0.0
    %584 = vmatpush1.msra.mxu0 0.0
    %585 = vmatprep.subr.mxu0 0.0
    %586 = vmatpush1.msra.mxu0 0.0
    %587 = vmatprep.subr.mxu0 0.0
    %588 = vmatpush1.msra.mxu0 0.0
    %589 = vmatprep.subr.mxu0 0.0
    %590 = vmatpush1.msra.mxu0 0.0
    %591 = vmatprep.subr.mxu0 0.0
    %592 = vmatpush1.msra.mxu0 0.0
    %593 = vmatprep.subr.mxu0 0.0
    %594 = vmatpush1.msra.mxu0 0.0
    %595 = vmatprep.subr.mxu0 0.0
    %596 = vmatpush1.msra.mxu0 0.0
    %597 = vmatprep.subr.mxu0 0.0
    %598 = vmatpush1.msra.mxu0 0.0
    %599 = vmatprep.subr.mxu0 0.0
    %600 = vmatpush1.msra.mxu0 0.0
    %601 = vmatprep.subr.mxu0 0.0
    %602 = vmatpush1.msra.mxu0 0.0
    %603 = vmatprep.mubr.f32.mxu0 0.0
    %604 = vmatmul.mubr.f32.gmra.mrb[0].mxu0 %v467
    %v605 = vpop.f32.mrb[0].mxu0
    %v606 = vadd.f32 0.0, %v605
    %v607 = vpop.f32.mrb[0].mxu0
    %608 = vdwg.mxu0
    %v610 = vrot.slane %v536, 7
    %v613 = vadd.f32 %v130, %v610
    %v614 = vadd.f32 %v135, %v536
    %v615 = vxor.u32 %v613, 2147483648
    %v616 = vxor.u32 %v614, 2147483648
    %v617 = vmul.f32 %v615, 1.442695
    %v618 = vpow.pop %v617
    %v619 = vmul.f32 %v616, 1.442695
    %v620 = vpow.pop %v619
    %v621 = vadd.f32 %v618, 1.0
    %v622 = vadd.f32 %v620, 1.0
    %v623 = vrcp.pop %v621
    %v624 = vmul.f32 1.0, %v623
    %v625 = vrcp.pop %v622
    %v626 = vmul.f32 1.0, %v625
    %v628 = vrot.slane %v606, 7
    %629 = vrot.lane.b32.xlu0 %v628, 32
    %v630 = vpop.permute.xlu0 %629
    %631 = vrot.lane.b32.xlu0 %v606, 32
    %v632 = vpop.permute.xlu0 %631
    %v635 = vadd.f32 %v130, %v630
    %v636 = vadd.f32 %v135, %v632
    %v637 = vxor.u32 %v635, 2147483648
    %v638 = vxor.u32 %v636, 2147483648
    %v639 = vmul.f32 %v637, 1.442695
    %v640 = vpow.pop %v639
    %v641 = vmul.f32 %v638, 1.442695
    %v642 = vpow.pop %v641
    %v643 = vadd.f32 %v640, 1.0
    %v644 = vadd.f32 %v642, 1.0
    %v645 = vrcp.pop %v643
    %v646 = vmul.f32 1.0, %v645
    %v647 = vrcp.pop %v644
    %v648 = vmul.f32 1.0, %v647
    %649 = vmatprep.subr.mxu0 0.0
    %650 = vmatpush1.msra.mxu0 %v146
    %651 = vmatprep.subr.mxu0 0.0
    %652 = vmatpush1.msra.mxu0 %v147
    %653 = vmatprep.subr.mxu0 0.0
    %654 = vmatpush1.msra.mxu0 %v148
    %655 = vmatprep.subr.mxu0 0.0
    %656 = vmatpush1.msra.mxu0 %v149
    %657 = vmatprep.subr.mxu0 0.0
    %658 = vmatpush1.msra.mxu0 0.0
    %659 = vmatprep.subr.mxu0 0.0
    %660 = vmatpush1.msra.mxu0 0.0
    %661 = vmatprep.subr.mxu0 0.0
    %662 = vmatpush1.msra.mxu0 0.0
    %663 = vmatprep.subr.mxu0 0.0
    %664 = vmatpush1.msra.mxu0 0.0
    %665 = vmatprep.subr.mxu0 0.0
    %666 = vmatpush1.msra.mxu0 0.0
    %667 = vmatprep.subr.mxu0 0.0
    %668 = vmatpush1.msra.mxu0 0.0
    %669 = vmatprep.subr.mxu0 0.0
    %670 = vmatpush1.msra.mxu0 0.0
    %671 = vmatprep.subr.mxu0 0.0
    %672 = vmatpush1.msra.mxu0 0.0
    %673 = vmatprep.subr.mxu0 0.0
    %674 = vmatpush1.msra.mxu0 0.0
    %675 = vmatprep.subr.mxu0 0.0
    %676 = vmatpush1.msra.mxu0 0.0
    %677 = vmatprep.subr.mxu0 0.0
    %678 = vmatpush1.msra.mxu0 0.0
    %679 = vmatprep.subr.mxu0 0.0
    %680 = vmatpush1.msra.mxu0 0.0
    %681 = vmatprep.subr.mxu0 0.0
    %682 = vmatpush1.msra.mxu0 0.0
    %683 = vmatprep.subr.mxu0 0.0
    %684 = vmatpush1.msra.mxu0 0.0
    %685 = vmatprep.subr.mxu0 0.0
    %686 = vmatpush1.msra.mxu0 0.0
    %687 = vmatprep.subr.mxu0 0.0
    %688 = vmatpush1.msra.mxu0 0.0
    %689 = vmatprep.subr.mxu0 0.0
    %690 = vmatpush1.msra.mxu0 0.0
    %691 = vmatprep.subr.mxu0 0.0
    %692 = vmatpush1.msra.mxu0 0.0
    %693 = vmatprep.subr.mxu0 0.0
    %694 = vmatpush1.msra.mxu0 0.0
    %695 = vmatprep.subr.mxu0 0.0
    %696 = vmatpush1.msra.mxu0 0.0
    %697 = vmatprep.subr.mxu0 0.0
    %698 = vmatpush1.msra.mxu0 0.0
    %699 = vmatprep.subr.mxu0 0.0
    %700 = vmatpush1.msra.mxu0 0.0
    %701 = vmatprep.subr.mxu0 0.0
    %702 = vmatpush1.msra.mxu0 0.0
    %703 = vmatprep.subr.mxu0 0.0
    %704 = vmatpush1.msra.mxu0 0.0
    %705 = vmatprep.subr.mxu0 0.0
    %706 = vmatpush1.msra.mxu0 0.0
    %707 = vmatprep.subr.mxu0 0.0
    %708 = vmatpush1.msra.mxu0 0.0
    %709 = vmatprep.subr.mxu0 0.0
    %710 = vmatpush1.msra.mxu0 0.0
    %711 = vmatprep.subr.mxu0 0.0
    %712 = vmatpush1.msra.mxu0 0.0
    %713 = vmatprep.mubr.f32.mxu0 0.0
    %714 = vmatmul.mubr.f32.gmra.mrb[0].mxu0 %v467
    %v715 = vpop.f32.mrb[0].mxu0
    %v716 = vadd.f32 %v155, %v715
    %v717 = vpop.f32.mrb[0].mxu0
    %718 = vdwg.mxu0
    %v720 = vrot.slane %v716, 7
    %v723 = vmul.f32 %v624, %v720
    %v724 = vmul.f32 %v626, %v716
    %727 = vrot.lane.b32.xlu0 %v723, 64
    %v728 = vpop.permute.xlu0 %727
    %729 = vrot.lane.b32.xlu0 %v724, 64
    %v730 = vpop.permute.xlu0 %729
    %v733 = vadd.f32 %v130, %v728
    %v734 = vadd.f32 %v135, %v730
    %v735 = vtanh.pop %v733
    %v736 = vtanh.pop %v734
    %v739 = vrot.slane %v735, 1
    %v740 = vrot.slane %v736, 1
    %v743 = vsub.f32 %v450, %v739
    %v744 = vsub.f32 %v451, %v740
    %v747 = vrot.slane %v743, 7
    %v748 = vrot.slane %v744, 7
    %749 = vrot.lane.b32.xlu0 %v747, 96
    %v750 = vpop.permute.xlu0 %749
    %751 = vrot.lane.b32.xlu0 %v748, 96
    %v752 = vpop.permute.xlu0 %751
    %v755 = vmul.f32 %v646, %v750
    %v756 = vmul.f32 %v648, %v752
    %759 = vrot.lane.b32.xlu0 %v755, 32
    %v760 = vpop.permute.xlu0 %759
    %761 = vrot.lane.b32.xlu0 %v756, 32
    %v762 = vpop.permute.xlu0 %761
    %v765 = vadd.f32 %v735, %v760
    %v766 = vadd.f32 %v736, %v762
    %vm767 = vcmp.eq.s32.totalorder %v157, 1
    %v768 = vsel %vm767, 1, 0
    %769 = vset.pattern.permute.xlu0 0
    %770 = vperm.xlu0 %769, %v768
    %v771 = vpop.permute.xlu0 %770
    %vm772 = vcmp.eq.s32.totalorder %v771, 1
    %v775 = vrot.slane %v765, 1
    %v776 = vsel %vm461, %v766, %v775
    %777 = vrot.lane.b32.xlu0 %v776, 64
    %v778 = vpop.permute.xlu0 %777
    %v780 = vsel %vm772, %v778, %v466
    %v781 = vsel %vm158, %v778, 0
    %783 = vmatprep.subr.mxu0 0.0
    %784 = vmatpush1.msra.mxu0 %v138
    %785 = vmatprep.subr.mxu0 0.0
    %786 = vmatpush1.msra.mxu0 %v139
    %787 = vmatprep.subr.mxu0 0.0
    %788 = vmatpush1.msra.mxu0 %v140
    %789 = vmatprep.subr.mxu0 0.0
    %790 = vmatpush1.msra.mxu0 %v141
    %791 = vmatprep.subr.mxu0 0.0
    %792 = vmatpush1.msra.mxu0 0.0
    %793 = vmatprep.subr.mxu0 0.0
    %794 = vmatpush1.msra.mxu0 0.0
    %795 = vmatprep.subr.mxu0 0.0
    %796 = vmatpush1.msra.mxu0 0.0
    %797 = vmatprep.subr.mxu0 0.0
    %798 = vmatpush1.msra.mxu0 0.0
    %799 = vmatprep.subr.mxu0 0.0
    %800 = vmatpush1.msra.mxu0 0.0
    %801 = vmatprep.subr.mxu0 0.0
    %802 = vmatpush1.msra.mxu0 0.0
    %803 = vmatprep.subr.mxu0 0.0
    %804 = vmatpush1.msra.mxu0 0.0
    %805 = vmatprep.subr.mxu0 0.0
    %806 = vmatpush1.msra.mxu0 0.0
    %807 = vmatprep.subr.mxu0 0.0
    %808 = vmatpush1.msra.mxu0 0.0
    %809 = vmatprep.subr.mxu0 0.0
    %810 = vmatpush1.msra.mxu0 0.0
    %811 = vmatprep.subr.mxu0 0.0
    %812 = vmatpush1.msra.mxu0 0.0
    %813 = vmatprep.subr.mxu0 0.0
    %814 = vmatpush1.msra.mxu0 0.0
    %815 = vmatprep.subr.mxu0 0.0
    %816 = vmatpush1.msra.mxu0 0.0
    %817 = vmatprep.subr.mxu0 0.0
    %818 = vmatpush1.msra.mxu0 0.0
    %819 = vmatprep.subr.mxu0 0.0
    %820 = vmatpush1.msra.mxu0 0.0
    %821 = vmatprep.subr.mxu0 0.0
    %822 = vmatpush1.msra.mxu0 0.0
    %823 = vmatprep.subr.mxu0 0.0
    %824 = vmatpush1.msra.mxu0 0.0
    %825 = vmatprep.subr.mxu0 0.0
    %826 = vmatpush1.msra.mxu0 0.0
    %827 = vmatprep.subr.mxu0 0.0
    %828 = vmatpush1.msra.mxu0 0.0
    %829 = vmatprep.subr.mxu0 0.0
    %830 = vmatpush1.msra.mxu0 0.0
    %831 = vmatprep.subr.mxu0 0.0
    %832 = vmatpush1.msra.mxu0 0.0
    %833 = vmatprep.subr.mxu0 0.0
    %834 = vmatpush1.msra.mxu0 0.0
    %835 = vmatprep.subr.mxu0 0.0
    %836 = vmatpush1.msra.mxu0 0.0
    %837 = vmatprep.subr.mxu0 0.0
    %838 = vmatpush1.msra.mxu0 0.0
    %839 = vmatprep.subr.mxu0 0.0
    %840 = vmatpush1.msra.mxu0 0.0
    %841 = vmatprep.subr.mxu0 0.0
    %842 = vmatpush1.msra.mxu0 0.0
    %843 = vmatprep.subr.mxu0 0.0
    %844 = vmatpush1.msra.mxu0 0.0
    %845 = vmatprep.subr.mxu0 0.0
    %846 = vmatpush1.msra.mxu0 0.0
    %847 = vmatprep.mubr.f32.mxu0 0.0
    %848 = vmatmul.mubr.f32.gmra.mrb[0].mxu0 %v781
    %v849 = vpop.f32.mrb[0].mxu0
    %v850 = vadd.f32 0.0, %v849
    %v851 = vpop.f32.mrb[0].mxu0
    %852 = vdwg.mxu0
    %853 = vmatprep.subr.mxu0 0.0
    %854 = vmatpush1.msra.mxu0 %v142
    %855 = vmatprep.subr.mxu0 0.0
    %856 = vmatpush1.msra.mxu0 %v143
    %857 = vmatprep.subr.mxu0 0.0
    %858 = vmatpush1.msra.mxu0 %v144
    %859 = vmatprep.subr.mxu0 0.0
    %860 = vmatpush1.msra.mxu0 %v145
    %861 = vmatprep.subr.mxu0 0.0
    %862 = vmatpush1.msra.mxu0 0.0
    %863 = vmatprep.subr.mxu0 0.0
    %864 = vmatpush1.msra.mxu0 0.0
    %865 = vmatprep.subr.mxu0 0.0
    %866 = vmatpush1.msra.mxu0 0.0
    %867 = vmatprep.subr.mxu0 0.0
    %868 = vmatpush1.msra.mxu0 0.0
    %869 = vmatprep.subr.mxu0 0.0
    %870 = vmatpush1.msra.mxu0 0.0
    %871 = vmatprep.subr.mxu0 0.0
    %872 = vmatpush1.msra.mxu0 0.0
    %873 = vmatprep.subr.mxu0 0.0
    %874 = vmatpush1.msra.mxu0 0.0
    %875 = vmatprep.subr.mxu0 0.0
    %876 = vmatpush1.msra.mxu0 0.0
    %877 = vmatprep.subr.mxu0 0.0
    %878 = vmatpush1.msra.mxu0 0.0
    %879 = vmatprep.subr.mxu0 0.0
    %880 = vmatpush1.msra.mxu0 0.0
    %881 = vmatprep.subr.mxu0 0.0
    %882 = vmatpush1.msra.mxu0 0.0
    %883 = vmatprep.subr.mxu0 0.0
    %884 = vmatpush1.msra.mxu0 0.0
    %885 = vmatprep.subr.mxu0 0.0
    %886 = vmatpush1.msra.mxu0 0.0
    %887 = vmatprep.subr.mxu0 0.0
    %888 = vmatpush1.msra.mxu0 0.0
    %889 = vmatprep.subr.mxu0 0.0
    %890 = vmatpush1.msra.mxu0 0.0
    %891 = vmatprep.subr.mxu0 0.0
    %892 = vmatpush1.msra.mxu0 0.0
    %893 = vmatprep.subr.mxu0 0.0
    %894 = vmatpush1.msra.mxu0 0.0
    %895 = vmatprep.subr.mxu0 0.0
    %896 = vmatpush1.msra.mxu0 0.0
    %897 = vmatprep.subr.mxu0 0.0
    %898 = vmatpush1.msra.mxu0 0.0
    %899 = vmatprep.subr.mxu0 0.0
    %900 = vmatpush1.msra.mxu0 0.0
    %901 = vmatprep.subr.mxu0 0.0
    %902 = vmatpush1.msra.mxu0 0.0
    %903 = vmatprep.subr.mxu0 0.0
    %904 = vmatpush1.msra.mxu0 0.0
    %905 = vmatprep.subr.mxu0 0.0
    %906 = vmatpush1.msra.mxu0 0.0
    %907 = vmatprep.subr.mxu0 0.0
    %908 = vmatpush1.msra.mxu0 0.0
    %909 = vmatprep.subr.mxu0 0.0
    %910 = vmatpush1.msra.mxu0 0.0
    %911 = vmatprep.subr.mxu0 0.0
    %912 = vmatpush1.msra.mxu0 0.0
    %913 = vmatprep.subr.mxu0 0.0
    %914 = vmatpush1.msra.mxu0 0.0
    %915 = vmatprep.subr.mxu0 0.0
    %916 = vmatpush1.msra.mxu0 0.0
    %917 = vmatprep.mubr.f32.mxu0 0.0
    %918 = vmatmul.mubr.f32.gmra.mrb[0].mxu0 %v781
    %v919 = vpop.f32.mrb[0].mxu0
    %v920 = vadd.f32 0.0, %v919
    %v921 = vpop.f32.mrb[0].mxu0
    %922 = vdwg.mxu0
    %v924 = vrot.slane %v850, 6
    %v925 = vrot.slane %v850, 7
    %v928 = vadd.f32 %v130, %v924
    %v929 = vadd.f32 %v135, %v925
    %v930 = vxor.u32 %v928, 2147483648
    %v931 = vxor.u32 %v929, 2147483648
    %v932 = vmul.f32 %v930, 1.442695
    %v933 = vpow.pop %v932
    %v934 = vmul.f32 %v931, 1.442695
    %v935 = vpow.pop %v934
    %v936 = vadd.f32 %v933, 1.0
    %v937 = vadd.f32 %v935, 1.0
    %v938 = vrcp.pop %v936
    %v939 = vmul.f32 1.0, %v938
    %v940 = vrcp.pop %v937
    %v941 = vmul.f32 1.0, %v940
    %v943 = vrot.slane %v920, 6
    %v944 = vrot.slane %v920, 7
    %945 = vrot.lane.b32.xlu0 %v943, 32
    %v946 = vpop.permute.xlu0 %945
    %947 = vrot.lane.b32.xlu0 %v944, 32
    %v948 = vpop.permute.xlu0 %947
    %v951 = vadd.f32 %v130, %v946
    %v952 = vadd.f32 %v135, %v948
    %v953 = vxor.u32 %v951, 2147483648
    %v954 = vxor.u32 %v952, 2147483648
    %v955 = vmul.f32 %v953, 1.442695
    %v956 = vpow.pop %v955
    %v957 = vmul.f32 %v954, 1.442695
    %v958 = vpow.pop %v957
    %v959 = vadd.f32 %v956, 1.0
    %v960 = vadd.f32 %v958, 1.0
    %v961 = vrcp.pop %v959
    %v962 = vmul.f32 1.0, %v961
    %v963 = vrcp.pop %v960
    %v964 = vmul.f32 1.0, %v963
    %965 = vmatprep.subr.mxu0 0.0
    %966 = vmatpush1.msra.mxu0 %v146
    %967 = vmatprep.subr.mxu0 0.0
    %968 = vmatpush1.msra.mxu0 %v147
    %969 = vmatprep.subr.mxu0 0.0
    %970 = vmatpush1.msra.mxu0 %v148
    %971 = vmatprep.subr.mxu0 0.0
    %972 = vmatpush1.msra.mxu0 %v149
    %973 = vmatprep.subr.mxu0 0.0
    %974 = vmatpush1.msra.mxu0 0.0
    %975 = vmatprep.subr.mxu0 0.0
    %976 = vmatpush1.msra.mxu0 0.0
    %977 = vmatprep.subr.mxu0 0.0
    %978 = vmatpush1.msra.mxu0 0.0
    %979 = vmatprep.subr.mxu0 0.0
    %980 = vmatpush1.msra.mxu0 0.0
    %981 = vmatprep.subr.mxu0 0.0
    %982 = vmatpush1.msra.mxu0 0.0
    %983 = vmatprep.subr.mxu0 0.0
    %984 = vmatpush1.msra.mxu0 0.0
    %985 = vmatprep.subr.mxu0 0.0
    %986 = vmatpush1.msra.mxu0 0.0
    %987 = vmatprep.subr.mxu0 0.0
    %988 = vmatpush1.msra.mxu0 0.0
    %989 = vmatprep.subr.mxu0 0.0
    %990 = vmatpush1.msra.mxu0 0.0
    %991 = vmatprep.subr.mxu0 0.0
    %992 = vmatpush1.msra.mxu0 0.0
    %993 = vmatprep.subr.mxu0 0.0
    %994 = vmatpush1.msra.mxu0 0.0
    %995 = vmatprep.subr.mxu0 0.0
    %996 = vmatpush1.msra.mxu0 0.0
    %997 = vmatprep.subr.mxu0 0.0
    %998 = vmatpush1.msra.mxu0 0.0
    %999 = vmatprep.subr.mxu0 0.0
    %1000 = vmatpush1.msra.mxu0 0.0
    %1001 = vmatprep.subr.mxu0 0.0
    %1002 = vmatpush1.msra.mxu0 0.0
    %1003 = vmatprep.subr.mxu0 0.0
    %1004 = vmatpush1.msra.mxu0 0.0
    %1005 = vmatprep.subr.mxu0 0.0
    %1006 = vmatpush1.msra.mxu0 0.0
    %1007 = vmatprep.subr.mxu0 0.0
    %1008 = vmatpush1.msra.mxu0 0.0
    %1009 = vmatprep.subr.mxu0 0.0
    %1010 = vmatpush1.msra.mxu0 0.0
    %1011 = vmatprep.subr.mxu0 0.0
    %1012 = vmatpush1.msra.mxu0 0.0
    %1013 = vmatprep.subr.mxu0 0.0
    %1014 = vmatpush1.msra.mxu0 0.0
    %1015 = vmatprep.subr.mxu0 0.0
    %1016 = vmatpush1.msra.mxu0 0.0
    %1017 = vmatprep.subr.mxu0 0.0
    %1018 = vmatpush1.msra.mxu0 0.0
    %1019 = vmatprep.subr.mxu0 0.0
    %1020 = vmatpush1.msra.mxu0 0.0
    %1021 = vmatprep.subr.mxu0 0.0
    %1022 = vmatpush1.msra.mxu0 0.0
    %1023 = vmatprep.subr.mxu0 0.0
    %1024 = vmatpush1.msra.mxu0 0.0
    %1025 = vmatprep.subr.mxu0 0.0
    %1026 = vmatpush1.msra.mxu0 0.0
    %1027 = vmatprep.subr.mxu0 0.0
    %1028 = vmatpush1.msra.mxu0 0.0
    %1029 = vmatprep.mubr.f32.mxu0 0.0
    %1030 = vmatmul.mubr.f32.gmra.mrb[0].mxu0 %v781
    %v1031 = vpop.f32.mrb[0].mxu0
    %v1032 = vadd.f32 %v155, %v1031
    %v1033 = vpop.f32.mrb[0].mxu0
    %1034 = vdwg.mxu0
    %v1036 = vrot.slane %v1032, 6
    %v1037 = vrot.slane %v1032, 7
    %v1040 = vmul.f32 %v939, %v1036
    %v1041 = vmul.f32 %v941, %v1037
    %1044 = vrot.lane.b32.xlu0 %v1040, 64
    %v1045 = vpop.permute.xlu0 %1044
    %1046 = vrot.lane.b32.xlu0 %v1041, 64
    %v1047 = vpop.permute.xlu0 %1046
    %v1050 = vadd.f32 %v130, %v1045
    %v1051 = vadd.f32 %v135, %v1047
    %v1052 = vtanh.pop %v1050
    %v1053 = vtanh.pop %v1051
    %v1056 = vrot.slane %v1052, 1
    %v1057 = vrot.slane %v1053, 1
    %v1060 = vsub.f32 %v765, %v1056
    %v1061 = vsub.f32 %v766, %v1057
    %v1064 = vrot.slane %v1060, 7
    %v1065 = vrot.slane %v1061, 7
    %1066 = vrot.lane.b32.xlu0 %v1064, 96
    %v1067 = vpop.permute.xlu0 %1066
    %1068 = vrot.lane.b32.xlu0 %v1065, 96
    %v1069 = vpop.permute.xlu0 %1068
    %v1072 = vmul.f32 %v962, %v1067
    %v1073 = vmul.f32 %v964, %v1069
    %1076 = vrot.lane.b32.xlu0 %v1072, 32
    %v1077 = vpop.permute.xlu0 %1076
    %1078 = vrot.lane.b32.xlu0 %v1073, 32
    %v1079 = vpop.permute.xlu0 %1078
    %v1082 = vadd.f32 %v1052, %v1077
    %v1083 = vadd.f32 %v1053, %v1079
    %vm1084 = vcmp.eq.s32.totalorder %v157, 2
    %v1085 = vsel %vm1084, 1, 0
    %1086 = vset.pattern.permute.xlu0 0
    %1087 = vperm.xlu0 %1086, %v1085
    %v1088 = vpop.permute.xlu0 %1087
    %vm1089 = vcmp.eq.s32.totalorder %v1088, 1
    %v1092 = vrot.slane %v1082, 2
    %v1093 = vrot.slane %v1083, 1
    %v1094 = vsel %vm461, %v1093, %v1092
    %1095 = vrot.lane.b32.xlu0 %v1094, 64
    %v1096 = vpop.permute.xlu0 %1095
    %v1098 = vsel %vm1089, %v1096, %v780
    %v1099 = vsel %vm158, %v1096, 0
    %1101 = vmatprep.subr.mxu0 0.0
    %1102 = vmatpush1.msra.mxu0 %v138
    %1103 = vmatprep.subr.mxu0 0.0
    %1104 = vmatpush1.msra.mxu0 %v139
    %1105 = vmatprep.subr.mxu0 0.0
    %1106 = vmatpush1.msra.mxu0 %v140
    %1107 = vmatprep.subr.mxu0 0.0
    %1108 = vmatpush1.msra.mxu0 %v141
    %1109 = vmatprep.subr.mxu0 0.0
    %1110 = vmatpush1.msra.mxu0 0.0
    %1111 = vmatprep.subr.mxu0 0.0
    %1112 = vmatpush1.msra.mxu0 0.0
    %1113 = vmatprep.subr.mxu0 0.0
    %1114 = vmatpush1.msra.mxu0 0.0
    %1115 = vmatprep.subr.mxu0 0.0
    %1116 = vmatpush1.msra.mxu0 0.0
    %1117 = vmatprep.subr.mxu0 0.0
    %1118 = vmatpush1.msra.mxu0 0.0
    %1119 = vmatprep.subr.mxu0 0.0
    %1120 = vmatpush1.msra.mxu0 0.0
    %1121 = vmatprep.subr.mxu0 0.0
    %1122 = vmatpush1.msra.mxu0 0.0
    %1123 = vmatprep.subr.mxu0 0.0
    %1124 = vmatpush1.msra.mxu0 0.0
    %1125 = vmatprep.subr.mxu0 0.0
    %1126 = vmatpush1.msra.mxu0 0.0
    %1127 = vmatprep.subr.mxu0 0.0
    %1128 = vmatpush1.msra.mxu0 0.0
    %1129 = vmatprep.subr.mxu0 0.0
    %1130 = vmatpush1.msra.mxu0 0.0
    %1131 = vmatprep.subr.mxu0 0.0
    %1132 = vmatpush1.msra.mxu0 0.0
    %1133 = vmatprep.subr.mxu0 0.0
    %1134 = vmatpush1.msra.mxu0 0.0
    %1135 = vmatprep.subr.mxu0 0.0
    %1136 = vmatpush1.msra.mxu0 0.0
    %1137 = vmatprep.subr.mxu0 0.0
    %1138 = vmatpush1.msra.mxu0 0.0
    %1139 = vmatprep.subr.mxu0 0.0
    %1140 = vmatpush1.msra.mxu0 0.0
    %1141 = vmatprep.subr.mxu0 0.0
    %1142 = vmatpush1.msra.mxu0 0.0
    %1143 = vmatprep.subr.mxu0 0.0
    %1144 = vmatpush1.msra.mxu0 0.0
    %1145 = vmatprep.subr.mxu0 0.0
    %1146 = vmatpush1.msra.mxu0 0.0
    %1147 = vmatprep.subr.mxu0 0.0
    %1148 = vmatpush1.msra.mxu0 0.0
    %1149 = vmatprep.subr.mxu0 0.0
    %1150 = vmatpush1.msra.mxu0 0.0
    %1151 = vmatprep.subr.mxu0 0.0
    %1152 = vmatpush1.msra.mxu0 0.0
    %1153 = vmatprep.subr.mxu0 0.0
    %1154 = vmatpush1.msra.mxu0 0.0
    %1155 = vmatprep.subr.mxu0 0.0
    %1156 = vmatpush1.msra.mxu0 0.0
    %1157 = vmatprep.subr.mxu0 0.0
    %1158 = vmatpush1.msra.mxu0 0.0
    %1159 = vmatprep.subr.mxu0 0.0
    %1160 = vmatpush1.msra.mxu0 0.0
    %1161 = vmatprep.subr.mxu0 0.0
    %1162 = vmatpush1.msra.mxu0 0.0
    %1163 = vmatprep.subr.mxu0 0.0
    %1164 = vmatpush1.msra.mxu0 0.0
    %1165 = vmatprep.mubr.f32.mxu0 0.0
    %1166 = vmatmul.mubr.f32.gmra.mrb[0].mxu0 %v1099
    %v1167 = vpop.f32.mrb[0].mxu0
    %v1168 = vadd.f32 0.0, %v1167
    %v1169 = vpop.f32.mrb[0].mxu0
    %1170 = vdwg.mxu0
    %1171 = vmatprep.subr.mxu0 0.0
    %1172 = vmatpush1.msra.mxu0 %v142
    %1173 = vmatprep.subr.mxu0 0.0
    %1174 = vmatpush1.msra.mxu0 %v143
    %1175 = vmatprep.subr.mxu0 0.0
    %1176 = vmatpush1.msra.mxu0 %v144
    %1177 = vmatprep.subr.mxu0 0.0
    %1178 = vmatpush1.msra.mxu0 %v145
    %1179 = vmatprep.subr.mxu0 0.0
    %1180 = vmatpush1.msra.mxu0 0.0
    %1181 = vmatprep.subr.mxu0 0.0
    %1182 = vmatpush1.msra.mxu0 0.0
    %1183 = vmatprep.subr.mxu0 0.0
    %1184 = vmatpush1.msra.mxu0 0.0
    %1185 = vmatprep.subr.mxu0 0.0
    %1186 = vmatpush1.msra.mxu0 0.0
    %1187 = vmatprep.subr.mxu0 0.0
    %1188 = vmatpush1.msra.mxu0 0.0
    %1189 = vmatprep.subr.mxu0 0.0
    %1190 = vmatpush1.msra.mxu0 0.0
    %1191 = vmatprep.subr.mxu0 0.0
    %1192 = vmatpush1.msra.mxu0 0.0
    %1193 = vmatprep.subr.mxu0 0.0
    %1194 = vmatpush1.msra.mxu0 0.0
    %1195 = vmatprep.subr.mxu0 0.0
    %1196 = vmatpush1.msra.mxu0 0.0
    %1197 = vmatprep.subr.mxu0 0.0
    %1198 = vmatpush1.msra.mxu0 0.0
    %1199 = vmatprep.subr.mxu0 0.0
    %1200 = vmatpush1.msra.mxu0 0.0
    %1201 = vmatprep.subr.mxu0 0.0
    %1202 = vmatpush1.msra.mxu0 0.0
    %1203 = vmatprep.subr.mxu0 0.0
    %1204 = vmatpush1.msra.mxu0 0.0
    %1205 = vmatprep.subr.mxu0 0.0
    %1206 = vmatpush1.msra.mxu0 0.0
    %1207 = vmatprep.subr.mxu0 0.0
    %1208 = vmatpush1.msra.mxu0 0.0
    %1209 = vmatprep.subr.mxu0 0.0
    %1210 = vmatpush1.msra.mxu0 0.0
    %1211 = vmatprep.subr.mxu0 0.0
    %1212 = vmatpush1.msra.mxu0 0.0
    %1213 = vmatprep.subr.mxu0 0.0
    %1214 = vmatpush1.msra.mxu0 0.0
    %1215 = vmatprep.subr.mxu0 0.0
    %1216 = vmatpush1.msra.mxu0 0.0
    %1217 = vmatprep.subr.mxu0 0.0
    %1218 = vmatpush1.msra.mxu0 0.0
    %1219 = vmatprep.subr.mxu0 0.0
    %1220 = vmatpush1.msra.mxu0 0.0
    %1221 = vmatprep.subr.mxu0 0.0
    %1222 = vmatpush1.msra.mxu0 0.0
    %1223 = vmatprep.subr.mxu0 0.0
    %1224 = vmatpush1.msra.mxu0 0.0
    %1225 = vmatprep.subr.mxu0 0.0
    %1226 = vmatpush1.msra.mxu0 0.0
    %1227 = vmatprep.subr.mxu0 0.0
    %1228 = vmatpush1.msra.mxu0 0.0
    %1229 = vmatprep.subr.mxu0 0.0
    %1230 = vmatpush1.msra.mxu0 0.0
    %1231 = vmatprep.subr.mxu0 0.0
    %1232 = vmatpush1.msra.mxu0 0.0
    %1233 = vmatprep.subr.mxu0 0.0
    %1234 = vmatpush1.msra.mxu0 0.0
    %1235 = vmatprep.mubr.f32.mxu0 0.0
    %1236 = vmatmul.mubr.f32.gmra.mrb[0].mxu0 %v1099
    %v1237 = vpop.f32.mrb[0].mxu0
    %v1238 = vadd.f32 0.0, %v1237
    %v1239 = vpop.f32.mrb[0].mxu0
    %1240 = vdwg.mxu0
    %v1242 = vrot.slane %v1168, 5
    %v1243 = vrot.slane %v1168, 6
    %v1246 = vadd.f32 %v130, %v1242
    %v1247 = vadd.f32 %v135, %v1243
    %v1248 = vxor.u32 %v1246, 2147483648
    %v1249 = vxor.u32 %v1247, 2147483648
    %v1250 = vmul.f32 %v1248, 1.442695
    %v1251 = vpow.pop %v1250
    %v1252 = vmul.f32 %v1249, 1.442695
    %v1253 = vpow.pop %v1252
    %v1254 = vadd.f32 %v1251, 1.0
    %v1255 = vadd.f32 %v1253, 1.0
    %v1256 = vrcp.pop %v1254
    %v1257 = vmul.f32 1.0, %v1256
    %v1258 = vrcp.pop %v1255
    %v1259 = vmul.f32 1.0, %v1258
    %v1261 = vrot.slane %v1238, 5
    %v1262 = vrot.slane %v1238, 6
    %1263 = vrot.lane.b32.xlu0 %v1261, 32
    %v1264 = vpop.permute.xlu0 %1263
    %1265 = vrot.lane.b32.xlu0 %v1262, 32
    %v1266 = vpop.permute.xlu0 %1265
    %v1269 = vadd.f32 %v130, %v1264
    %v1270 = vadd.f32 %v135, %v1266
    %v1271 = vxor.u32 %v1269, 2147483648
    %v1272 = vxor.u32 %v1270, 2147483648
    %v1273 = vmul.f32 %v1271, 1.442695
    %v1274 = vpow.pop %v1273
    %v1275 = vmul.f32 %v1272, 1.442695
    %v1276 = vpow.pop %v1275
    %v1277 = vadd.f32 %v1274, 1.0
    %v1278 = vadd.f32 %v1276, 1.0
    %v1279 = vrcp.pop %v1277
    %v1280 = vmul.f32 1.0, %v1279
    %v1281 = vrcp.pop %v1278
    %v1282 = vmul.f32 1.0, %v1281
    %1283 = vmatprep.subr.mxu0 0.0
    %1284 = vmatpush1.msra.mxu0 %v146
    %1285 = vmatprep.subr.mxu0 0.0
    %1286 = vmatpush1.msra.mxu0 %v147
    %1287 = vmatprep.subr.mxu0 0.0
    %1288 = vmatpush1.msra.mxu0 %v148
    %1289 = vmatprep.subr.mxu0 0.0
    %1290 = vmatpush1.msra.mxu0 %v149
    %1291 = vmatprep.subr.mxu0 0.0
    %1292 = vmatpush1.msra.mxu0 0.0
    %1293 = vmatprep.subr.mxu0 0.0
    %1294 = vmatpush1.msra.mxu0 0.0
    %1295 = vmatprep.subr.mxu0 0.0
    %1296 = vmatpush1.msra.mxu0 0.0
    %1297 = vmatprep.subr.mxu0 0.0
    %1298 = vmatpush1.msra.mxu0 0.0
    %1299 = vmatprep.subr.mxu0 0.0
    %1300 = vmatpush1.msra.mxu0 0.0
    %1301 = vmatprep.subr.mxu0 0.0
    %1302 = vmatpush1.msra.mxu0 0.0
    %1303 = vmatprep.subr.mxu0 0.0
    %1304 = vmatpush1.msra.mxu0 0.0
    %1305 = vmatprep.subr.mxu0 0.0
    %1306 = vmatpush1.msra.mxu0 0.0
    %1307 = vmatprep.subr.mxu0 0.0
    %1308 = vmatpush1.msra.mxu0 0.0
    %1309 = vmatprep.subr.mxu0 0.0
    %1310 = vmatpush1.msra.mxu0 0.0
    %1311 = vmatprep.subr.mxu0 0.0
    %1312 = vmatpush1.msra.mxu0 0.0
    %1313 = vmatprep.subr.mxu0 0.0
    %1314 = vmatpush1.msra.mxu0 0.0
    %1315 = vmatprep.subr.mxu0 0.0
    %1316 = vmatpush1.msra.mxu0 0.0
    %1317 = vmatprep.subr.mxu0 0.0
    %1318 = vmatpush1.msra.mxu0 0.0
    %1319 = vmatprep.subr.mxu0 0.0
    %1320 = vmatpush1.msra.mxu0 0.0
    %1321 = vmatprep.subr.mxu0 0.0
    %1322 = vmatpush1.msra.mxu0 0.0
    %1323 = vmatprep.subr.mxu0 0.0
    %1324 = vmatpush1.msra.mxu0 0.0
    %1325 = vmatprep.subr.mxu0 0.0
    %1326 = vmatpush1.msra.mxu0 0.0
    %1327 = vmatprep.subr.mxu0 0.0
    %1328 = vmatpush1.msra.mxu0 0.0
    %1329 = vmatprep.subr.mxu0 0.0
    %1330 = vmatpush1.msra.mxu0 0.0
    %1331 = vmatprep.subr.mxu0 0.0
    %1332 = vmatpush1.msra.mxu0 0.0
    %1333 = vmatprep.subr.mxu0 0.0
    %1334 = vmatpush1.msra.mxu0 0.0
    %1335 = vmatprep.subr.mxu0 0.0
    %1336 = vmatpush1.msra.mxu0 0.0
    %1337 = vmatprep.subr.mxu0 0.0
    %1338 = vmatpush1.msra.mxu0 0.0
    %1339 = vmatprep.subr.mxu0 0.0
    %1340 = vmatpush1.msra.mxu0 0.0
    %1341 = vmatprep.subr.mxu0 0.0
    %1342 = vmatpush1.msra.mxu0 0.0
    %1343 = vmatprep.subr.mxu0 0.0
    %1344 = vmatpush1.msra.mxu0 0.0
    %1345 = vmatprep.subr.mxu0 0.0
    %1346 = vmatpush1.msra.mxu0 0.0
    %1347 = vmatprep.mubr.f32.mxu0 0.0
    %1348 = vmatmul.mubr.f32.gmra.mrb[0].mxu0 %v1099
    %v1349 = vpop.f32.mrb[0].mxu0
    %v1350 = vadd.f32 %v155, %v1349
    %v1351 = vpop.f32.mrb[0].mxu0
    %1352 = vdwg.mxu0
    %v1354 = vrot.slane %v1350, 5
    %v1355 = vrot.slane %v1350, 6
    %v1358 = vmul.f32 %v1257, %v1354
    %v1359 = vmul.f32 %v1259, %v1355
    %1362 = vrot.lane.b32.xlu0 %v1358, 64
    %v1363 = vpop.permute.xlu0 %1362
    %1364 = vrot.lane.b32.xlu0 %v1359, 64
    %v1365 = vpop.permute.xlu0 %1364
    %v1368 = vadd.f32 %v130, %v1363
    %v1369 = vadd.f32 %v135, %v1365
    %v1370 = vtanh.pop %v1368
    %v1371 = vtanh.pop %v1369
    %v1374 = vrot.slane %v1370, 1
    %v1375 = vrot.slane %v1371, 1
    %v1378 = vsub.f32 %v1082, %v1374
    %v1379 = vsub.f32 %v1083, %v1375
    %v1382 = vrot.slane %v1378, 7
    %v1383 = vrot.slane %v1379, 7
    %1384 = vrot.lane.b32.xlu0 %v1382, 96
    %v1385 = vpop.permute.xlu0 %1384
    %1386 = vrot.lane.b32.xlu0 %v1383, 96
    %v1387 = vpop.permute.xlu0 %1386
    %v1390 = vmul.f32 %v1280, %v1385
    %v1391 = vmul.f32 %v1282, %v1387
    %1394 = vrot.lane.b32.xlu0 %v1390, 32
    %v1395 = vpop.permute.xlu0 %1394
    %1396 = vrot.lane.b32.xlu0 %v1391, 32
    %v1397 = vpop.permute.xlu0 %1396
    %v1400 = vadd.f32 %v1370, %v1395
    %v1401 = vadd.f32 %v1371, %v1397
    %vm1402 = vcmp.eq.s32.totalorder %v157, 3
    %v1403 = vsel %vm1402, 1, 0
    %1404 = vset.pattern.permute.xlu0 0
    %1405 = vperm.xlu0 %1404, %v1403
    %v1406 = vpop.permute.xlu0 %1405
    %vm1407 = vcmp.eq.s32.totalorder %v1406, 1
    %v1410 = vrot.slane %v1400, 3
    %v1411 = vrot.slane %v1401, 2
    %v1412 = vsel %vm461, %v1411, %v1410
    %1413 = vrot.lane.b32.xlu0 %v1412, 64
    %v1414 = vpop.permute.xlu0 %1413
    %v1416 = vsel %vm1407, %v1414, %v1098
    %v1417 = vsel %vm158, %v1414, 0
    %1419 = vmatprep.subr.mxu0 0.0
    %1420 = vmatpush1.msra.mxu0 %v138
    %1421 = vmatprep.subr.mxu0 0.0
    %1422 = vmatpush1.msra.mxu0 %v139
    %1423 = vmatprep.subr.mxu0 0.0
    %1424 = vmatpush1.msra.mxu0 %v140
    %1425 = vmatprep.subr.mxu0 0.0
    %1426 = vmatpush1.msra.mxu0 %v141
    %1427 = vmatprep.subr.mxu0 0.0
    %1428 = vmatpush1.msra.mxu0 0.0
    %1429 = vmatprep.subr.mxu0 0.0
    %1430 = vmatpush1.msra.mxu0 0.0
    %1431 = vmatprep.subr.mxu0 0.0
    %1432 = vmatpush1.msra.mxu0 0.0
    %1433 = vmatprep.subr.mxu0 0.0
    %1434 = vmatpush1.msra.mxu0 0.0
    %1435 = vmatprep.subr.mxu0 0.0
    %1436 = vmatpush1.msra.mxu0 0.0
    %1437 = vmatprep.subr.mxu0 0.0
    %1438 = vmatpush1.msra.mxu0 0.0
    %1439 = vmatprep.subr.mxu0 0.0
    %1440 = vmatpush1.msra.mxu0 0.0
    %1441 = vmatprep.subr.mxu0 0.0
    %1442 = vmatpush1.msra.mxu0 0.0
    %1443 = vmatprep.subr.mxu0 0.0
    %1444 = vmatpush1.msra.mxu0 0.0
    %1445 = vmatprep.subr.mxu0 0.0
    %1446 = vmatpush1.msra.mxu0 0.0
    %1447 = vmatprep.subr.mxu0 0.0
    %1448 = vmatpush1.msra.mxu0 0.0
    %1449 = vmatprep.subr.mxu0 0.0
    %1450 = vmatpush1.msra.mxu0 0.0
    %1451 = vmatprep.subr.mxu0 0.0
    %1452 = vmatpush1.msra.mxu0 0.0
    %1453 = vmatprep.subr.mxu0 0.0
    %1454 = vmatpush1.msra.mxu0 0.0
    %1455 = vmatprep.subr.mxu0 0.0
    %1456 = vmatpush1.msra.mxu0 0.0
    %1457 = vmatprep.subr.mxu0 0.0
    %1458 = vmatpush1.msra.mxu0 0.0
    %1459 = vmatprep.subr.mxu0 0.0
    %1460 = vmatpush1.msra.mxu0 0.0
    %1461 = vmatprep.subr.mxu0 0.0
    %1462 = vmatpush1.msra.mxu0 0.0
    %1463 = vmatprep.subr.mxu0 0.0
    %1464 = vmatpush1.msra.mxu0 0.0
    %1465 = vmatprep.subr.mxu0 0.0
    %1466 = vmatpush1.msra.mxu0 0.0
    %1467 = vmatprep.subr.mxu0 0.0
    %1468 = vmatpush1.msra.mxu0 0.0
    %1469 = vmatprep.subr.mxu0 0.0
    %1470 = vmatpush1.msra.mxu0 0.0
    %1471 = vmatprep.subr.mxu0 0.0
    %1472 = vmatpush1.msra.mxu0 0.0
    %1473 = vmatprep.subr.mxu0 0.0
    %1474 = vmatpush1.msra.mxu0 0.0
    %1475 = vmatprep.subr.mxu0 0.0
    %1476 = vmatpush1.msra.mxu0 0.0
    %1477 = vmatprep.subr.mxu0 0.0
    %1478 = vmatpush1.msra.mxu0 0.0
    %1479 = vmatprep.subr.mxu0 0.0
    %1480 = vmatpush1.msra.mxu0 0.0
    %1481 = vmatprep.subr.mxu0 0.0
    %1482 = vmatpush1.msra.mxu0 0.0
    %1483 = vmatprep.mubr.f32.mxu0 0.0
    %1484 = vmatmul.mubr.f32.gmra.mrb[0].mxu0 %v1417
    %v1485 = vpop.f32.mrb[0].mxu0
    %v1486 = vadd.f32 0.0, %v1485
    %v1487 = vpop.f32.mrb[0].mxu0
    %1488 = vdwg.mxu0
    %1489 = vmatprep.subr.mxu0 0.0
    %1490 = vmatpush1.msra.mxu0 %v142
    %1491 = vmatprep.subr.mxu0 0.0
    %1492 = vmatpush1.msra.mxu0 %v143
    %1493 = vmatprep.subr.mxu0 0.0
    %1494 = vmatpush1.msra.mxu0 %v144
    %1495 = vmatprep.subr.mxu0 0.0
    %1496 = vmatpush1.msra.mxu0 %v145
    %1497 = vmatprep.subr.mxu0 0.0
    %1498 = vmatpush1.msra.mxu0 0.0
    %1499 = vmatprep.subr.mxu0 0.0
    %1500 = vmatpush1.msra.mxu0 0.0
    %1501 = vmatprep.subr.mxu0 0.0
    %1502 = vmatpush1.msra.mxu0 0.0
    %1503 = vmatprep.subr.mxu0 0.0
    %1504 = vmatpush1.msra.mxu0 0.0
    %1505 = vmatprep.subr.mxu0 0.0
    %1506 = vmatpush1.msra.mxu0 0.0
    %1507 = vmatprep.subr.mxu0 0.0
    %1508 = vmatpush1.msra.mxu0 0.0
    %1509 = vmatprep.subr.mxu0 0.0
    %1510 = vmatpush1.msra.mxu0 0.0
    %1511 = vmatprep.subr.mxu0 0.0
    %1512 = vmatpush1.msra.mxu0 0.0
    %1513 = vmatprep.subr.mxu0 0.0
    %1514 = vmatpush1.msra.mxu0 0.0
    %1515 = vmatprep.subr.mxu0 0.0
    %1516 = vmatpush1.msra.mxu0 0.0
    %1517 = vmatprep.subr.mxu0 0.0
    %1518 = vmatpush1.msra.mxu0 0.0
    %1519 = vmatprep.subr.mxu0 0.0
    %1520 = vmatpush1.msra.mxu0 0.0
    %1521 = vmatprep.subr.mxu0 0.0
    %1522 = vmatpush1.msra.mxu0 0.0
    %1523 = vmatprep.subr.mxu0 0.0
    %1524 = vmatpush1.msra.mxu0 0.0
    %1525 = vmatprep.subr.mxu0 0.0
    %1526 = vmatpush1.msra.mxu0 0.0
    %1527 = vmatprep.subr.mxu0 0.0
    %1528 = vmatpush1.msra.mxu0 0.0
    %1529 = vmatprep.subr.mxu0 0.0
    %1530 = vmatpush1.msra.mxu0 0.0
    %1531 = vmatprep.subr.mxu0 0.0
    %1532 = vmatpush1.msra.mxu0 0.0
    %1533 = vmatprep.subr.mxu0 0.0
    %1534 = vmatpush1.msra.mxu0 0.0
    %1535 = vmatprep.subr.mxu0 0.0
    %1536 = vmatpush1.msra.mxu0 0.0
    %1537 = vmatprep.subr.mxu0 0.0
    %1538 = vmatpush1.msra.mxu0 0.0
    %1539 = vmatprep.subr.mxu0 0.0
    %1540 = vmatpush1.msra.mxu0 0.0
    %1541 = vmatprep.subr.mxu0 0.0
    %1542 = vmatpush1.msra.mxu0 0.0
    %1543 = vmatprep.subr.mxu0 0.0
    %1544 = vmatpush1.msra.mxu0 0.0
    %1545 = vmatprep.subr.mxu0 0.0
    %1546 = vmatpush1.msra.mxu0 0.0
    %1547 = vmatprep.subr.mxu0 0.0
    %1548 = vmatpush1.msra.mxu0 0.0
    %1549 = vmatprep.subr.mxu0 0.0
    %1550 = vmatpush1.msra.mxu0 0.0
    %1551 = vmatprep.subr.mxu0 0.0
    %1552 = vmatpush1.msra.mxu0 0.0
    %1553 = vmatprep.mubr.f32.mxu0 0.0
    %1554 = vmatmul.mubr.f32.gmra.mrb[0].mxu0 %v1417
    %v1555 = vpop.f32.mrb[0].mxu0
    %v1556 = vadd.f32 0.0, %v1555
    %v1557 = vpop.f32.mrb[0].mxu0
    %1558 = vdwg.mxu0
    %v1560 = vrot.slane %v1486, 4
    %v1561 = vrot.slane %v1486, 5
    %v1564 = vadd.f32 %v130, %v1560
    %v1565 = vadd.f32 %v135, %v1561
    %v1566 = vxor.u32 %v1564, 2147483648
    %v1567 = vxor.u32 %v1565, 2147483648
    %v1568 = vmul.f32 %v1566, 1.442695
    %v1569 = vpow.pop %v1568
    %v1570 = vmul.f32 %v1567, 1.442695
    %v1571 = vpow.pop %v1570
    %v1572 = vadd.f32 %v1569, 1.0
    %v1573 = vadd.f32 %v1571, 1.0
    %v1574 = vrcp.pop %v1572
    %v1575 = vmul.f32 1.0, %v1574
    %v1576 = vrcp.pop %v1573
    %v1577 = vmul.f32 1.0, %v1576
    %v1579 = vrot.slane %v1556, 4
    %v1580 = vrot.slane %v1556, 5
    %1581 = vrot.lane.b32.xlu0 %v1579, 32
    %v1582 = vpop.permute.xlu0 %1581
    %1583 = vrot.lane.b32.xlu0 %v1580, 32
    %v1584 = vpop.permute.xlu0 %1583
    %v1587 = vadd.f32 %v130, %v1582
    %v1588 = vadd.f32 %v135, %v1584
    %v1589 = vxor.u32 %v1587, 2147483648
    %v1590 = vxor.u32 %v1588, 2147483648
    %v1591 = vmul.f32 %v1589, 1.442695
    %v1592 = vpow.pop %v1591
    %v1593 = vmul.f32 %v1590, 1.442695
    %v1594 = vpow.pop %v1593
    %v1595 = vadd.f32 %v1592, 1.0
    %v1596 = vadd.f32 %v1594, 1.0
    %v1597 = vrcp.pop %v1595
    %v1598 = vmul.f32 1.0, %v1597
    %v1599 = vrcp.pop %v1596
    %v1600 = vmul.f32 1.0, %v1599
    %1601 = vmatprep.subr.mxu0 0.0
    %1602 = vmatpush1.msra.mxu0 %v146
    %1603 = vmatprep.subr.mxu0 0.0
    %1604 = vmatpush1.msra.mxu0 %v147
    %1605 = vmatprep.subr.mxu0 0.0
    %1606 = vmatpush1.msra.mxu0 %v148
    %1607 = vmatprep.subr.mxu0 0.0
    %1608 = vmatpush1.msra.mxu0 %v149
    %1609 = vmatprep.subr.mxu0 0.0
    %1610 = vmatpush1.msra.mxu0 0.0
    %1611 = vmatprep.subr.mxu0 0.0
    %1612 = vmatpush1.msra.mxu0 0.0
    %1613 = vmatprep.subr.mxu0 0.0
    %1614 = vmatpush1.msra.mxu0 0.0
    %1615 = vmatprep.subr.mxu0 0.0
    %1616 = vmatpush1.msra.mxu0 0.0
    %1617 = vmatprep.subr.mxu0 0.0
    %1618 = vmatpush1.msra.mxu0 0.0
    %1619 = vmatprep.subr.mxu0 0.0
    %1620 = vmatpush1.msra.mxu0 0.0
    %1621 = vmatprep.subr.mxu0 0.0
    %1622 = vmatpush1.msra.mxu0 0.0
    %1623 = vmatprep.subr.mxu0 0.0
    %1624 = vmatpush1.msra.mxu0 0.0
    %1625 = vmatprep.subr.mxu0 0.0
    %1626 = vmatpush1.msra.mxu0 0.0
    %1627 = vmatprep.subr.mxu0 0.0
    %1628 = vmatpush1.msra.mxu0 0.0
    %1629 = vmatprep.subr.mxu0 0.0
    %1630 = vmatpush1.msra.mxu0 0.0
    %1631 = vmatprep.subr.mxu0 0.0
    %1632 = vmatpush1.msra.mxu0 0.0
    %1633 = vmatprep.subr.mxu0 0.0
    %1634 = vmatpush1.msra.mxu0 0.0
    %1635 = vmatprep.subr.mxu0 0.0
    %1636 = vmatpush1.msra.mxu0 0.0
    %1637 = vmatprep.subr.mxu0 0.0
    %1638 = vmatpush1.msra.mxu0 0.0
    %1639 = vmatprep.subr.mxu0 0.0
    %1640 = vmatpush1.msra.mxu0 0.0
    %1641 = vmatprep.subr.mxu0 0.0
    %1642 = vmatpush1.msra.mxu0 0.0
    %1643 = vmatprep.subr.mxu0 0.0
    %1644 = vmatpush1.msra.mxu0 0.0
    %1645 = vmatprep.subr.mxu0 0.0
    %1646 = vmatpush1.msra.mxu0 0.0
    %1647 = vmatprep.subr.mxu0 0.0
    %1648 = vmatpush1.msra.mxu0 0.0
    %1649 = vmatprep.subr.mxu0 0.0
    %1650 = vmatpush1.msra.mxu0 0.0
    %1651 = vmatprep.subr.mxu0 0.0
    %1652 = vmatpush1.msra.mxu0 0.0
    %1653 = vmatprep.subr.mxu0 0.0
    %1654 = vmatpush1.msra.mxu0 0.0
    %1655 = vmatprep.subr.mxu0 0.0
    %1656 = vmatpush1.msra.mxu0 0.0
    %1657 = vmatprep.subr.mxu0 0.0
    %1658 = vmatpush1.msra.mxu0 0.0
    %1659 = vmatprep.subr.mxu0 0.0
    %1660 = vmatpush1.msra.mxu0 0.0
    %1661 = vmatprep.subr.mxu0 0.0
    %1662 = vmatpush1.msra.mxu0 0.0
    %1663 = vmatprep.subr.mxu0 0.0
    %1664 = vmatpush1.msra.mxu0 0.0
    %1665 = vmatprep.mubr.f32.mxu0 0.0
    %1666 = vmatmul.mubr.f32.gmra.mrb[0].mxu0 %v1417
    %v1667 = vpop.f32.mrb[0].mxu0
    %v1668 = vadd.f32 %v155, %v1667
    %v1669 = vpop.f32.mrb[0].mxu0
    %1670 = vdwg.mxu0
    %v1672 = vrot.slane %v1668, 4
    %v1673 = vrot.slane %v1668, 5
    %v1676 = vmul.f32 %v1575, %v1672
    %v1677 = vmul.f32 %v1577, %v1673
    %1680 = vrot.lane.b32.xlu0 %v1676, 64
    %v1681 = vpop.permute.xlu0 %1680
    %1682 = vrot.lane.b32.xlu0 %v1677, 64
    %v1683 = vpop.permute.xlu0 %1682
    %v1686 = vadd.f32 %v130, %v1681
    %v1687 = vadd.f32 %v135, %v1683
    %v1688 = vtanh.pop %v1686
    %v1689 = vtanh.pop %v1687
    %v1692 = vrot.slane %v1688, 1
    %v1693 = vrot.slane %v1689, 1
    %v1696 = vsub.f32 %v1400, %v1692
    %v1697 = vsub.f32 %v1401, %v1693
    %v1700 = vrot.slane %v1696, 7
    %v1701 = vrot.slane %v1697, 7
    %1702 = vrot.lane.b32.xlu0 %v1700, 96
    %v1703 = vpop.permute.xlu0 %1702
    %1704 = vrot.lane.b32.xlu0 %v1701, 96
    %v1705 = vpop.permute.xlu0 %1704
    %v1708 = vmul.f32 %v1598, %v1703
    %v1709 = vmul.f32 %v1600, %v1705
    %1712 = vrot.lane.b32.xlu0 %v1708, 32
    %v1713 = vpop.permute.xlu0 %1712
    %1714 = vrot.lane.b32.xlu0 %v1709, 32
    %v1715 = vpop.permute.xlu0 %1714
    %v1718 = vadd.f32 %v1688, %v1713
    %v1719 = vadd.f32 %v1689, %v1715
    %vm1720 = vcmp.eq.s32.totalorder %v157, 4
    %v1721 = vsel %vm1720, 1, 0
    %1722 = vset.pattern.permute.xlu0 0
    %1723 = vperm.xlu0 %1722, %v1721
    %v1724 = vpop.permute.xlu0 %1723
    %vm1725 = vcmp.eq.s32.totalorder %v1724, 1
    %v1728 = vrot.slane %v1718, 4
    %v1729 = vrot.slane %v1719, 3
    %v1730 = vsel %vm461, %v1729, %v1728
    %1731 = vrot.lane.b32.xlu0 %v1730, 64
    %v1732 = vpop.permute.xlu0 %1731
    %v1734 = vsel %vm1725, %v1732, %v1416
    %v1735 = vsel %vm158, %v1732, 0
    %1737 = vmatprep.subr.mxu0 0.0
    %1738 = vmatpush1.msra.mxu0 %v138
    %1739 = vmatprep.subr.mxu0 0.0
    %1740 = vmatpush1.msra.mxu0 %v139
    %1741 = vmatprep.subr.mxu0 0.0
    %1742 = vmatpush1.msra.mxu0 %v140
    %1743 = vmatprep.subr.mxu0 0.0
    %1744 = vmatpush1.msra.mxu0 %v141
    %1745 = vmatprep.subr.mxu0 0.0
    %1746 = vmatpush1.msra.mxu0 0.0
    %1747 = vmatprep.subr.mxu0 0.0
    %1748 = vmatpush1.msra.mxu0 0.0
    %1749 = vmatprep.subr.mxu0 0.0
    %1750 = vmatpush1.msra.mxu0 0.0
    %1751 = vmatprep.subr.mxu0 0.0
    %1752 = vmatpush1.msra.mxu0 0.0
    %1753 = vmatprep.subr.mxu0 0.0
    %1754 = vmatpush1.msra.mxu0 0.0
    %1755 = vmatprep.subr.mxu0 0.0
    %1756 = vmatpush1.msra.mxu0 0.0
    %1757 = vmatprep.subr.mxu0 0.0
    %1758 = vmatpush1.msra.mxu0 0.0
    %1759 = vmatprep.subr.mxu0 0.0
    %1760 = vmatpush1.msra.mxu0 0.0
    %1761 = vmatprep.subr.mxu0 0.0
    %1762 = vmatpush1.msra.mxu0 0.0
    %1763 = vmatprep.subr.mxu0 0.0
    %1764 = vmatpush1.msra.mxu0 0.0
    %1765 = vmatprep.subr.mxu0 0.0
    %1766 = vmatpush1.msra.mxu0 0.0
    %1767 = vmatprep.subr.mxu0 0.0
    %1768 = vmatpush1.msra.mxu0 0.0
    %1769 = vmatprep.subr.mxu0 0.0
    %1770 = vmatpush1.msra.mxu0 0.0
    %1771 = vmatprep.subr.mxu0 0.0
    %1772 = vmatpush1.msra.mxu0 0.0
    %1773 = vmatprep.subr.mxu0 0.0
    %1774 = vmatpush1.msra.mxu0 0.0
    %1775 = vmatprep.subr.mxu0 0.0
    %1776 = vmatpush1.msra.mxu0 0.0
    %1777 = vmatprep.subr.mxu0 0.0
    %1778 = vmatpush1.msra.mxu0 0.0
    %1779 = vmatprep.subr.mxu0 0.0
    %1780 = vmatpush1.msra.mxu0 0.0
    %1781 = vmatprep.subr.mxu0 0.0
    %1782 = vmatpush1.msra.mxu0 0.0
    %1783 = vmatprep.subr.mxu0 0.0
    %1784 = vmatpush1.msra.mxu0 0.0
    %1785 = vmatprep.subr.mxu0 0.0
    %1786 = vmatpush1.msra.mxu0 0.0
    %1787 = vmatprep.subr.mxu0 0.0
    %1788 = vmatpush1.msra.mxu0 0.0
    %1789 = vmatprep.subr.mxu0 0.0
    %1790 = vmatpush1.msra.mxu0 0.0
    %1791 = vmatprep.subr.mxu0 0.0
    %1792 = vmatpush1.msra.mxu0 0.0
    %1793 = vmatprep.subr.mxu0 0.0
    %1794 = vmatpush1.msra.mxu0 0.0
    %1795 = vmatprep.subr.mxu0 0.0
    %1796 = vmatpush1.msra.mxu0 0.0
    %1797 = vmatprep.subr.mxu0 0.0
    %1798 = vmatpush1.msra.mxu0 0.0
    %1799 = vmatprep.subr.mxu0 0.0
    %1800 = vmatpush1.msra.mxu0 0.0
    %1801 = vmatprep.mubr.f32.mxu0 0.0
    %1802 = vmatmul.mubr.f32.gmra.mrb[0].mxu0 %v1735
    %v1803 = vpop.f32.mrb[0].mxu0
    %v1804 = vadd.f32 0.0, %v1803
    %v1805 = vpop.f32.mrb[0].mxu0
    %1806 = vdwg.mxu0
    %1807 = vmatprep.subr.mxu0 0.0
    %1808 = vmatpush1.msra.mxu0 %v142
    %1809 = vmatprep.subr.mxu0 0.0
    %1810 = vmatpush1.msra.mxu0 %v143
    %1811 = vmatprep.subr.mxu0 0.0
    %1812 = vmatpush1.msra.mxu0 %v144
    %1813 = vmatprep.subr.mxu0 0.0
    %1814 = vmatpush1.msra.mxu0 %v145
    %1815 = vmatprep.subr.mxu0 0.0
    %1816 = vmatpush1.msra.mxu0 0.0
    %1817 = vmatprep.subr.mxu0 0.0
    %1818 = vmatpush1.msra.mxu0 0.0
    %1819 = vmatprep.subr.mxu0 0.0
    %1820 = vmatpush1.msra.mxu0 0.0
    %1821 = vmatprep.subr.mxu0 0.0
    %1822 = vmatpush1.msra.mxu0 0.0
    %1823 = vmatprep.subr.mxu0 0.0
    %1824 = vmatpush1.msra.mxu0 0.0
    %1825 = vmatprep.subr.mxu0 0.0
    %1826 = vmatpush1.msra.mxu0 0.0
    %1827 = vmatprep.subr.mxu0 0.0
    %1828 = vmatpush1.msra.mxu0 0.0
    %1829 = vmatprep.subr.mxu0 0.0
    %1830 = vmatpush1.msra.mxu0 0.0
    %1831 = vmatprep.subr.mxu0 0.0
    %1832 = vmatpush1.msra.mxu0 0.0
    %1833 = vmatprep.subr.mxu0 0.0
    %1834 = vmatpush1.msra.mxu0 0.0
    %1835 = vmatprep.subr.mxu0 0.0
    %1836 = vmatpush1.msra.mxu0 0.0
    %1837 = vmatprep.subr.mxu0 0.0
    %1838 = vmatpush1.msra.mxu0 0.0
    %1839 = vmatprep.subr.mxu0 0.0
    %1840 = vmatpush1.msra.mxu0 0.0
    %1841 = vmatprep.subr.mxu0 0.0
    %1842 = vmatpush1.msra.mxu0 0.0
    %1843 = vmatprep.subr.mxu0 0.0
    %1844 = vmatpush1.msra.mxu0 0.0
    %1845 = vmatprep.subr.mxu0 0.0
    %1846 = vmatpush1.msra.mxu0 0.0
    %1847 = vmatprep.subr.mxu0 0.0
    %1848 = vmatpush1.msra.mxu0 0.0
    %1849 = vmatprep.subr.mxu0 0.0
    %1850 = vmatpush1.msra.mxu0 0.0
    %1851 = vmatprep.subr.mxu0 0.0
    %1852 = vmatpush1.msra.mxu0 0.0
    %1853 = vmatprep.subr.mxu0 0.0
    %1854 = vmatpush1.msra.mxu0 0.0
    %1855 = vmatprep.subr.mxu0 0.0
    %1856 = vmatpush1.msra.mxu0 0.0
    %1857 = vmatprep.subr.mxu0 0.0
    %1858 = vmatpush1.msra.mxu0 0.0
    %1859 = vmatprep.subr.mxu0 0.0
    %1860 = vmatpush1.msra.mxu0 0.0
    %1861 = vmatprep.subr.mxu0 0.0
    %1862 = vmatpush1.msra.mxu0 0.0
    %1863 = vmatprep.subr.mxu0 0.0
    %1864 = vmatpush1.msra.mxu0 0.0
    %1865 = vmatprep.subr.mxu0 0.0
    %1866 = vmatpush1.msra.mxu0 0.0
    %1867 = vmatprep.subr.mxu0 0.0
    %1868 = vmatpush1.msra.mxu0 0.0
    %1869 = vmatprep.subr.mxu0 0.0
    %1870 = vmatpush1.msra.mxu0 0.0
    %1871 = vmatprep.mubr.f32.mxu0 0.0
    %1872 = vmatmul.mubr.f32.gmra.mrb[0].mxu0 %v1735
    %v1873 = vpop.f32.mrb[0].mxu0
    %v1874 = vadd.f32 0.0, %v1873
    %v1875 = vpop.f32.mrb[0].mxu0
    %1876 = vdwg.mxu0
    %v1878 = vrot.slane %v1804, 3
    %v1879 = vrot.slane %v1804, 4
    %v1882 = vadd.f32 %v130, %v1878
    %v1883 = vadd.f32 %v135, %v1879
    %v1884 = vxor.u32 %v1882, 2147483648
    %v1885 = vxor.u32 %v1883, 2147483648
    %v1886 = vmul.f32 %v1884, 1.442695
    %v1887 = vpow.pop %v1886
    %v1888 = vmul.f32 %v1885, 1.442695
    %v1889 = vpow.pop %v1888
    %v1890 = vadd.f32 %v1887, 1.0
    %v1891 = vadd.f32 %v1889, 1.0
    %v1892 = vrcp.pop %v1890
    %v1893 = vmul.f32 1.0, %v1892
    %v1894 = vrcp.pop %v1891
    %v1895 = vmul.f32 1.0, %v1894
    %v1897 = vrot.slane %v1874, 3
    %v1898 = vrot.slane %v1874, 4
    %1899 = vrot.lane.b32.xlu0 %v1897, 32
    %v1900 = vpop.permute.xlu0 %1899
    %1901 = vrot.lane.b32.xlu0 %v1898, 32
    %v1902 = vpop.permute.xlu0 %1901
    %v1905 = vadd.f32 %v130, %v1900
    %v1906 = vadd.f32 %v135, %v1902
    %v1907 = vxor.u32 %v1905, 2147483648
    %v1908 = vxor.u32 %v1906, 2147483648
    %v1909 = vmul.f32 %v1907, 1.442695
    %v1910 = vpow.pop %v1909
    %v1911 = vmul.f32 %v1908, 1.442695
    %v1912 = vpow.pop %v1911
    %v1913 = vadd.f32 %v1910, 1.0
    %v1914 = vadd.f32 %v1912, 1.0
    %v1915 = vrcp.pop %v1913
    %v1916 = vmul.f32 1.0, %v1915
    %v1917 = vrcp.pop %v1914
    %v1918 = vmul.f32 1.0, %v1917
    %1919 = vmatprep.subr.mxu0 0.0
    %1920 = vmatpush1.msra.mxu0 %v146
    %1921 = vmatprep.subr.mxu0 0.0
    %1922 = vmatpush1.msra.mxu0 %v147
    %1923 = vmatprep.subr.mxu0 0.0
    %1924 = vmatpush1.msra.mxu0 %v148
    %1925 = vmatprep.subr.mxu0 0.0
    %1926 = vmatpush1.msra.mxu0 %v149
    %1927 = vmatprep.subr.mxu0 0.0
    %1928 = vmatpush1.msra.mxu0 0.0
    %1929 = vmatprep.subr.mxu0 0.0
    %1930 = vmatpush1.msra.mxu0 0.0
    %1931 = vmatprep.subr.mxu0 0.0
    %1932 = vmatpush1.msra.mxu0 0.0
    %1933 = vmatprep.subr.mxu0 0.0
    %1934 = vmatpush1.msra.mxu0 0.0
    %1935 = vmatprep.subr.mxu0 0.0
    %1936 = vmatpush1.msra.mxu0 0.0
    %1937 = vmatprep.subr.mxu0 0.0
    %1938 = vmatpush1.msra.mxu0 0.0
    %1939 = vmatprep.subr.mxu0 0.0
    %1940 = vmatpush1.msra.mxu0 0.0
    %1941 = vmatprep.subr.mxu0 0.0
    %1942 = vmatpush1.msra.mxu0 0.0
    %1943 = vmatprep.subr.mxu0 0.0
    %1944 = vmatpush1.msra.mxu0 0.0
    %1945 = vmatprep.subr.mxu0 0.0
    %1946 = vmatpush1.msra.mxu0 0.0
    %1947 = vmatprep.subr.mxu0 0.0
    %1948 = vmatpush1.msra.mxu0 0.0
    %1949 = vmatprep.subr.mxu0 0.0
    %1950 = vmatpush1.msra.mxu0 0.0
    %1951 = vmatprep.subr.mxu0 0.0
    %1952 = vmatpush1.msra.mxu0 0.0
    %1953 = vmatprep.subr.mxu0 0.0
    %1954 = vmatpush1.msra.mxu0 0.0
    %1955 = vmatprep.subr.mxu0 0.0
    %1956 = vmatpush1.msra.mxu0 0.0
    %1957 = vmatprep.subr.mxu0 0.0
    %1958 = vmatpush1.msra.mxu0 0.0
    %1959 = vmatprep.subr.mxu0 0.0
    %1960 = vmatpush1.msra.mxu0 0.0
    %1961 = vmatprep.subr.mxu0 0.0
    %1962 = vmatpush1.msra.mxu0 0.0
    %1963 = vmatprep.subr.mxu0 0.0
    %1964 = vmatpush1.msra.mxu0 0.0
    %1965 = vmatprep.subr.mxu0 0.0
    %1966 = vmatpush1.msra.mxu0 0.0
    %1967 = vmatprep.subr.mxu0 0.0
    %1968 = vmatpush1.msra.mxu0 0.0
    %1969 = vmatprep.subr.mxu0 0.0
    %1970 = vmatpush1.msra.mxu0 0.0
    %1971 = vmatprep.subr.mxu0 0.0
    %1972 = vmatpush1.msra.mxu0 0.0
    %1973 = vmatprep.subr.mxu0 0.0
    %1974 = vmatpush1.msra.mxu0 0.0
    %1975 = vmatprep.subr.mxu0 0.0
    %1976 = vmatpush1.msra.mxu0 0.0
    %1977 = vmatprep.subr.mxu0 0.0
    %1978 = vmatpush1.msra.mxu0 0.0
    %1979 = vmatprep.subr.mxu0 0.0
    %1980 = vmatpush1.msra.mxu0 0.0
    %1981 = vmatprep.subr.mxu0 0.0
    %1982 = vmatpush1.msra.mxu0 0.0
    %1983 = vmatprep.mubr.f32.mxu0 0.0
    %1984 = vmatmul.mubr.f32.gmra.mrb[0].mxu0 %v1735
    %v1985 = vpop.f32.mrb[0].mxu0
    %v1986 = vadd.f32 %v155, %v1985
    %v1987 = vpop.f32.mrb[0].mxu0
    %1988 = vdwg.mxu0
    %v1990 = vrot.slane %v1986, 3
    %v1991 = vrot.slane %v1986, 4
    %v1994 = vmul.f32 %v1893, %v1990
    %v1995 = vmul.f32 %v1895, %v1991
    %1998 = vrot.lane.b32.xlu0 %v1994, 64
    %v1999 = vpop.permute.xlu0 %1998
    %2000 = vrot.lane.b32.xlu0 %v1995, 64
    %v2001 = vpop.permute.xlu0 %2000
    %v2004 = vadd.f32 %v130, %v1999
    %v2005 = vadd.f32 %v135, %v2001
    %v2006 = vtanh.pop %v2004
    %v2007 = vtanh.pop %v2005
    %v2010 = vrot.slane %v2006, 1
    %v2011 = vrot.slane %v2007, 1
    %v2014 = vsub.f32 %v1718, %v2010
    %v2015 = vsub.f32 %v1719, %v2011
    %v2018 = vrot.slane %v2014, 7
    %v2019 = vrot.slane %v2015, 7
    %2020 = vrot.lane.b32.xlu0 %v2018, 96
    %v2021 = vpop.permute.xlu0 %2020
    %2022 = vrot.lane.b32.xlu0 %v2019, 96
    %v2023 = vpop.permute.xlu0 %2022
    %v2026 = vmul.f32 %v1916, %v2021
    %v2027 = vmul.f32 %v1918, %v2023
    %2030 = vrot.lane.b32.xlu0 %v2026, 32
    %v2031 = vpop.permute.xlu0 %2030
    %2032 = vrot.lane.b32.xlu0 %v2027, 32
    %v2033 = vpop.permute.xlu0 %2032
    %v2036 = vadd.f32 %v2006, %v2031
    %v2037 = vadd.f32 %v2007, %v2033
    %vm2038 = vcmp.eq.s32.totalorder %v157, 5
    %v2039 = vsel %vm2038, 1, 0
    %2040 = vset.pattern.permute.xlu0 0
    %2041 = vperm.xlu0 %2040, %v2039
    %v2042 = vpop.permute.xlu0 %2041
    %vm2043 = vcmp.eq.s32.totalorder %v2042, 1
    %v2046 = vrot.slane %v2036, 5
    %v2047 = vrot.slane %v2037, 4
    %v2048 = vsel %vm461, %v2047, %v2046
    %2049 = vrot.lane.b32.xlu0 %v2048, 64
    %v2050 = vpop.permute.xlu0 %2049
    %v2052 = vsel %vm2043, %v2050, %v1734
    %v2053 = vsel %vm158, %v2050, 0
    %2055 = vmatprep.subr.mxu0 0.0
    %2056 = vmatpush1.msra.mxu0 %v138
    %2057 = vmatprep.subr.mxu0 0.0
    %2058 = vmatpush1.msra.mxu0 %v139
    %2059 = vmatprep.subr.mxu0 0.0
    %2060 = vmatpush1.msra.mxu0 %v140
    %2061 = vmatprep.subr.mxu0 0.0
    %2062 = vmatpush1.msra.mxu0 %v141
    %2063 = vmatprep.subr.mxu0 0.0
    %2064 = vmatpush1.msra.mxu0 0.0
    %2065 = vmatprep.subr.mxu0 0.0
    %2066 = vmatpush1.msra.mxu0 0.0
    %2067 = vmatprep.subr.mxu0 0.0
    %2068 = vmatpush1.msra.mxu0 0.0
    %2069 = vmatprep.subr.mxu0 0.0
    %2070 = vmatpush1.msra.mxu0 0.0
    %2071 = vmatprep.subr.mxu0 0.0
    %2072 = vmatpush1.msra.mxu0 0.0
    %2073 = vmatprep.subr.mxu0 0.0
    %2074 = vmatpush1.msra.mxu0 0.0
    %2075 = vmatprep.subr.mxu0 0.0
    %2076 = vmatpush1.msra.mxu0 0.0
    %2077 = vmatprep.subr.mxu0 0.0
    %2078 = vmatpush1.msra.mxu0 0.0
    %2079 = vmatprep.subr.mxu0 0.0
    %2080 = vmatpush1.msra.mxu0 0.0
    %2081 = vmatprep.subr.mxu0 0.0
    %2082 = vmatpush1.msra.mxu0 0.0
    %2083 = vmatprep.subr.mxu0 0.0
    %2084 = vmatpush1.msra.mxu0 0.0
    %2085 = vmatprep.subr.mxu0 0.0
    %2086 = vmatpush1.msra.mxu0 0.0
    %2087 = vmatprep.subr.mxu0 0.0
    %2088 = vmatpush1.msra.mxu0 0.0
    %2089 = vmatprep.subr.mxu0 0.0
    %2090 = vmatpush1.msra.mxu0 0.0
    %2091 = vmatprep.subr.mxu0 0.0
    %2092 = vmatpush1.msra.mxu0 0.0
    %2093 = vmatprep.subr.mxu0 0.0
    %2094 = vmatpush1.msra.mxu0 0.0
    %2095 = vmatprep.subr.mxu0 0.0
    %2096 = vmatpush1.msra.mxu0 0.0
    %2097 = vmatprep.subr.mxu0 0.0
    %2098 = vmatpush1.msra.mxu0 0.0
    %2099 = vmatprep.subr.mxu0 0.0
    %2100 = vmatpush1.msra.mxu0 0.0
    %2101 = vmatprep.subr.mxu0 0.0
    %2102 = vmatpush1.msra.mxu0 0.0
    %2103 = vmatprep.subr.mxu0 0.0
    %2104 = vmatpush1.msra.mxu0 0.0
    %2105 = vmatprep.subr.mxu0 0.0
    %2106 = vmatpush1.msra.mxu0 0.0
    %2107 = vmatprep.subr.mxu0 0.0
    %2108 = vmatpush1.msra.mxu0 0.0
    %2109 = vmatprep.subr.mxu0 0.0
    %2110 = vmatpush1.msra.mxu0 0.0
    %2111 = vmatprep.subr.mxu0 0.0
    %2112 = vmatpush1.msra.mxu0 0.0
    %2113 = vmatprep.subr.mxu0 0.0
    %2114 = vmatpush1.msra.mxu0 0.0
    %2115 = vmatprep.subr.mxu0 0.0
    %2116 = vmatpush1.msra.mxu0 0.0
    %2117 = vmatprep.subr.mxu0 0.0
    %2118 = vmatpush1.msra.mxu0 0.0
    %2119 = vmatprep.mubr.f32.mxu0 0.0
    %2120 = vmatmul.mubr.f32.gmra.mrb[0].mxu0 %v2053
    %v2121 = vpop.f32.mrb[0].mxu0
    %v2122 = vadd.f32 0.0, %v2121
    %v2123 = vpop.f32.mrb[0].mxu0
    %2124 = vdwg.mxu0
    %2125 = vmatprep.subr.mxu0 0.0
    %2126 = vmatpush1.msra.mxu0 %v142
    %2127 = vmatprep.subr.mxu0 0.0
    %2128 = vmatpush1.msra.mxu0 %v143
    %2129 = vmatprep.subr.mxu0 0.0
    %2130 = vmatpush1.msra.mxu0 %v144
    %2131 = vmatprep.subr.mxu0 0.0
    %2132 = vmatpush1.msra.mxu0 %v145
    %2133 = vmatprep.subr.mxu0 0.0
    %2134 = vmatpush1.msra.mxu0 0.0
    %2135 = vmatprep.subr.mxu0 0.0
    %2136 = vmatpush1.msra.mxu0 0.0
    %2137 = vmatprep.subr.mxu0 0.0
    %2138 = vmatpush1.msra.mxu0 0.0
    %2139 = vmatprep.subr.mxu0 0.0
    %2140 = vmatpush1.msra.mxu0 0.0
    %2141 = vmatprep.subr.mxu0 0.0
    %2142 = vmatpush1.msra.mxu0 0.0
    %2143 = vmatprep.subr.mxu0 0.0
    %2144 = vmatpush1.msra.mxu0 0.0
    %2145 = vmatprep.subr.mxu0 0.0
    %2146 = vmatpush1.msra.mxu0 0.0
    %2147 = vmatprep.subr.mxu0 0.0
    %2148 = vmatpush1.msra.mxu0 0.0
    %2149 = vmatprep.subr.mxu0 0.0
    %2150 = vmatpush1.msra.mxu0 0.0
    %2151 = vmatprep.subr.mxu0 0.0
    %2152 = vmatpush1.msra.mxu0 0.0
    %2153 = vmatprep.subr.mxu0 0.0
    %2154 = vmatpush1.msra.mxu0 0.0
    %2155 = vmatprep.subr.mxu0 0.0
    %2156 = vmatpush1.msra.mxu0 0.0
    %2157 = vmatprep.subr.mxu0 0.0
    %2158 = vmatpush1.msra.mxu0 0.0
    %2159 = vmatprep.subr.mxu0 0.0
    %2160 = vmatpush1.msra.mxu0 0.0
    %2161 = vmatprep.subr.mxu0 0.0
    %2162 = vmatpush1.msra.mxu0 0.0
    %2163 = vmatprep.subr.mxu0 0.0
    %2164 = vmatpush1.msra.mxu0 0.0
    %2165 = vmatprep.subr.mxu0 0.0
    %2166 = vmatpush1.msra.mxu0 0.0
    %2167 = vmatprep.subr.mxu0 0.0
    %2168 = vmatpush1.msra.mxu0 0.0
    %2169 = vmatprep.subr.mxu0 0.0
    %2170 = vmatpush1.msra.mxu0 0.0
    %2171 = vmatprep.subr.mxu0 0.0
    %2172 = vmatpush1.msra.mxu0 0.0
    %2173 = vmatprep.subr.mxu0 0.0
    %2174 = vmatpush1.msra.mxu0 0.0
    %2175 = vmatprep.subr.mxu0 0.0
    %2176 = vmatpush1.msra.mxu0 0.0
    %2177 = vmatprep.subr.mxu0 0.0
    %2178 = vmatpush1.msra.mxu0 0.0
    %2179 = vmatprep.subr.mxu0 0.0
    %2180 = vmatpush1.msra.mxu0 0.0
    %2181 = vmatprep.subr.mxu0 0.0
    %2182 = vmatpush1.msra.mxu0 0.0
    %2183 = vmatprep.subr.mxu0 0.0
    %2184 = vmatpush1.msra.mxu0 0.0
    %2185 = vmatprep.subr.mxu0 0.0
    %2186 = vmatpush1.msra.mxu0 0.0
    %2187 = vmatprep.subr.mxu0 0.0
    %2188 = vmatpush1.msra.mxu0 0.0
    %2189 = vmatprep.mubr.f32.mxu0 0.0
    %2190 = vmatmul.mubr.f32.gmra.mrb[0].mxu0 %v2053
    %v2191 = vpop.f32.mrb[0].mxu0
    %v2192 = vadd.f32 0.0, %v2191
    %v2193 = vpop.f32.mrb[0].mxu0
    %2194 = vdwg.mxu0
    %v2196 = vrot.slane %v2122, 2
    %v2197 = vrot.slane %v2122, 3
    %v2200 = vadd.f32 %v130, %v2196
    %v2201 = vadd.f32 %v135, %v2197
    %v2202 = vxor.u32 %v2200, 2147483648
    %v2203 = vxor.u32 %v2201, 2147483648
    %v2204 = vmul.f32 %v2202, 1.442695
    %v2205 = vpow.pop %v2204
    %v2206 = vmul.f32 %v2203, 1.442695
    %v2207 = vpow.pop %v2206
    %v2208 = vadd.f32 %v2205, 1.0
    %v2209 = vadd.f32 %v2207, 1.0
    %v2210 = vrcp.pop %v2208
    %v2211 = vmul.f32 1.0, %v2210
    %v2212 = vrcp.pop %v2209
    %v2213 = vmul.f32 1.0, %v2212
    %v2215 = vrot.slane %v2192, 2
    %v2216 = vrot.slane %v2192, 3
    %2217 = vrot.lane.b32.xlu0 %v2215, 32
    %v2218 = vpop.permute.xlu0 %2217
    %2219 = vrot.lane.b32.xlu0 %v2216, 32
    %v2220 = vpop.permute.xlu0 %2219
    %v2223 = vadd.f32 %v130, %v2218
    %v2224 = vadd.f32 %v135, %v2220
    %v2225 = vxor.u32 %v2223, 2147483648
    %v2226 = vxor.u32 %v2224, 2147483648
    %v2227 = vmul.f32 %v2225, 1.442695
    %v2228 = vpow.pop %v2227
    %v2229 = vmul.f32 %v2226, 1.442695
    %v2230 = vpow.pop %v2229
    %v2231 = vadd.f32 %v2228, 1.0
    %v2232 = vadd.f32 %v2230, 1.0
    %v2233 = vrcp.pop %v2231
    %v2234 = vmul.f32 1.0, %v2233
    %v2235 = vrcp.pop %v2232
    %v2236 = vmul.f32 1.0, %v2235
    %2237 = vmatprep.subr.mxu0 0.0
    %2238 = vmatpush1.msra.mxu0 %v146
    %2239 = vmatprep.subr.mxu0 0.0
    %2240 = vmatpush1.msra.mxu0 %v147
    %2241 = vmatprep.subr.mxu0 0.0
    %2242 = vmatpush1.msra.mxu0 %v148
    %2243 = vmatprep.subr.mxu0 0.0
    %2244 = vmatpush1.msra.mxu0 %v149
    %2245 = vmatprep.subr.mxu0 0.0
    %2246 = vmatpush1.msra.mxu0 0.0
    %2247 = vmatprep.subr.mxu0 0.0
    %2248 = vmatpush1.msra.mxu0 0.0
    %2249 = vmatprep.subr.mxu0 0.0
    %2250 = vmatpush1.msra.mxu0 0.0
    %2251 = vmatprep.subr.mxu0 0.0
    %2252 = vmatpush1.msra.mxu0 0.0
    %2253 = vmatprep.subr.mxu0 0.0
    %2254 = vmatpush1.msra.mxu0 0.0
    %2255 = vmatprep.subr.mxu0 0.0
    %2256 = vmatpush1.msra.mxu0 0.0
    %2257 = vmatprep.subr.mxu0 0.0
    %2258 = vmatpush1.msra.mxu0 0.0
    %2259 = vmatprep.subr.mxu0 0.0
    %2260 = vmatpush1.msra.mxu0 0.0
    %2261 = vmatprep.subr.mxu0 0.0
    %2262 = vmatpush1.msra.mxu0 0.0
    %2263 = vmatprep.subr.mxu0 0.0
    %2264 = vmatpush1.msra.mxu0 0.0
    %2265 = vmatprep.subr.mxu0 0.0
    %2266 = vmatpush1.msra.mxu0 0.0
    %2267 = vmatprep.subr.mxu0 0.0
    %2268 = vmatpush1.msra.mxu0 0.0
    %2269 = vmatprep.subr.mxu0 0.0
    %2270 = vmatpush1.msra.mxu0 0.0
    %2271 = vmatprep.subr.mxu0 0.0
    %2272 = vmatpush1.msra.mxu0 0.0
    %2273 = vmatprep.subr.mxu0 0.0
    %2274 = vmatpush1.msra.mxu0 0.0
    %2275 = vmatprep.subr.mxu0 0.0
    %2276 = vmatpush1.msra.mxu0 0.0
    %2277 = vmatprep.subr.mxu0 0.0
    %2278 = vmatpush1.msra.mxu0 0.0
    %2279 = vmatprep.subr.mxu0 0.0
    %2280 = vmatpush1.msra.mxu0 0.0
    %2281 = vmatprep.subr.mxu0 0.0
    %2282 = vmatpush1.msra.mxu0 0.0
    %2283 = vmatprep.subr.mxu0 0.0
    %2284 = vmatpush1.msra.mxu0 0.0
    %2285 = vmatprep.subr.mxu0 0.0
    %2286 = vmatpush1.msra.mxu0 0.0
    %2287 = vmatprep.subr.mxu0 0.0
    %2288 = vmatpush1.msra.mxu0 0.0
    %2289 = vmatprep.subr.mxu0 0.0
    %2290 = vmatpush1.msra.mxu0 0.0
    %2291 = vmatprep.subr.mxu0 0.0
    %2292 = vmatpush1.msra.mxu0 0.0
    %2293 = vmatprep.subr.mxu0 0.0
    %2294 = vmatpush1.msra.mxu0 0.0
    %2295 = vmatprep.subr.mxu0 0.0
    %2296 = vmatpush1.msra.mxu0 0.0
    %2297 = vmatprep.subr.mxu0 0.0
    %2298 = vmatpush1.msra.mxu0 0.0
    %2299 = vmatprep.subr.mxu0 0.0
    %2300 = vmatpush1.msra.mxu0 0.0
    %2301 = vmatprep.mubr.f32.mxu0 0.0
    %2302 = vmatmul.mubr.f32.gmra.mrb[0].mxu0 %v2053
    %v2303 = vpop.f32.mrb[0].mxu0
    %v2304 = vadd.f32 %v155, %v2303
    %v2305 = vpop.f32.mrb[0].mxu0
    %2306 = vdwg.mxu0
    %v2308 = vrot.slane %v2304, 2
    %v2309 = vrot.slane %v2304, 3
    %v2312 = vmul.f32 %v2211, %v2308
    %v2313 = vmul.f32 %v2213, %v2309
    %2316 = vrot.lane.b32.xlu0 %v2312, 64
    %v2317 = vpop.permute.xlu0 %2316
    %2318 = vrot.lane.b32.xlu0 %v2313, 64
    %v2319 = vpop.permute.xlu0 %2318
    %v2322 = vadd.f32 %v130, %v2317
    %v2323 = vadd.f32 %v135, %v2319
    %v2324 = vtanh.pop %v2322
    %v2325 = vtanh.pop %v2323
    %v2328 = vrot.slane %v2324, 1
    %v2329 = vrot.slane %v2325, 1
    %v2332 = vsub.f32 %v2036, %v2328
    %v2333 = vsub.f32 %v2037, %v2329
    %v2336 = vrot.slane %v2332, 7
    %v2337 = vrot.slane %v2333, 7
    %2338 = vrot.lane.b32.xlu0 %v2336, 96
    %v2339 = vpop.permute.xlu0 %2338
    %2340 = vrot.lane.b32.xlu0 %v2337, 96
    %v2341 = vpop.permute.xlu0 %2340
    %v2344 = vmul.f32 %v2234, %v2339
    %v2345 = vmul.f32 %v2236, %v2341
    %2348 = vrot.lane.b32.xlu0 %v2344, 32
    %v2349 = vpop.permute.xlu0 %2348
    %2350 = vrot.lane.b32.xlu0 %v2345, 32
    %v2351 = vpop.permute.xlu0 %2350
    %v2354 = vadd.f32 %v2324, %v2349
    %v2355 = vadd.f32 %v2325, %v2351
    %vm2356 = vcmp.eq.s32.totalorder %v157, 6
    %v2357 = vsel %vm2356, 1, 0
    %2358 = vset.pattern.permute.xlu0 0
    %2359 = vperm.xlu0 %2358, %v2357
    %v2360 = vpop.permute.xlu0 %2359
    %vm2361 = vcmp.eq.s32.totalorder %v2360, 1
    %v2364 = vrot.slane %v2354, 6
    %v2365 = vrot.slane %v2355, 5
    %v2366 = vsel %vm461, %v2365, %v2364
    %2367 = vrot.lane.b32.xlu0 %v2366, 64
    %v2368 = vpop.permute.xlu0 %2367
    %v2370 = vsel %vm2361, %v2368, %v2052
    %v2371 = vsel %vm158, %v2368, 0
    %2373 = vmatprep.subr.mxu0 0.0
    %2374 = vmatpush1.msra.mxu0 %v138
    %2375 = vmatprep.subr.mxu0 0.0
    %2376 = vmatpush1.msra.mxu0 %v139
    %2377 = vmatprep.subr.mxu0 0.0
    %2378 = vmatpush1.msra.mxu0 %v140
    %2379 = vmatprep.subr.mxu0 0.0
    %2380 = vmatpush1.msra.mxu0 %v141
    %2381 = vmatprep.subr.mxu0 0.0
    %2382 = vmatpush1.msra.mxu0 0.0
    %2383 = vmatprep.subr.mxu0 0.0
    %2384 = vmatpush1.msra.mxu0 0.0
    %2385 = vmatprep.subr.mxu0 0.0
    %2386 = vmatpush1.msra.mxu0 0.0
    %2387 = vmatprep.subr.mxu0 0.0
    %2388 = vmatpush1.msra.mxu0 0.0
    %2389 = vmatprep.subr.mxu0 0.0
    %2390 = vmatpush1.msra.mxu0 0.0
    %2391 = vmatprep.subr.mxu0 0.0
    %2392 = vmatpush1.msra.mxu0 0.0
    %2393 = vmatprep.subr.mxu0 0.0
    %2394 = vmatpush1.msra.mxu0 0.0
    %2395 = vmatprep.subr.mxu0 0.0
    %2396 = vmatpush1.msra.mxu0 0.0
    %2397 = vmatprep.subr.mxu0 0.0
    %2398 = vmatpush1.msra.mxu0 0.0
    %2399 = vmatprep.subr.mxu0 0.0
    %2400 = vmatpush1.msra.mxu0 0.0
    %2401 = vmatprep.subr.mxu0 0.0
    %2402 = vmatpush1.msra.mxu0 0.0
    %2403 = vmatprep.subr.mxu0 0.0
    %2404 = vmatpush1.msra.mxu0 0.0
    %2405 = vmatprep.subr.mxu0 0.0
    %2406 = vmatpush1.msra.mxu0 0.0
    %2407 = vmatprep.subr.mxu0 0.0
    %2408 = vmatpush1.msra.mxu0 0.0
    %2409 = vmatprep.subr.mxu0 0.0
    %2410 = vmatpush1.msra.mxu0 0.0
    %2411 = vmatprep.subr.mxu0 0.0
    %2412 = vmatpush1.msra.mxu0 0.0
    %2413 = vmatprep.subr.mxu0 0.0
    %2414 = vmatpush1.msra.mxu0 0.0
    %2415 = vmatprep.subr.mxu0 0.0
    %2416 = vmatpush1.msra.mxu0 0.0
    %2417 = vmatprep.subr.mxu0 0.0
    %2418 = vmatpush1.msra.mxu0 0.0
    %2419 = vmatprep.subr.mxu0 0.0
    %2420 = vmatpush1.msra.mxu0 0.0
    %2421 = vmatprep.subr.mxu0 0.0
    %2422 = vmatpush1.msra.mxu0 0.0
    %2423 = vmatprep.subr.mxu0 0.0
    %2424 = vmatpush1.msra.mxu0 0.0
    %2425 = vmatprep.subr.mxu0 0.0
    %2426 = vmatpush1.msra.mxu0 0.0
    %2427 = vmatprep.subr.mxu0 0.0
    %2428 = vmatpush1.msra.mxu0 0.0
    %2429 = vmatprep.subr.mxu0 0.0
    %2430 = vmatpush1.msra.mxu0 0.0
    %2431 = vmatprep.subr.mxu0 0.0
    %2432 = vmatpush1.msra.mxu0 0.0
    %2433 = vmatprep.subr.mxu0 0.0
    %2434 = vmatpush1.msra.mxu0 0.0
    %2435 = vmatprep.subr.mxu0 0.0
    %2436 = vmatpush1.msra.mxu0 0.0
    %2437 = vmatprep.mubr.f32.mxu0 0.0
    %2438 = vmatmul.mubr.f32.gmra.mrb[0].mxu0 %v2371
    %v2439 = vpop.f32.mrb[0].mxu0
    %v2440 = vadd.f32 0.0, %v2439
    %v2441 = vpop.f32.mrb[0].mxu0
    %2442 = vdwg.mxu0
    %2443 = vmatprep.subr.mxu0 0.0
    %2444 = vmatpush1.msra.mxu0 %v142
    %2445 = vmatprep.subr.mxu0 0.0
    %2446 = vmatpush1.msra.mxu0 %v143
    %2447 = vmatprep.subr.mxu0 0.0
    %2448 = vmatpush1.msra.mxu0 %v144
    %2449 = vmatprep.subr.mxu0 0.0
    %2450 = vmatpush1.msra.mxu0 %v145
    %2451 = vmatprep.subr.mxu0 0.0
    %2452 = vmatpush1.msra.mxu0 0.0
    %2453 = vmatprep.subr.mxu0 0.0
    %2454 = vmatpush1.msra.mxu0 0.0
    %2455 = vmatprep.subr.mxu0 0.0
    %2456 = vmatpush1.msra.mxu0 0.0
    %2457 = vmatprep.subr.mxu0 0.0
    %2458 = vmatpush1.msra.mxu0 0.0
    %2459 = vmatprep.subr.mxu0 0.0
    %2460 = vmatpush1.msra.mxu0 0.0
    %2461 = vmatprep.subr.mxu0 0.0
    %2462 = vmatpush1.msra.mxu0 0.0
    %2463 = vmatprep.subr.mxu0 0.0
    %2464 = vmatpush1.msra.mxu0 0.0
    %2465 = vmatprep.subr.mxu0 0.0
    %2466 = vmatpush1.msra.mxu0 0.0
    %2467 = vmatprep.subr.mxu0 0.0
    %2468 = vmatpush1.msra.mxu0 0.0
    %2469 = vmatprep.subr.mxu0 0.0
    %2470 = vmatpush1.msra.mxu0 0.0
    %2471 = vmatprep.subr.mxu0 0.0
    %2472 = vmatpush1.msra.mxu0 0.0
    %2473 = vmatprep.subr.mxu0 0.0
    %2474 = vmatpush1.msra.mxu0 0.0
    %2475 = vmatprep.subr.mxu0 0.0
    %2476 = vmatpush1.msra.mxu0 0.0
    %2477 = vmatprep.subr.mxu0 0.0
    %2478 = vmatpush1.msra.mxu0 0.0
    %2479 = vmatprep.subr.mxu0 0.0
    %2480 = vmatpush1.msra.mxu0 0.0
    %2481 = vmatprep.subr.mxu0 0.0
    %2482 = vmatpush1.msra.mxu0 0.0
    %2483 = vmatprep.subr.mxu0 0.0
    %2484 = vmatpush1.msra.mxu0 0.0
    %2485 = vmatprep.subr.mxu0 0.0
    %2486 = vmatpush1.msra.mxu0 0.0
    %2487 = vmatprep.subr.mxu0 0.0
    %2488 = vmatpush1.msra.mxu0 0.0
    %2489 = vmatprep.subr.mxu0 0.0
    %2490 = vmatpush1.msra.mxu0 0.0
    %2491 = vmatprep.subr.mxu0 0.0
    %2492 = vmatpush1.msra.mxu0 0.0
    %2493 = vmatprep.subr.mxu0 0.0
    %2494 = vmatpush1.msra.mxu0 0.0
    %2495 = vmatprep.subr.mxu0 0.0
    %2496 = vmatpush1.msra.mxu0 0.0
    %2497 = vmatprep.subr.mxu0 0.0
    %2498 = vmatpush1.msra.mxu0 0.0
    %2499 = vmatprep.subr.mxu0 0.0
    %2500 = vmatpush1.msra.mxu0 0.0
    %2501 = vmatprep.subr.mxu0 0.0
    %2502 = vmatpush1.msra.mxu0 0.0
    %2503 = vmatprep.subr.mxu0 0.0
    %2504 = vmatpush1.msra.mxu0 0.0
    %2505 = vmatprep.subr.mxu0 0.0
    %2506 = vmatpush1.msra.mxu0 0.0
    %2507 = vmatprep.mubr.f32.mxu0 0.0
    %2508 = vmatmul.mubr.f32.gmra.mrb[0].mxu0 %v2371
    %v2509 = vpop.f32.mrb[0].mxu0
    %v2510 = vadd.f32 0.0, %v2509
    %v2511 = vpop.f32.mrb[0].mxu0
    %2512 = vdwg.mxu0
    %v2514 = vrot.slane %v2440, 1
    %v2515 = vrot.slane %v2440, 2
    %v2518 = vadd.f32 %v130, %v2514
    %v2519 = vadd.f32 %v135, %v2515
    %v2520 = vxor.u32 %v2518, 2147483648
    %v2521 = vxor.u32 %v2519, 2147483648
    %v2522 = vmul.f32 %v2520, 1.442695
    %v2523 = vpow.pop %v2522
    %v2524 = vmul.f32 %v2521, 1.442695
    %v2525 = vpow.pop %v2524
    %v2526 = vadd.f32 %v2523, 1.0
    %v2527 = vadd.f32 %v2525, 1.0
    %v2528 = vrcp.pop %v2526
    %v2529 = vmul.f32 1.0, %v2528
    %v2530 = vrcp.pop %v2527
    %v2531 = vmul.f32 1.0, %v2530
    %v2533 = vrot.slane %v2510, 1
    %v2534 = vrot.slane %v2510, 2
    %2535 = vrot.lane.b32.xlu0 %v2533, 32
    %v2536 = vpop.permute.xlu0 %2535
    %2537 = vrot.lane.b32.xlu0 %v2534, 32
    %v2538 = vpop.permute.xlu0 %2537
    %v2541 = vadd.f32 %v130, %v2536
    %v2542 = vadd.f32 %v135, %v2538
    %v2543 = vxor.u32 %v2541, 2147483648
    %v2544 = vxor.u32 %v2542, 2147483648
    %v2545 = vmul.f32 %v2543, 1.442695
    %v2546 = vpow.pop %v2545
    %v2547 = vmul.f32 %v2544, 1.442695
    %v2548 = vpow.pop %v2547
    %v2549 = vadd.f32 %v2546, 1.0
    %v2550 = vadd.f32 %v2548, 1.0
    %v2551 = vrcp.pop %v2549
    %v2552 = vmul.f32 1.0, %v2551
    %v2553 = vrcp.pop %v2550
    %v2554 = vmul.f32 1.0, %v2553
    %2555 = vmatprep.subr.mxu0 0.0
    %2556 = vmatpush1.msra.mxu0 %v146
    %2557 = vmatprep.subr.mxu0 0.0
    %2558 = vmatpush1.msra.mxu0 %v147
    %2559 = vmatprep.subr.mxu0 0.0
    %2560 = vmatpush1.msra.mxu0 %v148
    %2561 = vmatprep.subr.mxu0 0.0
    %2562 = vmatpush1.msra.mxu0 %v149
    %2563 = vmatprep.subr.mxu0 0.0
    %2564 = vmatpush1.msra.mxu0 0.0
    %2565 = vmatprep.subr.mxu0 0.0
    %2566 = vmatpush1.msra.mxu0 0.0
    %2567 = vmatprep.subr.mxu0 0.0
    %2568 = vmatpush1.msra.mxu0 0.0
    %2569 = vmatprep.subr.mxu0 0.0
    %2570 = vmatpush1.msra.mxu0 0.0
    %2571 = vmatprep.subr.mxu0 0.0
    %2572 = vmatpush1.msra.mxu0 0.0
    %2573 = vmatprep.subr.mxu0 0.0
    %2574 = vmatpush1.msra.mxu0 0.0
    %2575 = vmatprep.subr.mxu0 0.0
    %2576 = vmatpush1.msra.mxu0 0.0
    %2577 = vmatprep.subr.mxu0 0.0
    %2578 = vmatpush1.msra.mxu0 0.0
    %2579 = vmatprep.subr.mxu0 0.0
    %2580 = vmatpush1.msra.mxu0 0.0
    %2581 = vmatprep.subr.mxu0 0.0
    %2582 = vmatpush1.msra.mxu0 0.0
    %2583 = vmatprep.subr.mxu0 0.0
    %2584 = vmatpush1.msra.mxu0 0.0
    %2585 = vmatprep.subr.mxu0 0.0
    %2586 = vmatpush1.msra.mxu0 0.0
    %2587 = vmatprep.subr.mxu0 0.0
    %2588 = vmatpush1.msra.mxu0 0.0
    %2589 = vmatprep.subr.mxu0 0.0
    %2590 = vmatpush1.msra.mxu0 0.0
    %2591 = vmatprep.subr.mxu0 0.0
    %2592 = vmatpush1.msra.mxu0 0.0
    %2593 = vmatprep.subr.mxu0 0.0
    %2594 = vmatpush1.msra.mxu0 0.0
    %2595 = vmatprep.subr.mxu0 0.0
    %2596 = vmatpush1.msra.mxu0 0.0
    %2597 = vmatprep.subr.mxu0 0.0
    %2598 = vmatpush1.msra.mxu0 0.0
    %2599 = vmatprep.subr.mxu0 0.0
    %2600 = vmatpush1.msra.mxu0 0.0
    %2601 = vmatprep.subr.mxu0 0.0
    %2602 = vmatpush1.msra.mxu0 0.0
    %2603 = vmatprep.subr.mxu0 0.0
    %2604 = vmatpush1.msra.mxu0 0.0
    %2605 = vmatprep.subr.mxu0 0.0
    %2606 = vmatpush1.msra.mxu0 0.0
    %2607 = vmatprep.subr.mxu0 0.0
    %2608 = vmatpush1.msra.mxu0 0.0
    %2609 = vmatprep.subr.mxu0 0.0
    %2610 = vmatpush1.msra.mxu0 0.0
    %2611 = vmatprep.subr.mxu0 0.0
    %2612 = vmatpush1.msra.mxu0 0.0
    %2613 = vmatprep.subr.mxu0 0.0
    %2614 = vmatpush1.msra.mxu0 0.0
    %2615 = vmatprep.subr.mxu0 0.0
    %2616 = vmatpush1.msra.mxu0 0.0
    %2617 = vmatprep.subr.mxu0 0.0
    %2618 = vmatpush1.msra.mxu0 0.0
    %2619 = vmatprep.mubr.f32.mxu0 0.0
    %2620 = vmatmul.mubr.f32.gmra.mrb[0].mxu0 %v2371
    %v2621 = vpop.f32.mrb[0].mxu0
    %v2622 = vadd.f32 %v155, %v2621
    %v2623 = vpop.f32.mrb[0].mxu0
    %2624 = vdwg.mxu0
    %v2626 = vrot.slane %v2622, 1
    %v2627 = vrot.slane %v2622, 2
    %v2630 = vmul.f32 %v2529, %v2626
    %v2631 = vmul.f32 %v2531, %v2627
    %2634 = vrot.lane.b32.xlu0 %v2630, 64
    %v2635 = vpop.permute.xlu0 %2634
    %2636 = vrot.lane.b32.xlu0 %v2631, 64
    %v2637 = vpop.permute.xlu0 %2636
    %v2640 = vadd.f32 %v130, %v2635
    %v2641 = vadd.f32 %v135, %v2637
    %v2642 = vtanh.pop %v2640
    %v2643 = vtanh.pop %v2641
    %v2646 = vrot.slane %v2642, 1
    %v2647 = vrot.slane %v2643, 1
    %v2650 = vsub.f32 %v2354, %v2646
    %v2651 = vsub.f32 %v2355, %v2647
    %v2654 = vrot.slane %v2650, 7
    %v2655 = vrot.slane %v2651, 7
    %2656 = vrot.lane.b32.xlu0 %v2654, 96
    %v2657 = vpop.permute.xlu0 %2656
    %2658 = vrot.lane.b32.xlu0 %v2655, 96
    %v2659 = vpop.permute.xlu0 %2658
    %v2662 = vmul.f32 %v2552, %v2657
    %v2663 = vmul.f32 %v2554, %v2659
    %2666 = vrot.lane.b32.xlu0 %v2662, 32
    %v2667 = vpop.permute.xlu0 %2666
    %2668 = vrot.lane.b32.xlu0 %v2663, 32
    %v2669 = vpop.permute.xlu0 %2668
    %v2672 = vadd.f32 %v2642, %v2667
    %v2673 = vadd.f32 %v2643, %v2669
    %vm2674 = vcmp.eq.s32.totalorder %v157, 7
    %v2675 = vsel %vm2674, 1, 0
    %2676 = vset.pattern.permute.xlu0 0
    %2677 = vperm.xlu0 %2676, %v2675
    %v2678 = vpop.permute.xlu0 %2677
    %vm2679 = vcmp.eq.s32.totalorder %v2678, 1
    %v2682 = vrot.slane %v2672, 7
    %v2683 = vrot.slane %v2673, 6
    %v2684 = vsel %vm461, %v2683, %v2682
    %2685 = vrot.lane.b32.xlu0 %v2684, 64
    %v2686 = vpop.permute.xlu0 %2685
    %v2688 = vsel %vm2679, %v2686, %v2370
    %v2689 = vld [vmem:[%s8] sm:$0xff]
    %v2690 = vld [vmem:[%s8 + $0x8] sm:$0xff]
    %v2691 = vld [vmem:[%s8 + $0x10] sm:$0xff]
    %v2692 = vld [vmem:[%s8 + $0x18] sm:$0xff]
    %v2693 = vld [vmem:[%s9] sm:$0x1]
    %v2695 = vlaneseq
    %v2696 = vshrl.u32 %v2695, 7
    %v2697 = vsub.s32 0, %v2696
    %v2698 = vrot.slane %v2693, %v2697
    %v2701 = vsel %vm158, %v2688, 0
    %2703 = vmatprep.subr.mxu0 0.0
    %2704 = vmatpush1.msra.mxu0 %v2689
    %2705 = vmatprep.subr.mxu0 0.0
    %2706 = vmatpush1.msra.mxu0 %v2690
    %2707 = vmatprep.subr.mxu0 0.0
    %2708 = vmatpush1.msra.mxu0 %v2691
    %2709 = vmatprep.subr.mxu0 0.0
    %2710 = vmatpush1.msra.mxu0 %v2692
    %2711 = vmatprep.subr.mxu0 0.0
    %2712 = vmatpush1.msra.mxu0 0.0
    %2713 = vmatprep.subr.mxu0 0.0
    %2714 = vmatpush1.msra.mxu0 0.0
    %2715 = vmatprep.subr.mxu0 0.0
    %2716 = vmatpush1.msra.mxu0 0.0
    %2717 = vmatprep.subr.mxu0 0.0
    %2718 = vmatpush1.msra.mxu0 0.0
    %2719 = vmatprep.subr.mxu0 0.0
    %2720 = vmatpush1.msra.mxu0 0.0
    %2721 = vmatprep.subr.mxu0 0.0
    %2722 = vmatpush1.msra.mxu0 0.0
    %2723 = vmatprep.subr.mxu0 0.0
    %2724 = vmatpush1.msra.mxu0 0.0
    %2725 = vmatprep.subr.mxu0 0.0
    %2726 = vmatpush1.msra.mxu0 0.0
    %2727 = vmatprep.subr.mxu0 0.0
    %2728 = vmatpush1.msra.mxu0 0.0
    %2729 = vmatprep.subr.mxu0 0.0
    %2730 = vmatpush1.msra.mxu0 0.0
    %2731 = vmatprep.subr.mxu0 0.0
    %2732 = vmatpush1.msra.mxu0 0.0
    %2733 = vmatprep.subr.mxu0 0.0
    %2734 = vmatpush1.msra.mxu0 0.0
    %2735 = vmatprep.subr.mxu0 0.0
    %2736 = vmatpush1.msra.mxu0 0.0
    %2737 = vmatprep.subr.mxu0 0.0
    %2738 = vmatpush1.msra.mxu0 0.0
    %2739 = vmatprep.subr.mxu0 0.0
    %2740 = vmatpush1.msra.mxu0 0.0
    %2741 = vmatprep.subr.mxu0 0.0
    %2742 = vmatpush1.msra.mxu0 0.0
    %2743 = vmatprep.subr.mxu0 0.0
    %2744 = vmatpush1.msra.mxu0 0.0
    %2745 = vmatprep.subr.mxu0 0.0
    %2746 = vmatpush1.msra.mxu0 0.0
    %2747 = vmatprep.subr.mxu0 0.0
    %2748 = vmatpush1.msra.mxu0 0.0
    %2749 = vmatprep.subr.mxu0 0.0
    %2750 = vmatpush1.msra.mxu0 0.0
    %2751 = vmatprep.subr.mxu0 0.0
    %2752 = vmatpush1.msra.mxu0 0.0
    %2753 = vmatprep.subr.mxu0 0.0
    %2754 = vmatpush1.msra.mxu0 0.0
    %2755 = vmatprep.subr.mxu0 0.0
    %2756 = vmatpush1.msra.mxu0 0.0
    %2757 = vmatprep.subr.mxu0 0.0
    %2758 = vmatpush1.msra.mxu0 0.0
    %2759 = vmatprep.subr.mxu0 0.0
    %2760 = vmatpush1.msra.mxu0 0.0
    %2761 = vmatprep.subr.mxu0 0.0
    %2762 = vmatpush1.msra.mxu0 0.0
    %2763 = vmatprep.subr.mxu0 0.0
    %2764 = vmatpush1.msra.mxu0 0.0
    %2765 = vmatprep.subr.mxu0 0.0
    %2766 = vmatpush1.msra.mxu0 0.0
    %2767 = vmatprep.mubr.f32.mxu0 0.0
    %2768 = vmatmul.mubr.f32.gmra.mrb[0].mxu0 %v2701
    %v2769 = vpop.f32.mrb[0].mxu0
    %v2770 = vadd.f32 %v2698, %v2769
    %v2771 = vpop.f32.mrb[0].mxu0
    %2772 = vdwg.mxu0
    %v2773 = vmax.f32 %v2770, 0.0
    %v2774 = vld [vmem:[%s10] sm:$0xff]
    %v2775 = vld [vmem:[%s10 + $0x8] sm:$0xff]
    %v2776 = vld [vmem:[%s10 + $0x10] sm:$0xff]
    %v2777 = vld [vmem:[%s10 + $0x18] sm:$0xff]
    %v2778 = vld [vmem:[%s11] sm:$0x1]
    %v2780 = vlaneseq
    %v2781 = vshrl.u32 %v2780, 7
    %v2782 = vsub.s32 0, %v2781
    %v2783 = vrot.slane %v2778, %v2782
    %v2786 = vsel %vm158, %v2773, 0
    %2788 = vmatprep.subr.mxu0 0.0
    %2789 = vmatpush1.msra.mxu0 %v2774
    %2790 = vmatprep.subr.mxu0 0.0
    %2791 = vmatpush1.msra.mxu0 %v2775
    %2792 = vmatprep.subr.mxu0 0.0
    %2793 = vmatpush1.msra.mxu0 %v2776
    %2794 = vmatprep.subr.mxu0 0.0
    %2795 = vmatpush1.msra.mxu0 %v2777
    %2796 = vmatprep.subr.mxu0 0.0
    %2797 = vmatpush1.msra.mxu0 0.0
    %2798 = vmatprep.subr.mxu0 0.0
    %2799 = vmatpush1.msra.mxu0 0.0
    %2800 = vmatprep.subr.mxu0 0.0
    %2801 = vmatpush1.msra.mxu0 0.0
    %2802 = vmatprep.subr.mxu0 0.0
    %2803 = vmatpush1.msra.mxu0 0.0
    %2804 = vmatprep.subr.mxu0 0.0
    %2805 = vmatpush1.msra.mxu0 0.0
    %2806 = vmatprep.subr.mxu0 0.0
    %2807 = vmatpush1.msra.mxu0 0.0
    %2808 = vmatprep.subr.mxu0 0.0
    %2809 = vmatpush1.msra.mxu0 0.0
    %2810 = vmatprep.subr.mxu0 0.0
    %2811 = vmatpush1.msra.mxu0 0.0
    %2812 = vmatprep.subr.mxu0 0.0
    %2813 = vmatpush1.msra.mxu0 0.0
    %2814 = vmatprep.subr.mxu0 0.0
    %2815 = vmatpush1.msra.mxu0 0.0
    %2816 = vmatprep.subr.mxu0 0.0
    %2817 = vmatpush1.msra.mxu0 0.0
    %2818 = vmatprep.subr.mxu0 0.0
    %2819 = vmatpush1.msra.mxu0 0.0
    %2820 = vmatprep.subr.mxu0 0.0
    %2821 = vmatpush1.msra.mxu0 0.0
    %2822 = vmatprep.subr.mxu0 0.0
    %2823 = vmatpush1.msra.mxu0 0.0
    %2824 = vmatprep.subr.mxu0 0.0
    %2825 = vmatpush1.msra.mxu0 0.0
    %2826 = vmatprep.subr.mxu0 0.0
    %2827 = vmatpush1.msra.mxu0 0.0
    %2828 = vmatprep.subr.mxu0 0.0
    %2829 = vmatpush1.msra.mxu0 0.0
    %2830 = vmatprep.subr.mxu0 0.0
    %2831 = vmatpush1.msra.mxu0 0.0
    %2832 = vmatprep.subr.mxu0 0.0
    %2833 = vmatpush1.msra.mxu0 0.0
    %2834 = vmatprep.subr.mxu0 0.0
    %2835 = vmatpush1.msra.mxu0 0.0
    %2836 = vmatprep.subr.mxu0 0.0
    %2837 = vmatpush1.msra.mxu0 0.0
    %2838 = vmatprep.subr.mxu0 0.0
    %2839 = vmatpush1.msra.mxu0 0.0
    %2840 = vmatprep.subr.mxu0 0.0
    %2841 = vmatpush1.msra.mxu0 0.0
    %2842 = vmatprep.subr.mxu0 0.0
    %2843 = vmatpush1.msra.mxu0 0.0
    %2844 = vmatprep.subr.mxu0 0.0
    %2845 = vmatpush1.msra.mxu0 0.0
    %2846 = vmatprep.subr.mxu0 0.0
    %2847 = vmatpush1.msra.mxu0 0.0
    %2848 = vmatprep.subr.mxu0 0.0
    %2849 = vmatpush1.msra.mxu0 0.0
    %2850 = vmatprep.subr.mxu0 0.0
    %2851 = vmatpush1.msra.mxu0 0.0
    %2852 = vmatprep.mubr.f32.mxu0 0.0
    %2853 = vmatmul.mubr.f32.gmra.mrb[0].mxu0 %v2786
    %v2854 = vpop.f32.mrb[0].mxu0
    %v2855 = vadd.f32 %v2783, %v2854
    %v2856 = vpop.f32.mrb[0].mxu0
    %2857 = vdwg.mxu0
    %v2858 = vtanh.pop %v2855
    %vm2859 = vcmask 25600
    %2860 = vst.msk [vmem:[#allocation2] sm:$0x3] %vm2859, %v2858
    // Predicated region
    $region50: #{actor_forward.1} parent=1 // pred_check
      _
    $region51: #{actor_forward.1} parent=1 // pred_check_branch
      %2862 = sbr.rel (0) target = $region53
    $region52: #{actor_forward.1} parent=1 // pred_region
      %s2864 = ssub.s32 32, 32
      %2865 = vsyncadd [#allocation3], %s2864
      %s2867 = sshll.u32 [#allocation2], 4
      %s2868 = int_to_ptr.vmem [resolvable:$true] %s2867
      %2870 = dma.vmem_to_hbm [thread:$0]  %s2868, 32, %s12, [#allocation3]
    $region53: #{actor_forward.1} parent=1 // pred_fallthru
      _
    // Predicated region
    $region54: #{actor_forward.1} parent=1 // pred_check
      _
    $region55: #{actor_forward.1} parent=1 // pred_check_branch
      %2872 = sbr.rel (0) target = $region57
    $region56: #{actor_forward.1} parent=1 // pred_region
      %2873 = dma.done [#allocation3], 32
    $region57: #{actor_forward.1} parent=1 // pred_fallthru
      _
    %2874 = vsyncpa [#allocation3], 1

</llo_original>
